<compile_context>
chip_gen: v6e
topology: v6e:2x2x1
jax: 0.10.0
libtpu: 0.0.40
codegen_flags: <defaults>
</compile_context>

<pallas_src>
import functools
import math

import jax
import jax.numpy as jnp
from jax.experimental import pallas as pl
from jax.experimental.pallas import tpu as pltpu

_BN_EPS = 1e-5

# Generation-aware VMEM limit (v7x has only 64 MiB per TensorCore).
try:
    _VMEM_CAP = int(pltpu.get_tpu_info().vmem_capacity_bytes)
except Exception:  # pragma: no cover - conservative fallback
    _VMEM_CAP = 64 * 1024 * 1024
_VMEM_LIMIT = int(min(_VMEM_CAP * 3 // 4, 96 * 1024 * 1024))


def _pick_tile(dim, pref, align):
    """Largest multiple of `align` <= `pref` that divides `dim`, else full extent."""
    if dim <= pref or dim % align != 0:
        return dim
    t = (pref // align) * align
    while dim % t != 0:
        t -= align
    return t


# ---------------------------------------------------------------------------
# Fused kernel: 3x3 conv (stride 1, pad 1) + folded BN + ReLU + 1x1 conv + bias
# ---------------------------------------------------------------------------
def _fcn_head_kernel(x_ref, w9_ref, s1_ref, w2_ref, b2_ref, o_ref, acc_ref,
                     *, wp2, mq, nkc):
    """One (batch, input-channel-tile) grid step.

    x_ref  : (Lp, ck)       f32   flattened padded NHWC rows of one image
    w9_ref : (9, ck, Cmid)  bf16  BN-scale-folded 3x3 weights (tap-major)
    s1_ref : (1, Cmid)      f32   BN shift (beta - mean*scale)
    w2_ref : (Cmid, Cout)   bf16  1x1 conv weight
    b2_ref : (1, Cout)      f32   1x1 conv bias
    o_ref  : (mq, Cout)     f32   final logits rows (padded-width row space)
    acc_ref: (mq, Cmid)     f32   VMEM accumulator carried across the ck axis
    """
    kc = pl.program_id(1)

    @pl.when(kc == 0)
    def _init():
        acc_ref[...] = jnp.zeros_like(acc_ref)

    acc = acc_ref[...]
    for di in range(3):
        for dj in range(3):
            off = di * wp2 + dj                                  # static tap offset
            a = x_ref[off:off + mq, :].astype(jnp.bfloat16)      # shifted VMEM view
            acc = acc + jnp.dot(a, w9_ref[di * 3 + dj, :, :],
                                preferred_element_type=jnp.float32)
    acc_ref[...] = acc

    @pl.when(kc == nkc - 1)
    def _finalize():
        # BN shift + ReLU (Dropout2d is identity in eval), then fused 1x1 conv.
        h = jnp.maximum(acc_ref[...] + s1_ref[...], 0.0).astype(jnp.bfloat16)
        y = jnp.dot(h, w2_ref[...], preferred_element_type=jnp.float32)
        o_ref[...] = (y + b2_ref[...]).astype(o_ref.dtype)


def fcn_head_fused(xp_flat, w9, shift1, w2, b2, H, W):
    """xp_flat: (N, Lp, Cin) f32 with Lp=(H+3)*(W+2); w9: (9, Cin, Cmid) bf16;
    shift1: (1, Cmid) f32; w2: (Cmid, Cout) bf16; b2: (1, Cout) f32.
    Returns (N, H*(W+2), Cout) f32 logits in padded-width row space."""
    N, Lp, Cin = xp_flat.shape
    Cmid = w9.shape[-1]
    Cout = w2.shape[-1]
    wp2 = W + 2
    mq = H * wp2
    assert Lp >= 2 * wp2 + 2 + mq      # last tap stays in bounds

    ck = _pick_tile(Cin, 256, 128)     # split input-channel reduction if large
    nkc = Cin // ck

    flops = 2 * N * mq * (9 * Cin * Cmid + Cmid * Cout)
    bytes_accessed = (xp_flat.size * 4 + w9.size * 2 + shift1.size * 4
                      + w2.size * 2 + b2.size * 4 + N * mq * Cout * 4)

    return pl.pallas_call(
        functools.partial(_fcn_head_kernel, wp2=wp2, mq=mq, nkc=nkc),
        out_shape=jax.ShapeDtypeStruct((N, mq, Cout), jnp.float32),
        grid=(N, nkc),
        in_specs=[
            pl.BlockSpec((None, Lp, ck), lambda n, k: (n, 0, k)),
            pl.BlockSpec((9, ck, Cmid), lambda n, k: (0, k, 0)),
            pl.BlockSpec((1, Cmid), lambda n, k: (0, 0)),
            pl.BlockSpec((Cmid, Cout), lambda n, k: (0, 0)),
            pl.BlockSpec((1, Cout), lambda n, k: (0, 0)),
        ],
        out_specs=pl.BlockSpec((None, mq, Cout), lambda n, k: (n, 0, 0)),
        scratch_shapes=[pltpu.VMEM((mq, Cmid), jnp.float32)],
        compiler_params=pltpu.CompilerParams(
            dimension_semantics=("parallel", "arbitrary"),
            vmem_limit_bytes=_VMEM_LIMIT),
        cost_estimate=pl.CostEstimate(flops=int(flops), transcendentals=0,
                                      bytes_accessed=int(bytes_accessed)),
    )(xp_flat, w9, shift1, w2, b2)


# ---------------------------------------------------------------------------
# FCNHead forward (eval mode)
# ---------------------------------------------------------------------------
def fcn_head_forward(x_nchw, params):
    """x_nchw: (N, Cin, H, W) f32  ->  (N, Cout, H, W) f32."""
    N, Cin, H, W = x_nchw.shape
    Cmid = params['w1'].shape[0]
    Cout = params['w2'].shape[0]
    wp2 = W + 2

    # Boundary layout glue (PyTorch NCHW interface): NCHW -> NHWC once,
    # halo pad (top=1, bottom=2 so flattened tap offsets stay in range),
    # then a free row-major flatten of the spatial dims.
    x = jnp.transpose(x_nchw, (0, 2, 3, 1))
    xp = jnp.pad(x, ((0, 0), (1, 2), (1, 1), (0, 0)))
    xp_flat = xp.reshape(N, (H + 3) * wp2, Cin)

    # Fold eval-mode BatchNorm into conv1: scale -> weights, shift -> epilogue.
    scale = params['bn_gamma'] / jnp.sqrt(params['bn_var'] + _BN_EPS)
    w1 = jnp.transpose(params['w1'], (2, 3, 1, 0)) * scale        # (3, 3, Cin, Cmid)
    w9 = w1.reshape(9, Cin, Cmid).astype(jnp.bfloat16)
    shift1 = (params['bn_beta'] - params['bn_mean'] * scale)
    shift1 = shift1.reshape(1, Cmid).astype(jnp.float32)

    # 1x1 conv weight / bias for the fused epilogue GEMM.
    w2 = jnp.transpose(params['w2'].reshape(Cout, Cmid)).astype(jnp.bfloat16)  # (Cmid, Cout)
    b2 = params['b2'].reshape(1, Cout).astype(jnp.float32)

    # nn.Dropout2d(0.1) is the identity in eval mode (handled inside the kernel
    # as a no-op between the ReLU and the 1x1 GEMM).
    y = fcn_head_fused(xp_flat, w9, shift1, w2, b2, H, W)          # (N, H*(W+2), Cout)

    # Drop the two junk columns per row introduced by the padded-width row space.
    y = y.reshape(N, H, wp2, Cout)[:, :, :W, :]
    return jnp.transpose(y, (0, 3, 1, 2))                          # back to NCHW


# ---------------------------------------------------------------------------
# Pure-JAX reference (same bf16-rounded operands) for validation
# ---------------------------------------------------------------------------
def reference_forward(x_nchw, params):
    f32 = jnp.float32
    Cmid = params['w1'].shape[0]
    Cout = params['w2'].shape[0]
    x = jnp.transpose(x_nchw, (0, 2, 3, 1)).astype(jnp.bfloat16).astype(f32)
    scale = params['bn_gamma'] / jnp.sqrt(params['bn_var'] + _BN_EPS)
    w1 = (jnp.transpose(params['w1'], (2, 3, 1, 0)) * scale)
    w1 = w1.astype(jnp.bfloat16).astype(f32)
    shift1 = params['bn_beta'] - params['bn_mean'] * scale
    h = jax.lax.conv_general_dilated(
        x, w1, window_strides=(1, 1), padding='SAME',
        dimension_numbers=('NHWC', 'HWIO', 'NHWC'),
        precision=jax.lax.Precision.HIGHEST)
    h = jnp.maximum(h + shift1, 0.0).astype(jnp.bfloat16).astype(f32)
    w2 = jnp.transpose(params['w2'].reshape(Cout, Cmid)).astype(jnp.bfloat16).astype(f32)
    y = jnp.einsum('nhwc,cm->nhwm', h, w2,
                   precision=jax.lax.Precision.HIGHEST) + params['b2']
    return jnp.transpose(y, (0, 3, 1, 2))


# ---------------------------------------------------------------------------
if __name__ == "__main__":
    key = jax.random.PRNGKey(0)
    kx, k1, k2, k3, k4, k5, k6, k7 = jax.random.split(key, 8)

    N, Cin, H, W = 2, 32, 16, 16           # small test shapes
    Cout = 8
    Cmid = Cin // 4                        # inter_channels = in_channels // 4

    x = jax.random.normal(kx, (N, Cin, H, W), jnp.float32)
    params = {
        'w1': math.sqrt(2.0 / (9 * Cin)) *
              jax.random.normal(k1, (Cmid, Cin, 3, 3), jnp.float32),
        'bn_gamma': 1.0 + 0.1 * jax.random.normal(k2, (Cmid,), jnp.float32),
        'bn_beta': 0.1 * jax.random.normal(k3, (Cmid,), jnp.float32),
        'bn_mean': 0.1 * jax.random.normal(k4, (Cmid,), jnp.float32),
        'bn_var': 1.0 + 0.1 * jnp.abs(jax.random.normal(k5, (Cmid,), jnp.float32)),
        'w2': math.sqrt(2.0 / Cmid) *
              jax.random.normal(k6, (Cout, Cmid, 1, 1), jnp.float32),
        'b2': 0.05 * jax.random.normal(k7, (Cout,), jnp.float32),
    }

    fwd = jax.jit(fcn_head_forward)
    out = jax.block_until_ready(fwd(x, params))

    assert out.shape == (N, Cout, H, W)
    assert bool(jnp.isfinite(out).all())

    ref = reference_forward(x, params)
    abs_err = jnp.abs(out - ref)
    max_err = float(jnp.max(abs_err))
    mean_err = float(jnp.mean(abs_err))
    assert max_err < 1e-1, f"max abs error vs reference: {max_err}"
    assert mean_err < 2e-3, f"mean abs error vs reference: {mean_err}"

    print("KERNEL_OK")
</pallas_src>

<mosaic_0001>
module attributes {stable_mosaic.version = 11 : i64} {
  func.func @_fcn_head_kernel(%arg0: i32, %arg1: i32, %arg2: memref<1x342x32xf32, #tpu.memory_space<vmem>>, %arg3: memref<9x32x8xbf16, #tpu.memory_space<vmem>>, %arg4: memref<1x8xf32, #tpu.memory_space<vmem>>, %arg5: memref<8x8xbf16, #tpu.memory_space<vmem>>, %arg6: memref<1x8xf32, #tpu.memory_space<vmem>>, %arg7: memref<1x288x8xf32, #tpu.memory_space<vmem>>, %arg8: memref<288x8xf32, #tpu.memory_space<vmem>>) attributes {dimension_semantics = [#tpu.dimension_semantics<parallel>, #tpu.dimension_semantics<arbitrary>], iteration_bounds = array<i64: 2, 1>, scalar_prefetch = 0 : i64, scratch_operands = 1 : i64, tpu.core_type = #tpu.core_type<tc>, window_params = [{transform_indices = @transform_0, window_bounds = array<i64: 1, 342, 32>}, {transform_indices = @transform_1, window_bounds = array<i64: 9, 32, 8>}, {pipeline_mode = #tpu.pipeline_mode<synchronous>, transform_indices = @transform_2, window_bounds = array<i64: 1, 8>}, {pipeline_mode = #tpu.pipeline_mode<synchronous>, transform_indices = @transform_3, window_bounds = array<i64: 8, 8>}, {pipeline_mode = #tpu.pipeline_mode<synchronous>, transform_indices = @transform_4, window_bounds = array<i64: 1, 8>}, {transform_indices = @transform_5, window_bounds = array<i64: 1, 288, 8>}]} {
    %c0_i32 = arith.constant 0 : i32
    %0 = arith.cmpi eq, %arg1, %c0_i32 : i32
    %1 = arith.extui %0 : i1 to i32
    %c0_i32_0 = arith.constant 0 : i32
    %2 = arith.cmpi ne, %1, %c0_i32_0 : i32
    scf.if %2 {
      %cst_54 = arith.constant 0.000000e+00 : f32
      %71 = vector.broadcast %cst_54 : f32 to vector<288x8xf32>
      %c0_55 = arith.constant 0 : index
      %c0_56 = arith.constant 0 : index
      %72 = vector.load %arg8[%c0_55, %c0_56] : memref<288x8xf32, #tpu.memory_space<vmem>>, vector<288x8xf32>
      tpu.vector_store %arg8[%c0_55, %c0_56], %71 {strides = array<i32>} : memref<288x8xf32, #tpu.memory_space<vmem>>, vector<288x8xf32>,
    } else {
    }
    %c0 = arith.constant 0 : index
    %c0_1 = arith.constant 0 : index
    %3 = vector.load %arg8[%c0, %c0_1] : memref<288x8xf32, #tpu.memory_space<vmem>>, vector<288x8xf32>
    %c0_2 = arith.constant 0 : index
    %c0_3 = arith.constant 0 : index
    %c0_4 = arith.constant 0 : index
    %4 = vector.load %arg2[%c0_2, %c0_3, %c0_4] : memref<1x342x32xf32, #tpu.memory_space<vmem>>, vector<1x288x32xf32>
    %5 = vector.shape_cast %4 : vector<1x288x32xf32> to vector<288x32xf32>
    %6 = arith.truncf %5 : vector<288x32xf32> to vector<288x32xbf16>
    %c0_5 = arith.constant 0 : index
    %c0_6 = arith.constant 0 : index
    %c0_7 = arith.constant 0 : index
    %7 = vector.load %arg3[%c0_5, %c0_6, %c0_7] : memref<9x32x8xbf16, #tpu.memory_space<vmem>>, vector<1x32x8xbf16>
    %8 = vector.shape_cast %7 : vector<1x32x8xbf16> to vector<32x8xbf16>
    %cst = arith.constant dense<0.000000e+00> : vector<288x8xf32>
    %9 = tpu.matmul %6, %8, %cst {dimension_numbers = #tpu.dot_dimension_numbers<[1], [0], [0], [1], [0, 0, 1, 1], [], []>} : vector<288x32xbf16>, vector<32x8xbf16>, vector<288x8xf32> -> vector<288x8xf32>
    %10 = arith.addf %3, %9 : vector<288x8xf32>
    %c0_8 = arith.constant 0 : index
    %c1 = arith.constant 1 : index
    %c0_9 = arith.constant 0 : index
    %11 = vector.load %arg2[%c0_8, %c1, %c0_9] : memref<1x342x32xf32, #tpu.memory_space<vmem>>, vector<1x288x32xf32>
    %12 = vector.shape_cast %11 : vector<1x288x32xf32> to vector<288x32xf32>
    %13 = arith.truncf %12 : vector<288x32xf32> to vector<288x32xbf16>
    %c1_10 = arith.constant 1 : index
    %c0_11 = arith.constant 0 : index
    %c0_12 = arith.constant 0 : index
    %14 = vector.load %arg3[%c1_10, %c0_11, %c0_12] : memref<9x32x8xbf16, #tpu.memory_space<vmem>>, vector<1x32x8xbf16>
    %15 = vector.shape_cast %14 : vector<1x32x8xbf16> to vector<32x8xbf16>
    %cst_13 = arith.constant dense<0.000000e+00> : vector<288x8xf32>
    %16 = tpu.matmul %13, %15, %cst_13 {dimension_numbers = #tpu.dot_dimension_numbers<[1], [0], [0], [1], [0, 0, 1, 1], [], []>} : vector<288x32xbf16>, vector<32x8xbf16>, vector<288x8xf32> -> vector<288x8xf32>
    %17 = arith.addf %10, %16 : vector<288x8xf32>
    %c0_14 = arith.constant 0 : index
    %c2 = arith.constant 2 : index
    %c0_15 = arith.constant 0 : index
    %18 = vector.load %arg2[%c0_14, %c2, %c0_15] : memref<1x342x32xf32, #tpu.memory_space<vmem>>, vector<1x288x32xf32>
    %19 = vector.shape_cast %18 : vector<1x288x32xf32> to vector<288x32xf32>
    %20 = arith.truncf %19 : vector<288x32xf32> to vector<288x32xbf16>
    %c2_16 = arith.constant 2 : index
    %c0_17 = arith.constant 0 : index
    %c0_18 = arith.constant 0 : index
    %21 = vector.load %arg3[%c2_16, %c0_17, %c0_18] : memref<9x32x8xbf16, #tpu.memory_space<vmem>>, vector<1x32x8xbf16>
    %22 = vector.shape_cast %21 : vector<1x32x8xbf16> to vector<32x8xbf16>
    %cst_19 = arith.constant dense<0.000000e+00> : vector<288x8xf32>
    %23 = tpu.matmul %20, %22, %cst_19 {dimension_numbers = #tpu.dot_dimension_numbers<[1], [0], [0], [1], [0, 0, 1, 1], [], []>} : vector<288x32xbf16>, vector<32x8xbf16>, vector<288x8xf32> -> vector<288x8xf32>
    %24 = arith.addf %17, %23 : vector<288x8xf32>
    %c0_20 = arith.constant 0 : index
    %c18 = arith.constant 18 : index
    %c0_21 = arith.constant 0 : index
    %25 = vector.load %arg2[%c0_20, %c18, %c0_21] : memref<1x342x32xf32, #tpu.memory_space<vmem>>, vector<1x288x32xf32>
    %26 = vector.shape_cast %25 : vector<1x288x32xf32> to vector<288x32xf32>
    %27 = arith.truncf %26 : vector<288x32xf32> to vector<288x32xbf16>
    %c3 = arith.constant 3 : index
    %c0_22 = arith.constant 0 : index
    %c0_23 = arith.constant 0 : index
    %28 = vector.load %arg3[%c3, %c0_22, %c0_23] : memref<9x32x8xbf16, #tpu.memory_space<vmem>>, vector<1x32x8xbf16>
    %29 = vector.shape_cast %28 : vector<1x32x8xbf16> to vector<32x8xbf16>
    %cst_24 = arith.constant dense<0.000000e+00> : vector<288x8xf32>
    %30 = tpu.matmul %27, %29, %cst_24 {dimension_numbers = #tpu.dot_dimension_numbers<[1], [0], [0], [1], [0, 0, 1, 1], [], []>} : vector<288x32xbf16>, vector<32x8xbf16>, vector<288x8xf32> -> vector<288x8xf32>
    %31 = arith.addf %24, %30 : vector<288x8xf32>
    %c0_25 = arith.constant 0 : index
    %c19 = arith.constant 19 : index
    %c0_26 = arith.constant 0 : index
    %32 = vector.load %arg2[%c0_25, %c19, %c0_26] : memref<1x342x32xf32, #tpu.memory_space<vmem>>, vector<1x288x32xf32>
    %33 = vector.shape_cast %32 : vector<1x288x32xf32> to vector<288x32xf32>
    %34 = arith.truncf %33 : vector<288x32xf32> to vector<288x32xbf16>
    %c4 = arith.constant 4 : index
    %c0_27 = arith.constant 0 : index
    %c0_28 = arith.constant 0 : index
    %35 = vector.load %arg3[%c4, %c0_27, %c0_28] : memref<9x32x8xbf16, #tpu.memory_space<vmem>>, vector<1x32x8xbf16>
    %36 = vector.shape_cast %35 : vector<1x32x8xbf16> to vector<32x8xbf16>
    %cst_29 = arith.constant dense<0.000000e+00> : vector<288x8xf32>
    %37 = tpu.matmul %34, %36, %cst_29 {dimension_numbers = #tpu.dot_dimension_numbers<[1], [0], [0], [1], [0, 0, 1, 1], [], []>} : vector<288x32xbf16>, vector<32x8xbf16>, vector<288x8xf32> -> vector<288x8xf32>
    %38 = arith.addf %31, %37 : vector<288x8xf32>
    %c0_30 = arith.constant 0 : index
    %c20 = arith.constant 20 : index
    %c0_31 = arith.constant 0 : index
    %39 = vector.load %arg2[%c0_30, %c20, %c0_31] : memref<1x342x32xf32, #tpu.memory_space<vmem>>, vector<1x288x32xf32>
    %40 = vector.shape_cast %39 : vector<1x288x32xf32> to vector<288x32xf32>
    %41 = arith.truncf %40 : vector<288x32xf32> to vector<288x32xbf16>
    %c5 = arith.constant 5 : index
    %c0_32 = arith.constant 0 : index
    %c0_33 = arith.constant 0 : index
    %42 = vector.load %arg3[%c5, %c0_32, %c0_33] : memref<9x32x8xbf16, #tpu.memory_space<vmem>>, vector<1x32x8xbf16>
    %43 = vector.shape_cast %42 : vector<1x32x8xbf16> to vector<32x8xbf16>
    %cst_34 = arith.constant dense<0.000000e+00> : vector<288x8xf32>
    %44 = tpu.matmul %41, %43, %cst_34 {dimension_numbers = #tpu.dot_dimension_numbers<[1], [0], [0], [1], [0, 0, 1, 1], [], []>} : vector<288x32xbf16>, vector<32x8xbf16>, vector<288x8xf32> -> vector<288x8xf32>
    %45 = arith.addf %38, %44 : vector<288x8xf32>
    %c0_35 = arith.constant 0 : index
    %c36 = arith.constant 36 : index
    %c0_36 = arith.constant 0 : index
    %46 = vector.load %arg2[%c0_35, %c36, %c0_36] : memref<1x342x32xf32, #tpu.memory_space<vmem>>, vector<1x288x32xf32>
    %47 = vector.shape_cast %46 : vector<1x288x32xf32> to vector<288x32xf32>
    %48 = arith.truncf %47 : vector<288x32xf32> to vector<288x32xbf16>
    %c6 = arith.constant 6 : index
    %c0_37 = arith.constant 0 : index
    %c0_38 = arith.constant 0 : index
    %49 = vector.load %arg3[%c6, %c0_37, %c0_38] : memref<9x32x8xbf16, #tpu.memory_space<vmem>>, vector<1x32x8xbf16>
    %50 = vector.shape_cast %49 : vector<1x32x8xbf16> to vector<32x8xbf16>
    %cst_39 = arith.constant dense<0.000000e+00> : vector<288x8xf32>
    %51 = tpu.matmul %48, %50, %cst_39 {dimension_numbers = #tpu.dot_dimension_numbers<[1], [0], [0], [1], [0, 0, 1, 1], [], []>} : vector<288x32xbf16>, vector<32x8xbf16>, vector<288x8xf32> -> vector<288x8xf32>
    %52 = arith.addf %45, %51 : vector<288x8xf32>
    %c0_40 = arith.constant 0 : index
    %c37 = arith.constant 37 : index
    %c0_41 = arith.constant 0 : index
    %53 = vector.load %arg2[%c0_40, %c37, %c0_41] : memref<1x342x32xf32, #tpu.memory_space<vmem>>, vector<1x288x32xf32>
    %54 = vector.shape_cast %53 : vector<1x288x32xf32> to vector<288x32xf32>
    %55 = arith.truncf %54 : vector<288x32xf32> to vector<288x32xbf16>
    %c7 = arith.constant 7 : index
    %c0_42 = arith.constant 0 : index
    %c0_43 = arith.constant 0 : index
    %56 = vector.load %arg3[%c7, %c0_42, %c0_43] : memref<9x32x8xbf16, #tpu.memory_space<vmem>>, vector<1x32x8xbf16>
    %57 = vector.shape_cast %56 : vector<1x32x8xbf16> to vector<32x8xbf16>
    %cst_44 = arith.constant dense<0.000000e+00> : vector<288x8xf32>
    %58 = tpu.matmul %55, %57, %cst_44 {dimension_numbers = #tpu.dot_dimension_numbers<[1], [0], [0], [1], [0, 0, 1, 1], [], []>} : vector<288x32xbf16>, vector<32x8xbf16>, vector<288x8xf32> -> vector<288x8xf32>
    %59 = arith.addf %52, %58 : vector<288x8xf32>
    %c0_45 = arith.constant 0 : index
    %c38 = arith.constant 38 : index
    %c0_46 = arith.constant 0 : index
    %60 = vector.load %arg2[%c0_45, %c38, %c0_46] : memref<1x342x32xf32, #tpu.memory_space<vmem>>, vector<1x288x32xf32>
    %61 = vector.shape_cast %60 : vector<1x288x32xf32> to vector<288x32xf32>
    %62 = arith.truncf %61 : vector<288x32xf32> to vector<288x32xbf16>
    %c8 = arith.constant 8 : index
    %c0_47 = arith.constant 0 : index
    %c0_48 = arith.constant 0 : index
    %63 = vector.load %arg3[%c8, %c0_47, %c0_48] : memref<9x32x8xbf16, #tpu.memory_space<vmem>>, vector<1x32x8xbf16>
    %64 = vector.shape_cast %63 : vector<1x32x8xbf16> to vector<32x8xbf16>
    %cst_49 = arith.constant dense<0.000000e+00> : vector<288x8xf32>
    %65 = tpu.matmul %62, %64, %cst_49 {dimension_numbers = #tpu.dot_dimension_numbers<[1], [0], [0], [1], [0, 0, 1, 1], [], []>} : vector<288x32xbf16>, vector<32x8xbf16>, vector<288x8xf32> -> vector<288x8xf32>
    %66 = arith.addf %59, %65 : vector<288x8xf32>
    %c0_50 = arith.constant 0 : index
    %c0_51 = arith.constant 0 : index
    %67 = vector.load %arg8[%c0_50, %c0_51] : memref<288x8xf32, #tpu.memory_space<vmem>>, vector<288x8xf32>
    tpu.vector_store %arg8[%c0_50, %c0_51], %66 {strides = array<i32>} : memref<288x8xf32, #tpu.memory_space<vmem>>, vector<288x8xf32>,
    %c0_i32_52 = arith.constant 0 : i32
    %68 = arith.cmpi eq, %arg1, %c0_i32_52 : i32
    %69 = arith.extui %68 : i1 to i32
    %c0_i32_53 = arith.constant 0 : i32
    %70 = arith.cmpi ne, %69, %c0_i32_53 : i32
    scf.if %70 {
      %c0_54 = arith.constant 0 : index
      %c0_55 = arith.constant 0 : index
      %71 = vector.load %arg8[%c0_54, %c0_55] : memref<288x8xf32, #tpu.memory_space<vmem>>, vector<288x8xf32>
      %c0_56 = arith.constant 0 : index
      %c0_57 = arith.constant 0 : index
      %72 = vector.load %arg4[%c0_56, %c0_57] : memref<1x8xf32, #tpu.memory_space<vmem>>, vector<1x8xf32>
      %73 = vector.broadcast %72 : vector<1x8xf32> to vector<288x8xf32>
      %74 = arith.addf %71, %73 : vector<288x8xf32>
      %cst_58 = arith.constant 0.000000e+00 : f32
      %75 = vector.broadcast %cst_58 : f32 to vector<288x8xf32>
      %76 = arith.maximumf %74, %75 : vector<288x8xf32>
      %77 = arith.truncf %76 : vector<288x8xf32> to vector<288x8xbf16>
      %c0_59 = arith.constant 0 : index
      %c0_60 = arith.constant 0 : index
      %78 = vector.load %arg5[%c0_59, %c0_60] : memref<8x8xbf16, #tpu.memory_space<vmem>>, vector<8x8xbf16>
      %cst_61 = arith.constant dense<0.000000e+00> : vector<288x8xf32>
      %79 = tpu.matmul %77, %78, %cst_61 {dimension_numbers = #tpu.dot_dimension_numbers<[1], [0], [0], [1], [0, 0, 1, 1], [], []>} : vector<288x8xbf16>, vector<8x8xbf16>, vector<288x8xf32> -> vector<288x8xf32>
      %c0_62 = arith.constant 0 : index
      %c0_63 = arith.constant 0 : index
      %80 = vector.load %arg6[%c0_62, %c0_63] : memref<1x8xf32, #tpu.memory_space<vmem>>, vector<1x8xf32>
      %81 = vector.broadcast %80 : vector<1x8xf32> to vector<288x8xf32>
      %82 = arith.addf %79, %81 : vector<288x8xf32>
      %c0_64 = arith.constant 0 : index
      %c0_65 = arith.constant 0 : index
      %c0_66 = arith.constant 0 : index
      %83 = vector.load %arg7[%c0_64, %c0_65, %c0_66] : memref<1x288x8xf32, #tpu.memory_space<vmem>>, vector<1x288x8xf32>
      %84 = vector.shape_cast %83 : vector<1x288x8xf32> to vector<288x8xf32>
      %85 = vector.shape_cast %82 : vector<288x8xf32> to vector<1x288x8xf32>
      tpu.vector_store %arg7[%c0_64, %c0_65, %c0_66], %85 {strides = array<i32>} : memref<1x288x8xf32, #tpu.memory_space<vmem>>, vector<1x288x8xf32>,
    } else {
    }
    return
  }
  func.func @transform_0(%arg0: i32, %arg1: i32) -> (i32, i32, i32) {
    %c0_i32 = arith.constant 0 : i32
    %c0_i32_0 = arith.constant 0 : i32
    return %arg0, %c0_i32, %arg1 : i32, i32, i32
  }
  func.func @transform_1(%arg0: i32, %arg1: i32) -> (i32, i32, i32) {
    %c0_i32 = arith.constant 0 : i32
    %c0_i32_0 = arith.constant 0 : i32
    %c0_i32_1 = arith.constant 0 : i32
    return %c0_i32, %arg1, %c0_i32_0 : i32, i32, i32
  }
  func.func @transform_2(%arg0: i32, %arg1: i32) -> (i32, i32) {
    %c0_i32 = arith.constant 0 : i32
    %c0_i32_0 = arith.constant 0 : i32
    %c0_i32_1 = arith.constant 0 : i32
    return %c0_i32, %c0_i32_0 : i32, i32
  }
  func.func @transform_3(%arg0: i32, %arg1: i32) -> (i32, i32) {
    %c0_i32 = arith.constant 0 : i32
    %c0_i32_0 = arith.constant 0 : i32
    %c0_i32_1 = arith.constant 0 : i32
    return %c0_i32, %c0_i32_0 : i32, i32
  }
  func.func @transform_4(%arg0: i32, %arg1: i32) -> (i32, i32) {
    %c0_i32 = arith.constant 0 : i32
    %c0_i32_0 = arith.constant 0 : i32
    %c0_i32_1 = arith.constant 0 : i32
    return %c0_i32, %c0_i32_0 : i32, i32
  }
  func.func @transform_5(%arg0: i32, %arg1: i32) -> (i32, i32, i32) {
    %c0_i32 = arith.constant 0 : i32
    %c0_i32_0 = arith.constant 0 : i32
    %c0_i32_1 = arith.constant 0 : i32
    return %arg0, %c0_i32, %c0_i32_0 : i32, i32, i32
  }
}

</mosaic_0001>

<llo_original>
// kernel: fcn_head_forward.1
$region0: #{fcn_head_forward.1}
  #allocation0 [shape = 'u32[]', space=smem, size = 0x4, offset = 0x4, fixed_abs, tag = 'smem constant byte address 0x4 - core index']
  #allocation1 [shape = 'u32[144,128]{1,0:T(1,128)}', space=vmem, size = 0x12000, scoped, tag = 'internal scratch']
  #allocation2 [shape = 'f32[288,8]{1,0:T(8,128)}', space=vmem, size = 0x24000, scoped, tag = 'scratch operand']
  %s0 = inlined_call_operand.vmem [shape: f32[2,342,32], index: 0, kind: input, shape index: {}]
  %s1 = inlined_call_operand.vmem [shape: bf16[9,32,8], index: 1, kind: input, shape index: {}]
  %s2 = inlined_call_operand.vmem [shape: f32[1,8], index: 2, kind: input, shape index: {}]
  %s3 = inlined_call_operand.vmem [shape: bf16[8,8], index: 3, kind: input, shape index: {}]
  %s4 = inlined_call_operand.vmem [shape: f32[1,8], index: 4, kind: input, shape index: {}]
  %s5 = inlined_call_operand.vmem [shape: f32[2,288,8], index: 5, kind: output, shape index: {}]
  %s6 = sld [smem:[#allocation0]]
  $region61: #{fcn_head_forward.1} parent=0
    _
  %s8 = ssub.s32 1, %s6
  %s9 = scalar_select 0, %s8, %s6
  loop: start=0, step=1, limit=4
  $region2: #{fcn_head_forward.1} parent=0 // loop_pre_header
    _
  $region3: #{fcn_head_forward.1} parent=0 // loop_header
    %s11 = sphi 0, %s15
    %p12 = scmp.ge.s32.totalorder %s11, 4
    %s18 = sphi 0, %s30
    %s19 = sphi 0, %s26
    %s20 = sphi 0, %s18
    %s21 = sphi 0, %s19
    %s22 = sphi 0, %s20
    %s23 = sphi 0, %s21
    %s35 = sphi 0, %s37
    %s38 = sphi 0, %s35
    %s39 = sphi 0, %s38
    %s55 = sphi 0, %s39
    %s61 = sphi 0, %s63
    %s64 = sphi 0, %s61
    %s65 = sphi 0, %s64
    %s81 = sphi 0, %s65
    %s85 = sphi 0, %s85
    %s87 = sphi 0, %s85
    %s88 = sphi 0, %s87
    %s102 = sphi 0, %s88
    %s106 = sphi 0, %s106
    %s108 = sphi 0, %s106
    %s109 = sphi 0, %s108
    %s123 = sphi 0, %s109
    %s127 = sphi 0, %s127
    %s129 = sphi 0, %s127
    %s130 = sphi 0, %s129
    %s144 = sphi 0, %s130
    %s150 = sphi 0, %s152
    %s153 = sphi 0, %s150
    %s154 = sphi 0, %s153
    %s170 = sphi 0, %s154
  $region4: #{fcn_head_forward.1} parent=0 // loop_header_branch
    %14 = sbr.rel (%p12) target = $region8
  $region5: #{fcn_head_forward.1} parent=0 // loop_body
    %s16 = ssub.s32 %s11, 1
    %s17 = ssub.s32 %s11, 2
    %s24 = sadd.s32 1, %s19
    %p25 = scmp.ge.s32.totalorder %s24, 1
    %s26 = scalar_select %p25, 0, %s24
    %s27 = sadd.s32 1, %s18
    %s28 = scalar_select %p25, %s27, %s18
    %p29 = scmp.ge.s32.totalorder %s28, 2
    %s30 = scalar_select %p29, 0, %s28
    %s31 = ssub.s32 %s18, %s30
    %s32 = ssub.s32 %s19, %s26
    %s33 = sor.u32 %s31, %s32
    %p34 = scmp.eq.s32.totalorder %s33, 0
    %s36 = sadd.s32 %s35, 1
    %s37 = scalar_select %p34, %s35, %s36
    %p40 = pneg %p34
    %p41 = scmp.eq.s32.totalorder %s11, 1
    %p42 = por %p40, %p41
    %p43 = scmp.ne.s32.totalorder %s35, %s38
    %p44 = scmp.eq.s32.totalorder %s11, 0
    %p45 = por %p43, %p44
    %p46 = scmp.ne.s32.totalorder %s35, %s38
    %p47 = scmp.eq.s32.totalorder %s16, 1
    %p48 = por %p46, %p47
    %p49 = scmp.ne.s32.totalorder %s38, %s39
    %p50 = scmp.eq.s32.totalorder %s16, 0
    %p51 = por %p49, %p50
    %p52 = scmp.ne.s32.totalorder %s38, %s39
    %p53 = scmp.eq.s32.totalorder %s17, 1
    %p54 = por %p52, %p53
    %p56 = scmp.ne.s32.totalorder %s39, %s55
    %p57 = scmp.eq.s32.totalorder %s17, 0
    %p58 = por %p56, %p57
    %s59 = ssub.s32 %s19, %s26
    %p60 = scmp.eq.s32.totalorder %s59, 0
    %s62 = sadd.s32 %s61, 1
    %s63 = scalar_select %p60, %s61, %s62
    %p66 = pneg %p60
    %p67 = scmp.eq.s32.totalorder %s11, 1
    %p68 = por %p66, %p67
    %p69 = scmp.ne.s32.totalorder %s61, %s64
    %p70 = scmp.eq.s32.totalorder %s11, 0
    %p71 = por %p69, %p70
    %p72 = scmp.ne.s32.totalorder %s61, %s64
    %p73 = scmp.eq.s32.totalorder %s16, 1
    %p74 = por %p72, %p73
    %p75 = scmp.ne.s32.totalorder %s64, %s65
    %p76 = scmp.eq.s32.totalorder %s16, 0
    %p77 = por %p75, %p76
    %p78 = scmp.ne.s32.totalorder %s64, %s65
    %p79 = scmp.eq.s32.totalorder %s17, 1
    %p80 = por %p78, %p79
    %p82 = scmp.ne.s32.totalorder %s65, %s81
    %p83 = scmp.eq.s32.totalorder %s17, 0
    %p84 = por %p82, %p83
    %s86 = sadd.s32 %s85, 1
    %p89 = scmp.eq.s32.totalorder %s11, 1
    %p90 = scmp.ne.s32.totalorder %s85, %s87
    %p91 = scmp.eq.s32.totalorder %s11, 0
    %p92 = por %p90, %p91
    %p93 = scmp.ne.s32.totalorder %s85, %s87
    %p94 = scmp.eq.s32.totalorder %s16, 1
    %p95 = por %p93, %p94
    %p96 = scmp.ne.s32.totalorder %s87, %s88
    %p97 = scmp.eq.s32.totalorder %s16, 0
    %p98 = por %p96, %p97
    %p99 = scmp.ne.s32.totalorder %s87, %s88
    %p100 = scmp.eq.s32.totalorder %s17, 1
    %p101 = por %p99, %p100
    %p103 = scmp.ne.s32.totalorder %s88, %s102
    %p104 = scmp.eq.s32.totalorder %s17, 0
    %p105 = por %p103, %p104
    %s107 = sadd.s32 %s106, 1
    %p110 = scmp.eq.s32.totalorder %s11, 1
    %p111 = scmp.ne.s32.totalorder %s106, %s108
    %p112 = scmp.eq.s32.totalorder %s11, 0
    %p113 = por %p111, %p112
    %p114 = scmp.ne.s32.totalorder %s106, %s108
    %p115 = scmp.eq.s32.totalorder %s16, 1
    %p116 = por %p114, %p115
    %p117 = scmp.ne.s32.totalorder %s108, %s109
    %p118 = scmp.eq.s32.totalorder %s16, 0
    %p119 = por %p117, %p118
    %p120 = scmp.ne.s32.totalorder %s108, %s109
    %p121 = scmp.eq.s32.totalorder %s17, 1
    %p122 = por %p120, %p121
    %p124 = scmp.ne.s32.totalorder %s109, %s123
    %p125 = scmp.eq.s32.totalorder %s17, 0
    %p126 = por %p124, %p125
    %s128 = sadd.s32 %s127, 1
    %p131 = scmp.eq.s32.totalorder %s11, 1
    %p132 = scmp.ne.s32.totalorder %s127, %s129
    %p133 = scmp.eq.s32.totalorder %s11, 0
    %p134 = por %p132, %p133
    %p135 = scmp.ne.s32.totalorder %s127, %s129
    %p136 = scmp.eq.s32.totalorder %s16, 1
    %p137 = por %p135, %p136
    %p138 = scmp.ne.s32.totalorder %s129, %s130
    %p139 = scmp.eq.s32.totalorder %s16, 0
    %p140 = por %p138, %p139
    %p141 = scmp.ne.s32.totalorder %s129, %s130
    %p142 = scmp.eq.s32.totalorder %s17, 1
    %p143 = por %p141, %p142
    %p145 = scmp.ne.s32.totalorder %s130, %s144
    %p146 = scmp.eq.s32.totalorder %s17, 0
    %p147 = por %p145, %p146
    %s148 = ssub.s32 %s18, %s30
    %p149 = scmp.eq.s32.totalorder %s148, 0
    %s151 = sadd.s32 %s150, 1
    %s152 = scalar_select %p149, %s150, %s151
    %p155 = pneg %p149
    %p156 = scmp.eq.s32.totalorder %s11, 1
    %p157 = por %p155, %p156
    %p158 = scmp.ne.s32.totalorder %s150, %s153
    %p159 = scmp.eq.s32.totalorder %s11, 0
    %p160 = por %p158, %p159
    %p161 = scmp.ne.s32.totalorder %s150, %s153
    %p162 = scmp.eq.s32.totalorder %s16, 1
    %p163 = por %p161, %p162
    %p164 = scmp.ne.s32.totalorder %s153, %s154
    %p165 = scmp.eq.s32.totalorder %s16, 0
    %p166 = por %p164, %p165
    %p167 = scmp.ne.s32.totalorder %s153, %s154
    %p168 = scmp.eq.s32.totalorder %s17, 1
    %p169 = por %p167, %p168
    %p171 = scmp.ne.s32.totalorder %s154, %s170
    %p172 = scmp.eq.s32.totalorder %s17, 0
    %p173 = por %p171, %p172
    %p174 = scmp.le.s32.totalorder 1, %s11
    %p175 = scmp.lt.s32.totalorder %s11, 3
    %p176 = pnand %p174, %p175
    %p177 = pneg %p176
    // Predicated region
    $region9: #{fcn_head_forward.1} parent=5 // pred_check
      _
    $region10: #{fcn_head_forward.1} parent=5 // pred_check_branch
      %179 = sbr.rel (%p176) target = $region12
    $region11: #{fcn_head_forward.1} parent=5 // pred_region
      %s180 = ssub.s32 %s11, 1
      // Predicated region
      $region13: #{fcn_head_forward.1} parent=11 // pred_check
        %p181 = pneg %p77
      $region14: #{fcn_head_forward.1} parent=11 // pred_check_branch
        %183 = sbr.rel (%p181) target = $region16
      $region15: #{fcn_head_forward.1} parent=11 // pred_region
        %s184 = smul.u32 4, %s21
        %p185 = scmp.lt.s32.totalorder %s184, 3
        %s186 = scalar_select %p185, %s184, 3
        %s187 = smul.addr %s186, 4
        %s188 = scalar_lea.vmem %s1, %s187
        %s189 = smul.u32 4, %s21
      $region16: #{fcn_head_forward.1} parent=11 // pred_fallthru
        _
      // Predicated region
      $region17: #{fcn_head_forward.1} parent=11 // pred_check
        %p190 = pneg %p98
      $region18: #{fcn_head_forward.1} parent=11 // pred_check_branch
        %192 = sbr.rel (%p190) target = $region20
      $region19: #{fcn_head_forward.1} parent=11 // pred_region
        _
      $region20: #{fcn_head_forward.1} parent=11 // pred_fallthru
        _
      // Predicated region
      $region21: #{fcn_head_forward.1} parent=11 // pred_check
        %p193 = pneg %p119
      $region22: #{fcn_head_forward.1} parent=11 // pred_check_branch
        %195 = sbr.rel (%p193) target = $region24
      $region23: #{fcn_head_forward.1} parent=11 // pred_region
        _
      $region24: #{fcn_head_forward.1} parent=11 // pred_fallthru
        _
      // Predicated region
      $region25: #{fcn_head_forward.1} parent=11 // pred_check
        %p196 = pneg %p140
      $region26: #{fcn_head_forward.1} parent=11 // pred_check_branch
        %198 = sbr.rel (%p196) target = $region28
      $region27: #{fcn_head_forward.1} parent=11 // pred_region
        _
      $region28: #{fcn_head_forward.1} parent=11 // pred_fallthru
        _
    $region12: #{fcn_head_forward.1} parent=5 // pred_fallthru
      _
    %p199 = scmp.lt.s32.totalorder %s11, 2
    // Predicated region
    $region29: #{fcn_head_forward.1} parent=5 // pred_check
      %p200 = pneg %p199
    $region30: #{fcn_head_forward.1} parent=5 // pred_check_branch
      %202 = sbr.rel (%p200) target = $region32
    $region31: #{fcn_head_forward.1} parent=5 // pred_region
      // Predicated region
      $region33: #{fcn_head_forward.1} parent=31 // pred_check
        %p203 = pneg %p45
      $region34: #{fcn_head_forward.1} parent=31 // pred_check_branch
        %205 = sbr.rel (%p203) target = $region36
      $region35: #{fcn_head_forward.1} parent=31 // pred_region
        %p206 = scmp.lt.s32.totalorder %s18, 1
        %s207 = scalar_select %p206, %s18, 1
        %p208 = scmp.lt.s32.totalorder %s19, 0
        %s209 = scalar_select %p208, %s19, 0
        %s210 = smul.addr %s207, 43
        %s211 = sadd.s32 %s209, %s210
        %s212 = smul.addr %s211, 8
        %s213 = scalar_lea.vmem %s0, %s212
      $region36: #{fcn_head_forward.1} parent=31 // pred_fallthru
        _
    $region32: #{fcn_head_forward.1} parent=5 // pred_fallthru
      _
    %p214 = scmp.le.s32.totalorder 1, %s11
    %p215 = scmp.lt.s32.totalorder %s11, 3
    %p216 = pnand %p214, %p215
    %p217 = pneg %p216
    // Predicated region
    $region37: #{fcn_head_forward.1} parent=5 // pred_check
      _
    $region38: #{fcn_head_forward.1} parent=5 // pred_check_branch
      %219 = sbr.rel (%p216) target = $region40
    $region39: #{fcn_head_forward.1} parent=5 // pred_region
      %s220 = ssub.s32 %s11, 1
      %p221 = scmp.lt.s32.totalorder %s20, 1
      %s222 = scalar_select %p221, %s20, 1
      %p223 = scmp.lt.s32.totalorder %s21, 0
      %s224 = scalar_select %p223, %s21, 0
      %s225 = smul.addr %s222, 43
      %s226 = sadd.s32 %s224, %s225
      %s227 = smul.addr %s226, 8
      %s228 = scalar_lea.vmem %s0, %s227
      %p229 = pneg %p51
      %p230 = pneg %p48
      %s231 = smul.u32 4, %s21
      %p232 = scmp.lt.s32.totalorder %s231, 3
      %s233 = scalar_select %p232, %s231, 3
      %s234 = smul.addr %s233, 4
      %s235 = scalar_lea.vmem %s1, %s234
      %p236 = pneg %p77
      %p237 = pneg %p74
      %p238 = pneg %p98
      %p239 = pneg %p95
      %p240 = pneg %p119
      %p241 = pneg %p116
      %p242 = pneg %p140
      %p243 = pneg %p137
      %p244 = pneg %p166
      %p245 = pneg %p163
      %p246 = scmp.lt.s32.totalorder %s20, 1
      %s247 = scalar_select %p246, %s20, 1
      %s248 = smul.addr %s247, 36
      %s249 = smul.addr %s248, 8
      %s250 = scalar_lea.vmem %s5, %s249
      %p251 = scmp.lt.s32.totalorder %s20, 1
      %s252 = scalar_select %p251, %s20, 1
      %p253 = scmp.lt.s32.totalorder %s21, 0
      %s254 = scalar_select %p253, %s21, 0
      %s255 = smul.addr %s252, 43
      %s256 = sadd.s32 %s254, %s255
      %s257 = smul.addr %s256, 8
      %s258 = scalar_lea.vmem %s0, %s257
      %s259 = smul.u32 4, %s21
      %p260 = scmp.lt.s32.totalorder %s259, 3
      %s261 = scalar_select %p260, %s259, 3
      %s262 = smul.addr %s261, 4
      %s263 = scalar_lea.vmem %s1, %s262
      %s264 = smul.u32 4, %s21
      %p265 = scmp.lt.s32.totalorder %s20, 1
      %s266 = scalar_select %p265, %s20, 1
      %s267 = smul.addr %s266, 36
      %s268 = smul.addr %s267, 8
      %s269 = scalar_lea.vmem %s5, %s268
      %p271 = scmp.eq.s32.totalorder %s21, 0
      // Predicated region
      $region41: #{fcn_head_forward.1} parent=39 // pred_check
        %p272 = pneg %p271
      $region42: #{fcn_head_forward.1} parent=39 // pred_check_branch
        %274 = sbr.rel (%p272) target = $region44
      $region43: #{fcn_head_forward.1} parent=39 // pred_region
        %vm275 = vcmask 64512
        %276 = vst.msk [vmem:[#allocation2] sm:$0xff] %vm275, 0.0
        %277 = vst.msk [vmem:[#allocation2 + $0x8] sm:$0xff] %vm275, 0.0
        %278 = vst.msk [vmem:[#allocation2 + $0x10] sm:$0xff] %vm275, 0.0
        %279 = vst.msk [vmem:[#allocation2 + $0x18] sm:$0xff] %vm275, 0.0
        %280 = vst.msk [vmem:[#allocation2 + $0x20] sm:$0xff] %vm275, 0.0
        %281 = vst.msk [vmem:[#allocation2 + $0x28] sm:$0xff] %vm275, 0.0
        %282 = vst.msk [vmem:[#allocation2 + $0x30] sm:$0xff] %vm275, 0.0
        %283 = vst.msk [vmem:[#allocation2 + $0x38] sm:$0xff] %vm275, 0.0
        %284 = vst.msk [vmem:[#allocation2 + $0x40] sm:$0xff] %vm275, 0.0
        %285 = vst.msk [vmem:[#allocation2 + $0x48] sm:$0xff] %vm275, 0.0
        %286 = vst.msk [vmem:[#allocation2 + $0x50] sm:$0xff] %vm275, 0.0
        %287 = vst.msk [vmem:[#allocation2 + $0x58] sm:$0xff] %vm275, 0.0
        %288 = vst.msk [vmem:[#allocation2 + $0x60] sm:$0xff] %vm275, 0.0
        %289 = vst.msk [vmem:[#allocation2 + $0x68] sm:$0xff] %vm275, 0.0
        %290 = vst.msk [vmem:[#allocation2 + $0x70] sm:$0xff] %vm275, 0.0
        %291 = vst.msk [vmem:[#allocation2 + $0x78] sm:$0xff] %vm275, 0.0
        %292 = vst.msk [vmem:[#allocation2 + $0x80] sm:$0xff] %vm275, 0.0
        %293 = vst.msk [vmem:[#allocation2 + $0x88] sm:$0xff] %vm275, 0.0
        %294 = vst.msk [vmem:[#allocation2 + $0x90] sm:$0xff] %vm275, 0.0
        %295 = vst.msk [vmem:[#allocation2 + $0x98] sm:$0xff] %vm275, 0.0
        %296 = vst.msk [vmem:[#allocation2 + $0xa0] sm:$0xff] %vm275, 0.0
        %297 = vst.msk [vmem:[#allocation2 + $0xa8] sm:$0xff] %vm275, 0.0
        %298 = vst.msk [vmem:[#allocation2 + $0xb0] sm:$0xff] %vm275, 0.0
        %299 = vst.msk [vmem:[#allocation2 + $0xb8] sm:$0xff] %vm275, 0.0
        %300 = vst.msk [vmem:[#allocation2 + $0xc0] sm:$0xff] %vm275, 0.0
        %301 = vst.msk [vmem:[#allocation2 + $0xc8] sm:$0xff] %vm275, 0.0
        %302 = vst.msk [vmem:[#allocation2 + $0xd0] sm:$0xff] %vm275, 0.0
        %303 = vst.msk [vmem:[#allocation2 + $0xd8] sm:$0xff] %vm275, 0.0
        %304 = vst.msk [vmem:[#allocation2 + $0xe0] sm:$0xff] %vm275, 0.0
        %305 = vst.msk [vmem:[#allocation2 + $0xe8] sm:$0xff] %vm275, 0.0
        %306 = vst.msk [vmem:[#allocation2 + $0xf0] sm:$0xff] %vm275, 0.0
        %307 = vst.msk [vmem:[#allocation2 + $0xf8] sm:$0xff] %vm275, 0.0
        %308 = vst.msk [vmem:[#allocation2 + $0x100] sm:$0xff] %vm275, 0.0
        %309 = vst.msk [vmem:[#allocation2 + $0x108] sm:$0xff] %vm275, 0.0
        %310 = vst.msk [vmem:[#allocation2 + $0x110] sm:$0xff] %vm275, 0.0
        %311 = vst.msk [vmem:[#allocation2 + $0x118] sm:$0xff] %vm275, 0.0
      $region44: #{fcn_head_forward.1} parent=39 // pred_fallthru
        _
      %v312 = vld [vmem:[#allocation2] sm:$0xff]
      %v313 = vld [vmem:[#allocation2 + $0x8] sm:$0xff]
      %v314 = vld [vmem:[#allocation2 + $0x10] sm:$0xff]
      %v315 = vld [vmem:[#allocation2 + $0x18] sm:$0xff]
      %v316 = vld [vmem:[#allocation2 + $0x20] sm:$0xff]
      %v317 = vld [vmem:[#allocation2 + $0x28] sm:$0xff]
      %v318 = vld [vmem:[#allocation2 + $0x30] sm:$0xff]
      %v319 = vld [vmem:[#allocation2 + $0x38] sm:$0xff]
      %v320 = vld [vmem:[#allocation2 + $0x40] sm:$0xff]
      %v321 = vld [vmem:[#allocation2 + $0x48] sm:$0xff]
      %v322 = vld [vmem:[#allocation2 + $0x50] sm:$0xff]
      %v323 = vld [vmem:[#allocation2 + $0x58] sm:$0xff]
      %v324 = vld [vmem:[#allocation2 + $0x60] sm:$0xff]
      %v325 = vld [vmem:[#allocation2 + $0x68] sm:$0xff]
      %v326 = vld [vmem:[#allocation2 + $0x70] sm:$0xff]
      %v327 = vld [vmem:[#allocation2 + $0x78] sm:$0xff]
      %v328 = vld [vmem:[#allocation2 + $0x80] sm:$0xff]
      %v329 = vld [vmem:[#allocation2 + $0x88] sm:$0xff]
      %v330 = vld [vmem:[#allocation2 + $0x90] sm:$0xff]
      %v331 = vld [vmem:[#allocation2 + $0x98] sm:$0xff]
      %v332 = vld [vmem:[#allocation2 + $0xa0] sm:$0xff]
      %v333 = vld [vmem:[#allocation2 + $0xa8] sm:$0xff]
      %v334 = vld [vmem:[#allocation2 + $0xb0] sm:$0xff]
      %v335 = vld [vmem:[#allocation2 + $0xb8] sm:$0xff]
      %v336 = vld [vmem:[#allocation2 + $0xc0] sm:$0xff]
      %v337 = vld [vmem:[#allocation2 + $0xc8] sm:$0xff]
      %v338 = vld [vmem:[#allocation2 + $0xd0] sm:$0xff]
      %v339 = vld [vmem:[#allocation2 + $0xd8] sm:$0xff]
      %v340 = vld [vmem:[#allocation2 + $0xe0] sm:$0xff]
      %v341 = vld [vmem:[#allocation2 + $0xe8] sm:$0xff]
      %v342 = vld [vmem:[#allocation2 + $0xf0] sm:$0xff]
      %v343 = vld [vmem:[#allocation2 + $0xf8] sm:$0xff]
      %v344 = vld [vmem:[#allocation2 + $0x100] sm:$0xff]
      %v345 = vld [vmem:[#allocation2 + $0x108] sm:$0xff]
      %v346 = vld [vmem:[#allocation2 + $0x110] sm:$0xff]
      %v347 = vld [vmem:[#allocation2 + $0x118] sm:$0xff]
      %v348 = vld [vmem:[%s258] sm:$0xff]
      %v349 = vld [vmem:[%s258 + $0x8] sm:$0xff]
      %v350 = vld [vmem:[%s258 + $0x10] sm:$0xff]
      %v351 = vld [vmem:[%s258 + $0x18] sm:$0xff]
      %v352 = vld [vmem:[%s258 + $0x20] sm:$0xff]
      %v353 = vld [vmem:[%s258 + $0x28] sm:$0xff]
      %v354 = vld [vmem:[%s258 + $0x30] sm:$0xff]
      %v355 = vld [vmem:[%s258 + $0x38] sm:$0xff]
      %v356 = vld [vmem:[%s258 + $0x40] sm:$0xff]
      %v357 = vld [vmem:[%s258 + $0x48] sm:$0xff]
      %v358 = vld [vmem:[%s258 + $0x50] sm:$0xff]
      %v359 = vld [vmem:[%s258 + $0x58] sm:$0xff]
      %v360 = vld [vmem:[%s258 + $0x60] sm:$0xff]
      %v361 = vld [vmem:[%s258 + $0x68] sm:$0xff]
      %v362 = vld [vmem:[%s258 + $0x70] sm:$0xff]
      %v363 = vld [vmem:[%s258 + $0x78] sm:$0xff]
      %v364 = vld [vmem:[%s258 + $0x80] sm:$0xff]
      %v365 = vld [vmem:[%s258 + $0x88] sm:$0xff]
      %v366 = vld [vmem:[%s258 + $0x90] sm:$0xff]
      %v367 = vld [vmem:[%s258 + $0x98] sm:$0xff]
      %v368 = vld [vmem:[%s258 + $0xa0] sm:$0xff]
      %v369 = vld [vmem:[%s258 + $0xa8] sm:$0xff]
      %v370 = vld [vmem:[%s258 + $0xb0] sm:$0xff]
      %v371 = vld [vmem:[%s258 + $0xb8] sm:$0xff]
      %v372 = vld [vmem:[%s258 + $0xc0] sm:$0xff]
      %v373 = vld [vmem:[%s258 + $0xc8] sm:$0xff]
      %v374 = vld [vmem:[%s258 + $0xd0] sm:$0xff]
      %v375 = vld [vmem:[%s258 + $0xd8] sm:$0xff]
      %v376 = vld [vmem:[%s258 + $0xe0] sm:$0xff]
      %v377 = vld [vmem:[%s258 + $0xe8] sm:$0xff]
      %v378 = vld [vmem:[%s258 + $0xf0] sm:$0xff]
      %v379 = vld [vmem:[%s258 + $0xf8] sm:$0xff]
      %v380 = vld [vmem:[%s258 + $0x100] sm:$0xff]
      %v381 = vld [vmem:[%s258 + $0x108] sm:$0xff]
      %v382 = vld [vmem:[%s258 + $0x110] sm:$0xff]
      %v383 = vld [vmem:[%s258 + $0x118] sm:$0xff]
      %v384 = vpack.c.bf16 %v349, %v348
      %v385 = vpack.c.bf16 %v351, %v350
      %v386 = vpack.c.bf16 %v353, %v352
      %v387 = vpack.c.bf16 %v355, %v354
      %v388 = vpack.c.bf16 %v357, %v356
      %v389 = vpack.c.bf16 %v359, %v358
      %v390 = vpack.c.bf16 %v361, %v360
      %v391 = vpack.c.bf16 %v363, %v362
      %v392 = vpack.c.bf16 %v365, %v364
      %v393 = vpack.c.bf16 %v367, %v366
      %v394 = vpack.c.bf16 %v369, %v368
      %v395 = vpack.c.bf16 %v371, %v370
      %v396 = vpack.c.bf16 %v373, %v372
      %v397 = vpack.c.bf16 %v375, %v374
      %v398 = vpack.c.bf16 %v377, %v376
      %v399 = vpack.c.bf16 %v379, %v378
      %v400 = vpack.c.bf16 %v381, %v380
      %v401 = vpack.c.bf16 %v383, %v382
      %v402 = vld [vmem:[%s263] sm:$0xf]
      %v403 = vld [vmem:[%s263 + $0x4] sm:$0xf]
      %v404 = vld [vmem:[%s263 + $0x8] sm:$0xf]
      %v405 = vld [vmem:[%s263 + $0xc] sm:$0xf]
      %v410 = vunpack.c.l.b16 %v402
      %v411 = vunpack.c.l.b16 %v403
      %v412 = vunpack.c.l.b16 %v404
      %v413 = vunpack.c.l.b16 %v405
      %v414 = vpack.c.b16 %v411, %v410
      %v415 = vpack.c.b16 %v413, %v412
      %vm418 = vcmask 261120
      %v420 = vsel %vm418, %v384, 0
      %v423 = vsel %vm418, %v385, 0
      %v426 = vsel %vm418, %v386, 0
      %v429 = vsel %vm418, %v387, 0
      %v432 = vsel %vm418, %v388, 0
      %v435 = vsel %vm418, %v389, 0
      %v438 = vsel %vm418, %v390, 0
      %v441 = vsel %vm418, %v391, 0
      %v444 = vsel %vm418, %v392, 0
      %v447 = vsel %vm418, %v393, 0
      %v450 = vsel %vm418, %v394, 0
      %v453 = vsel %vm418, %v395, 0
      %v456 = vsel %vm418, %v396, 0
      %v459 = vsel %vm418, %v397, 0
      %v462 = vsel %vm418, %v398, 0
      %v465 = vsel %vm418, %v399, 0
      %v468 = vsel %vm418, %v400, 0
      %v471 = vsel %vm418, %v401, 0
      %473 = vmatprep.subr.bf16.mxu0 0
      %474 = vmatpush1.bf16.msra.mxu0 0
      %475 = vmatprep.subr.bf16.mxu0 0
      %476 = vmatpush1.bf16.msra.mxu0 0
      %477 = vmatprep.subr.bf16.mxu0 0
      %478 = vmatpush1.bf16.msra.mxu0 0
      %479 = vmatprep.subr.bf16.mxu0 0
      %480 = vmatpush1.bf16.msra.mxu0 0
      %481 = vmatprep.subr.bf16.mxu0 0
      %482 = vmatpush1.bf16.msra.mxu0 0
      %483 = vmatprep.subr.bf16.mxu0 0
      %484 = vmatpush1.bf16.msra.mxu0 0
      %485 = vmatprep.subr.bf16.mxu0 0
      %486 = vmatpush1.bf16.msra.mxu0 %v415
      %487 = vmatprep.subr.bf16.mxu0 0
      %488 = vmatpush1.bf16.msra.mxu0 %v414
      %489 = vmatprep.subr.bf16.mxu0 0
      %490 = vmatpush2.bf16.msra.mxu0 0
      %491 = vmatprep.subr.bf16.mxu0 0
      %492 = vmatpush2.bf16.msra.mxu0 0
      %493 = vmatprep.subr.bf16.mxu0 0
      %494 = vmatpush2.bf16.msra.mxu0 0
      %495 = vmatprep.subr.bf16.mxu0 0
      %496 = vmatpush2.bf16.msra.mxu0 0
      %497 = vmatprep.subr.bf16.mxu0 0
      %498 = vmatpush2.bf16.msra.mxu0 0
      %499 = vmatprep.subr.bf16.mxu0 0
      %500 = vmatpush2.bf16.msra.mxu0 0
      %501 = vmatprep.subr.bf16.mxu0 0
      %502 = vmatpush2.bf16.msra.mxu0 0
      %503 = vmatprep.subr.bf16.mxu0 0
      %504 = vmatpush2.bf16.msra.mxu0 0
      %505 = vmatprep.mubr.bf16.mxu0 0
      %506 = vmatmul.mubr.bf16.gmra.mxu0 %v420
      %v507 = vpop.f32.mrf.mxu0
      %v508 = vadd.f32 0.0, %v507
      %v509 = vpop.f32.mrf.mxu0
      %v510 = vpop.f32.mrf.mxu0
      %v511 = vadd.f32 0.0, %v510
      %v512 = vpop.f32.mrf.mxu0
      %513 = vmatprep.mubr.bf16.mxu0 0
      %514 = vmatmul.mubr.bf16.gmra.mxu0 %v423
      %v515 = vpop.f32.mrf.mxu0
      %v516 = vadd.f32 0.0, %v515
      %v517 = vpop.f32.mrf.mxu0
      %v518 = vpop.f32.mrf.mxu0
      %v519 = vadd.f32 0.0, %v518
      %v520 = vpop.f32.mrf.mxu0
      %521 = vmatprep.mubr.bf16.mxu0 0
      %522 = vmatmul.mubr.bf16.gmra.mxu0 %v426
      %v523 = vpop.f32.mrf.mxu0
      %v524 = vadd.f32 0.0, %v523
      %v525 = vpop.f32.mrf.mxu0
      %v526 = vpop.f32.mrf.mxu0
      %v527 = vadd.f32 0.0, %v526
      %v528 = vpop.f32.mrf.mxu0
      %529 = vmatprep.mubr.bf16.mxu0 0
      %530 = vmatmul.mubr.bf16.gmra.mxu0 %v429
      %v531 = vpop.f32.mrf.mxu0
      %v532 = vadd.f32 0.0, %v531
      %v533 = vpop.f32.mrf.mxu0
      %v534 = vpop.f32.mrf.mxu0
      %v535 = vadd.f32 0.0, %v534
      %v536 = vpop.f32.mrf.mxu0
      %537 = vmatprep.mubr.bf16.mxu0 0
      %538 = vmatmul.mubr.bf16.gmra.mxu0 %v432
      %v539 = vpop.f32.mrf.mxu0
      %v540 = vadd.f32 0.0, %v539
      %v541 = vpop.f32.mrf.mxu0
      %v542 = vpop.f32.mrf.mxu0
      %v543 = vadd.f32 0.0, %v542
      %v544 = vpop.f32.mrf.mxu0
      %545 = vmatprep.mubr.bf16.mxu0 0
      %546 = vmatmul.mubr.bf16.gmra.mxu0 %v435
      %v547 = vpop.f32.mrf.mxu0
      %v548 = vadd.f32 0.0, %v547
      %v549 = vpop.f32.mrf.mxu0
      %v550 = vpop.f32.mrf.mxu0
      %v551 = vadd.f32 0.0, %v550
      %v552 = vpop.f32.mrf.mxu0
      %553 = vmatprep.mubr.bf16.mxu0 0
      %554 = vmatmul.mubr.bf16.gmra.mxu0 %v438
      %v555 = vpop.f32.mrf.mxu0
      %v556 = vadd.f32 0.0, %v555
      %v557 = vpop.f32.mrf.mxu0
      %v558 = vpop.f32.mrf.mxu0
      %v559 = vadd.f32 0.0, %v558
      %v560 = vpop.f32.mrf.mxu0
      %561 = vmatprep.mubr.bf16.mxu0 0
      %562 = vmatmul.mubr.bf16.gmra.mxu0 %v441
      %v563 = vpop.f32.mrf.mxu0
      %v564 = vadd.f32 0.0, %v563
      %v565 = vpop.f32.mrf.mxu0
      %v566 = vpop.f32.mrf.mxu0
      %v567 = vadd.f32 0.0, %v566
      %v568 = vpop.f32.mrf.mxu0
      %569 = vmatprep.mubr.bf16.mxu0 0
      %570 = vmatmul.mubr.bf16.gmra.mxu0 %v444
      %v571 = vpop.f32.mrf.mxu0
      %v572 = vadd.f32 0.0, %v571
      %v573 = vpop.f32.mrf.mxu0
      %v574 = vpop.f32.mrf.mxu0
      %v575 = vadd.f32 0.0, %v574
      %v576 = vpop.f32.mrf.mxu0
      %577 = vmatprep.mubr.bf16.mxu0 0
      %578 = vmatmul.mubr.bf16.gmra.mxu0 %v447
      %v579 = vpop.f32.mrf.mxu0
      %v580 = vadd.f32 0.0, %v579
      %v581 = vpop.f32.mrf.mxu0
      %v582 = vpop.f32.mrf.mxu0
      %v583 = vadd.f32 0.0, %v582
      %v584 = vpop.f32.mrf.mxu0
      %585 = vmatprep.mubr.bf16.mxu0 0
      %586 = vmatmul.mubr.bf16.gmra.mxu0 %v450
      %v587 = vpop.f32.mrf.mxu0
      %v588 = vadd.f32 0.0, %v587
      %v589 = vpop.f32.mrf.mxu0
      %v590 = vpop.f32.mrf.mxu0
      %v591 = vadd.f32 0.0, %v590
      %v592 = vpop.f32.mrf.mxu0
      %593 = vmatprep.mubr.bf16.mxu0 0
      %594 = vmatmul.mubr.bf16.gmra.mxu0 %v453
      %v595 = vpop.f32.mrf.mxu0
      %v596 = vadd.f32 0.0, %v595
      %v597 = vpop.f32.mrf.mxu0
      %v598 = vpop.f32.mrf.mxu0
      %v599 = vadd.f32 0.0, %v598
      %v600 = vpop.f32.mrf.mxu0
      %601 = vmatprep.mubr.bf16.mxu0 0
      %602 = vmatmul.mubr.bf16.gmra.mxu0 %v456
      %v603 = vpop.f32.mrf.mxu0
      %v604 = vadd.f32 0.0, %v603
      %v605 = vpop.f32.mrf.mxu0
      %v606 = vpop.f32.mrf.mxu0
      %v607 = vadd.f32 0.0, %v606
      %v608 = vpop.f32.mrf.mxu0
      %609 = vmatprep.mubr.bf16.mxu0 0
      %610 = vmatmul.mubr.bf16.gmra.mxu0 %v459
      %v611 = vpop.f32.mrf.mxu0
      %v612 = vadd.f32 0.0, %v611
      %v613 = vpop.f32.mrf.mxu0
      %v614 = vpop.f32.mrf.mxu0
      %v615 = vadd.f32 0.0, %v614
      %v616 = vpop.f32.mrf.mxu0
      %617 = vmatprep.mubr.bf16.mxu0 0
      %618 = vmatmul.mubr.bf16.gmra.mxu0 %v462
      %v619 = vpop.f32.mrf.mxu0
      %v620 = vadd.f32 0.0, %v619
      %v621 = vpop.f32.mrf.mxu0
      %v622 = vpop.f32.mrf.mxu0
      %v623 = vadd.f32 0.0, %v622
      %v624 = vpop.f32.mrf.mxu0
      %625 = vmatprep.mubr.bf16.mxu0 0
      %626 = vmatmul.mubr.bf16.gmra.mxu0 %v465
      %v627 = vpop.f32.mrf.mxu0
      %v628 = vadd.f32 0.0, %v627
      %v629 = vpop.f32.mrf.mxu0
      %v630 = vpop.f32.mrf.mxu0
      %v631 = vadd.f32 0.0, %v630
      %v632 = vpop.f32.mrf.mxu0
      %633 = vmatprep.mubr.bf16.mxu0 0
      %634 = vmatmul.mubr.bf16.gmra.mxu0 %v468
      %v635 = vpop.f32.mrf.mxu0
      %v636 = vadd.f32 0.0, %v635
      %v637 = vpop.f32.mrf.mxu0
      %v638 = vpop.f32.mrf.mxu0
      %v639 = vadd.f32 0.0, %v638
      %v640 = vpop.f32.mrf.mxu0
      %641 = vmatprep.mubr.bf16.mxu0 0
      %642 = vmatmul.mubr.bf16.gmra.mxu0 %v471
      %v643 = vpop.f32.mrf.mxu0
      %v644 = vadd.f32 0.0, %v643
      %v645 = vpop.f32.mrf.mxu0
      %v646 = vpop.f32.mrf.mxu0
      %v647 = vadd.f32 0.0, %v646
      %v648 = vpop.f32.mrf.mxu0
      %649 = vdwg.mxu0
      %v650 = vadd.f32 %v312, %v508
      %v651 = vadd.f32 %v313, %v511
      %v652 = vadd.f32 %v314, %v516
      %v653 = vadd.f32 %v315, %v519
      %v654 = vadd.f32 %v316, %v524
      %v655 = vadd.f32 %v317, %v527
      %v656 = vadd.f32 %v318, %v532
      %v657 = vadd.f32 %v319, %v535
      %v658 = vadd.f32 %v320, %v540
      %v659 = vadd.f32 %v321, %v543
      %v660 = vadd.f32 %v322, %v548
      %v661 = vadd.f32 %v323, %v551
      %v662 = vadd.f32 %v324, %v556
      %v663 = vadd.f32 %v325, %v559
      %v664 = vadd.f32 %v326, %v564
      %v665 = vadd.f32 %v327, %v567
      %v666 = vadd.f32 %v328, %v572
      %v667 = vadd.f32 %v329, %v575
      %v668 = vadd.f32 %v330, %v580
      %v669 = vadd.f32 %v331, %v583
      %v670 = vadd.f32 %v332, %v588
      %v671 = vadd.f32 %v333, %v591
      %v672 = vadd.f32 %v334, %v596
      %v673 = vadd.f32 %v335, %v599
      %v674 = vadd.f32 %v336, %v604
      %v675 = vadd.f32 %v337, %v607
      %v676 = vadd.f32 %v338, %v612
      %v677 = vadd.f32 %v339, %v615
      %v678 = vadd.f32 %v340, %v620
      %v679 = vadd.f32 %v341, %v623
      %v680 = vadd.f32 %v342, %v628
      %v681 = vadd.f32 %v343, %v631
      %v682 = vadd.f32 %v344, %v636
      %v683 = vadd.f32 %v345, %v639
      %v684 = vadd.f32 %v346, %v644
      %v685 = vadd.f32 %v347, %v647
      %v686 = vld [vmem:[%s258 + $0x1] sm:$0xff]
      %v687 = vld [vmem:[%s258 + $0x9] sm:$0xff]
      %v688 = vld [vmem:[%s258 + $0x11] sm:$0xff]
      %v689 = vld [vmem:[%s258 + $0x19] sm:$0xff]
      %v690 = vld [vmem:[%s258 + $0x21] sm:$0xff]
      %v691 = vld [vmem:[%s258 + $0x29] sm:$0xff]
      %v692 = vld [vmem:[%s258 + $0x31] sm:$0xff]
      %v693 = vld [vmem:[%s258 + $0x39] sm:$0xff]
      %v694 = vld [vmem:[%s258 + $0x41] sm:$0xff]
      %v695 = vld [vmem:[%s258 + $0x49] sm:$0xff]
      %v696 = vld [vmem:[%s258 + $0x51] sm:$0xff]
      %v697 = vld [vmem:[%s258 + $0x59] sm:$0xff]
      %v698 = vld [vmem:[%s258 + $0x61] sm:$0xff]
      %v699 = vld [vmem:[%s258 + $0x69] sm:$0xff]
      %v700 = vld [vmem:[%s258 + $0x71] sm:$0xff]
      %v701 = vld [vmem:[%s258 + $0x79] sm:$0xff]
      %v702 = vld [vmem:[%s258 + $0x81] sm:$0xff]
      %v703 = vld [vmem:[%s258 + $0x89] sm:$0xff]
      %v704 = vld [vmem:[%s258 + $0x91] sm:$0xff]
      %v705 = vld [vmem:[%s258 + $0x99] sm:$0xff]
      %v706 = vld [vmem:[%s258 + $0xa1] sm:$0xff]
      %v707 = vld [vmem:[%s258 + $0xa9] sm:$0xff]
      %v708 = vld [vmem:[%s258 + $0xb1] sm:$0xff]
      %v709 = vld [vmem:[%s258 + $0xb9] sm:$0xff]
      %v710 = vld [vmem:[%s258 + $0xc1] sm:$0xff]
      %v711 = vld [vmem:[%s258 + $0xc9] sm:$0xff]
      %v712 = vld [vmem:[%s258 + $0xd1] sm:$0xff]
      %v713 = vld [vmem:[%s258 + $0xd9] sm:$0xff]
      %v714 = vld [vmem:[%s258 + $0xe1] sm:$0xff]
      %v715 = vld [vmem:[%s258 + $0xe9] sm:$0xff]
      %v716 = vld [vmem:[%s258 + $0xf1] sm:$0xff]
      %v717 = vld [vmem:[%s258 + $0xf9] sm:$0xff]
      %v718 = vld [vmem:[%s258 + $0x101] sm:$0xff]
      %v719 = vld [vmem:[%s258 + $0x109] sm:$0xff]
      %v720 = vld [vmem:[%s258 + $0x111] sm:$0xff]
      %v721 = vld [vmem:[%s258 + $0x119] sm:$0xff]
      %v722 = vpack.c.bf16 %v687, %v686
      %v723 = vpack.c.bf16 %v689, %v688
      %v724 = vpack.c.bf16 %v691, %v690
      %v725 = vpack.c.bf16 %v693, %v692
      %v726 = vpack.c.bf16 %v695, %v694
      %v727 = vpack.c.bf16 %v697, %v696
      %v728 = vpack.c.bf16 %v699, %v698
      %v729 = vpack.c.bf16 %v701, %v700
      %v730 = vpack.c.bf16 %v703, %v702
      %v731 = vpack.c.bf16 %v705, %v704
      %v732 = vpack.c.bf16 %v707, %v706
      %v733 = vpack.c.bf16 %v709, %v708
      %v734 = vpack.c.bf16 %v711, %v710
      %v735 = vpack.c.bf16 %v713, %v712
      %v736 = vpack.c.bf16 %v715, %v714
      %v737 = vpack.c.bf16 %v717, %v716
      %v738 = vpack.c.bf16 %v719, %v718
      %v739 = vpack.c.bf16 %v721, %v720
      %s740 = scalar_lea.vmem %s263, 16
      %v741 = vld [vmem:[%s740] sm:$0xf]
      %v742 = vld [vmem:[%s740 + $0x4] sm:$0xf]
      %v743 = vld [vmem:[%s740 + $0x8] sm:$0xf]
      %v744 = vld [vmem:[%s740 + $0xc] sm:$0xf]
      %v749 = vunpack.c.l.b16 %v741
      %v750 = vunpack.c.l.b16 %v742
      %v751 = vunpack.c.l.b16 %v743
      %v752 = vunpack.c.l.b16 %v744
      %v753 = vpack.c.b16 %v750, %v749
      %v754 = vpack.c.b16 %v752, %v751
      %v758 = vsel %vm418, %v722, 0
      %v761 = vsel %vm418, %v723, 0
      %v764 = vsel %vm418, %v724, 0
      %v767 = vsel %vm418, %v725, 0
      %v770 = vsel %vm418, %v726, 0
      %v773 = vsel %vm418, %v727, 0
      %v776 = vsel %vm418, %v728, 0
      %v779 = vsel %vm418, %v729, 0
      %v782 = vsel %vm418, %v730, 0
      %v785 = vsel %vm418, %v731, 0
      %v788 = vsel %vm418, %v732, 0
      %v791 = vsel %vm418, %v733, 0
      %v794 = vsel %vm418, %v734, 0
      %v797 = vsel %vm418, %v735, 0
      %v800 = vsel %vm418, %v736, 0
      %v803 = vsel %vm418, %v737, 0
      %v806 = vsel %vm418, %v738, 0
      %v809 = vsel %vm418, %v739, 0
      %811 = vmatprep.subr.bf16.mxu0 0
      %812 = vmatpush1.bf16.msra.mxu0 0
      %813 = vmatprep.subr.bf16.mxu0 0
      %814 = vmatpush1.bf16.msra.mxu0 0
      %815 = vmatprep.subr.bf16.mxu0 0
      %816 = vmatpush1.bf16.msra.mxu0 0
      %817 = vmatprep.subr.bf16.mxu0 0
      %818 = vmatpush1.bf16.msra.mxu0 0
      %819 = vmatprep.subr.bf16.mxu0 0
      %820 = vmatpush1.bf16.msra.mxu0 0
      %821 = vmatprep.subr.bf16.mxu0 0
      %822 = vmatpush1.bf16.msra.mxu0 0
      %823 = vmatprep.subr.bf16.mxu0 0
      %824 = vmatpush1.bf16.msra.mxu0 %v754
      %825 = vmatprep.subr.bf16.mxu0 0
      %826 = vmatpush1.bf16.msra.mxu0 %v753
      %827 = vmatprep.subr.bf16.mxu0 0
      %828 = vmatpush2.bf16.msra.mxu0 0
      %829 = vmatprep.subr.bf16.mxu0 0
      %830 = vmatpush2.bf16.msra.mxu0 0
      %831 = vmatprep.subr.bf16.mxu0 0
      %832 = vmatpush2.bf16.msra.mxu0 0
      %833 = vmatprep.subr.bf16.mxu0 0
      %834 = vmatpush2.bf16.msra.mxu0 0
      %835 = vmatprep.subr.bf16.mxu0 0
      %836 = vmatpush2.bf16.msra.mxu0 0
      %837 = vmatprep.subr.bf16.mxu0 0
      %838 = vmatpush2.bf16.msra.mxu0 0
      %839 = vmatprep.subr.bf16.mxu0 0
      %840 = vmatpush2.bf16.msra.mxu0 0
      %841 = vmatprep.subr.bf16.mxu0 0
      %842 = vmatpush2.bf16.msra.mxu0 0
      %843 = vmatprep.mubr.bf16.mxu0 0
      %844 = vmatmul.mubr.bf16.gmra.mxu0 %v758
      %v845 = vpop.f32.mrf.mxu0
      %v846 = vadd.f32 0.0, %v845
      %v847 = vpop.f32.mrf.mxu0
      %v848 = vpop.f32.mrf.mxu0
      %v849 = vadd.f32 0.0, %v848
      %v850 = vpop.f32.mrf.mxu0
      %851 = vmatprep.mubr.bf16.mxu0 0
      %852 = vmatmul.mubr.bf16.gmra.mxu0 %v761
      %v853 = vpop.f32.mrf.mxu0
      %v854 = vadd.f32 0.0, %v853
      %v855 = vpop.f32.mrf.mxu0
      %v856 = vpop.f32.mrf.mxu0
      %v857 = vadd.f32 0.0, %v856
      %v858 = vpop.f32.mrf.mxu0
      %859 = vmatprep.mubr.bf16.mxu0 0
      %860 = vmatmul.mubr.bf16.gmra.mxu0 %v764
      %v861 = vpop.f32.mrf.mxu0
      %v862 = vadd.f32 0.0, %v861
      %v863 = vpop.f32.mrf.mxu0
      %v864 = vpop.f32.mrf.mxu0
      %v865 = vadd.f32 0.0, %v864
      %v866 = vpop.f32.mrf.mxu0
      %867 = vmatprep.mubr.bf16.mxu0 0
      %868 = vmatmul.mubr.bf16.gmra.mxu0 %v767
      %v869 = vpop.f32.mrf.mxu0
      %v870 = vadd.f32 0.0, %v869
      %v871 = vpop.f32.mrf.mxu0
      %v872 = vpop.f32.mrf.mxu0
      %v873 = vadd.f32 0.0, %v872
      %v874 = vpop.f32.mrf.mxu0
      %875 = vmatprep.mubr.bf16.mxu0 0
      %876 = vmatmul.mubr.bf16.gmra.mxu0 %v770
      %v877 = vpop.f32.mrf.mxu0
      %v878 = vadd.f32 0.0, %v877
      %v879 = vpop.f32.mrf.mxu0
      %v880 = vpop.f32.mrf.mxu0
      %v881 = vadd.f32 0.0, %v880
      %v882 = vpop.f32.mrf.mxu0
      %883 = vmatprep.mubr.bf16.mxu0 0
      %884 = vmatmul.mubr.bf16.gmra.mxu0 %v773
      %v885 = vpop.f32.mrf.mxu0
      %v886 = vadd.f32 0.0, %v885
      %v887 = vpop.f32.mrf.mxu0
      %v888 = vpop.f32.mrf.mxu0
      %v889 = vadd.f32 0.0, %v888
      %v890 = vpop.f32.mrf.mxu0
      %891 = vmatprep.mubr.bf16.mxu0 0
      %892 = vmatmul.mubr.bf16.gmra.mxu0 %v776
      %v893 = vpop.f32.mrf.mxu0
      %v894 = vadd.f32 0.0, %v893
      %v895 = vpop.f32.mrf.mxu0
      %v896 = vpop.f32.mrf.mxu0
      %v897 = vadd.f32 0.0, %v896
      %v898 = vpop.f32.mrf.mxu0
      %899 = vmatprep.mubr.bf16.mxu0 0
      %900 = vmatmul.mubr.bf16.gmra.mxu0 %v779
      %v901 = vpop.f32.mrf.mxu0
      %v902 = vadd.f32 0.0, %v901
      %v903 = vpop.f32.mrf.mxu0
      %v904 = vpop.f32.mrf.mxu0
      %v905 = vadd.f32 0.0, %v904
      %v906 = vpop.f32.mrf.mxu0
      %907 = vmatprep.mubr.bf16.mxu0 0
      %908 = vmatmul.mubr.bf16.gmra.mxu0 %v782
      %v909 = vpop.f32.mrf.mxu0
      %v910 = vadd.f32 0.0, %v909
      %v911 = vpop.f32.mrf.mxu0
      %v912 = vpop.f32.mrf.mxu0
      %v913 = vadd.f32 0.0, %v912
      %v914 = vpop.f32.mrf.mxu0
      %915 = vmatprep.mubr.bf16.mxu0 0
      %916 = vmatmul.mubr.bf16.gmra.mxu0 %v785
      %v917 = vpop.f32.mrf.mxu0
      %v918 = vadd.f32 0.0, %v917
      %v919 = vpop.f32.mrf.mxu0
      %v920 = vpop.f32.mrf.mxu0
      %v921 = vadd.f32 0.0, %v920
      %v922 = vpop.f32.mrf.mxu0
      %923 = vmatprep.mubr.bf16.mxu0 0
      %924 = vmatmul.mubr.bf16.gmra.mxu0 %v788
      %v925 = vpop.f32.mrf.mxu0
      %v926 = vadd.f32 0.0, %v925
      %v927 = vpop.f32.mrf.mxu0
      %v928 = vpop.f32.mrf.mxu0
      %v929 = vadd.f32 0.0, %v928
      %v930 = vpop.f32.mrf.mxu0
      %931 = vmatprep.mubr.bf16.mxu0 0
      %932 = vmatmul.mubr.bf16.gmra.mxu0 %v791
      %v933 = vpop.f32.mrf.mxu0
      %v934 = vadd.f32 0.0, %v933
      %v935 = vpop.f32.mrf.mxu0
      %v936 = vpop.f32.mrf.mxu0
      %v937 = vadd.f32 0.0, %v936
      %v938 = vpop.f32.mrf.mxu0
      %939 = vmatprep.mubr.bf16.mxu0 0
      %940 = vmatmul.mubr.bf16.gmra.mxu0 %v794
      %v941 = vpop.f32.mrf.mxu0
      %v942 = vadd.f32 0.0, %v941
      %v943 = vpop.f32.mrf.mxu0
      %v944 = vpop.f32.mrf.mxu0
      %v945 = vadd.f32 0.0, %v944
      %v946 = vpop.f32.mrf.mxu0
      %947 = vmatprep.mubr.bf16.mxu0 0
      %948 = vmatmul.mubr.bf16.gmra.mxu0 %v797
      %v949 = vpop.f32.mrf.mxu0
      %v950 = vadd.f32 0.0, %v949
      %v951 = vpop.f32.mrf.mxu0
      %v952 = vpop.f32.mrf.mxu0
      %v953 = vadd.f32 0.0, %v952
      %v954 = vpop.f32.mrf.mxu0
      %955 = vmatprep.mubr.bf16.mxu0 0
      %956 = vmatmul.mubr.bf16.gmra.mxu0 %v800
      %v957 = vpop.f32.mrf.mxu0
      %v958 = vadd.f32 0.0, %v957
      %v959 = vpop.f32.mrf.mxu0
      %v960 = vpop.f32.mrf.mxu0
      %v961 = vadd.f32 0.0, %v960
      %v962 = vpop.f32.mrf.mxu0
      %963 = vmatprep.mubr.bf16.mxu0 0
      %964 = vmatmul.mubr.bf16.gmra.mxu0 %v803
      %v965 = vpop.f32.mrf.mxu0
      %v966 = vadd.f32 0.0, %v965
      %v967 = vpop.f32.mrf.mxu0
      %v968 = vpop.f32.mrf.mxu0
      %v969 = vadd.f32 0.0, %v968
      %v970 = vpop.f32.mrf.mxu0
      %971 = vmatprep.mubr.bf16.mxu0 0
      %972 = vmatmul.mubr.bf16.gmra.mxu0 %v806
      %v973 = vpop.f32.mrf.mxu0
      %v974 = vadd.f32 0.0, %v973
      %v975 = vpop.f32.mrf.mxu0
      %v976 = vpop.f32.mrf.mxu0
      %v977 = vadd.f32 0.0, %v976
      %v978 = vpop.f32.mrf.mxu0
      %979 = vmatprep.mubr.bf16.mxu0 0
      %980 = vmatmul.mubr.bf16.gmra.mxu0 %v809
      %v981 = vpop.f32.mrf.mxu0
      %v982 = vadd.f32 0.0, %v981
      %v983 = vpop.f32.mrf.mxu0
      %v984 = vpop.f32.mrf.mxu0
      %v985 = vadd.f32 0.0, %v984
      %v986 = vpop.f32.mrf.mxu0
      %987 = vdwg.mxu0
      %v988 = vadd.f32 %v650, %v846
      %v989 = vadd.f32 %v651, %v849
      %v990 = vadd.f32 %v652, %v854
      %v991 = vadd.f32 %v653, %v857
      %v992 = vadd.f32 %v654, %v862
      %v993 = vadd.f32 %v655, %v865
      %v994 = vadd.f32 %v656, %v870
      %v995 = vadd.f32 %v657, %v873
      %v996 = vadd.f32 %v658, %v878
      %v997 = vadd.f32 %v659, %v881
      %v998 = vadd.f32 %v660, %v886
      %v999 = vadd.f32 %v661, %v889
      %v1000 = vadd.f32 %v662, %v894
      %v1001 = vadd.f32 %v663, %v897
      %v1002 = vadd.f32 %v664, %v902
      %v1003 = vadd.f32 %v665, %v905
      %v1004 = vadd.f32 %v666, %v910
      %v1005 = vadd.f32 %v667, %v913
      %v1006 = vadd.f32 %v668, %v918
      %v1007 = vadd.f32 %v669, %v921
      %v1008 = vadd.f32 %v670, %v926
      %v1009 = vadd.f32 %v671, %v929
      %v1010 = vadd.f32 %v672, %v934
      %v1011 = vadd.f32 %v673, %v937
      %v1012 = vadd.f32 %v674, %v942
      %v1013 = vadd.f32 %v675, %v945
      %v1014 = vadd.f32 %v676, %v950
      %v1015 = vadd.f32 %v677, %v953
      %v1016 = vadd.f32 %v678, %v958
      %v1017 = vadd.f32 %v679, %v961
      %v1018 = vadd.f32 %v680, %v966
      %v1019 = vadd.f32 %v681, %v969
      %v1020 = vadd.f32 %v682, %v974
      %v1021 = vadd.f32 %v683, %v977
      %v1022 = vadd.f32 %v684, %v982
      %v1023 = vadd.f32 %v685, %v985
      %v1024 = vld [vmem:[%s258 + $0x2] sm:$0xff]
      %v1025 = vld [vmem:[%s258 + $0xa] sm:$0xff]
      %v1026 = vld [vmem:[%s258 + $0x12] sm:$0xff]
      %v1027 = vld [vmem:[%s258 + $0x1a] sm:$0xff]
      %v1028 = vld [vmem:[%s258 + $0x22] sm:$0xff]
      %v1029 = vld [vmem:[%s258 + $0x2a] sm:$0xff]
      %v1030 = vld [vmem:[%s258 + $0x32] sm:$0xff]
      %v1031 = vld [vmem:[%s258 + $0x3a] sm:$0xff]
      %v1032 = vld [vmem:[%s258 + $0x42] sm:$0xff]
      %v1033 = vld [vmem:[%s258 + $0x4a] sm:$0xff]
      %v1034 = vld [vmem:[%s258 + $0x52] sm:$0xff]
      %v1035 = vld [vmem:[%s258 + $0x5a] sm:$0xff]
      %v1036 = vld [vmem:[%s258 + $0x62] sm:$0xff]
      %v1037 = vld [vmem:[%s258 + $0x6a] sm:$0xff]
      %v1038 = vld [vmem:[%s258 + $0x72] sm:$0xff]
      %v1039 = vld [vmem:[%s258 + $0x7a] sm:$0xff]
      %v1040 = vld [vmem:[%s258 + $0x82] sm:$0xff]
      %v1041 = vld [vmem:[%s258 + $0x8a] sm:$0xff]
      %v1042 = vld [vmem:[%s258 + $0x92] sm:$0xff]
      %v1043 = vld [vmem:[%s258 + $0x9a] sm:$0xff]
      %v1044 = vld [vmem:[%s258 + $0xa2] sm:$0xff]
      %v1045 = vld [vmem:[%s258 + $0xaa] sm:$0xff]
      %v1046 = vld [vmem:[%s258 + $0xb2] sm:$0xff]
      %v1047 = vld [vmem:[%s258 + $0xba] sm:$0xff]
      %v1048 = vld [vmem:[%s258 + $0xc2] sm:$0xff]
      %v1049 = vld [vmem:[%s258 + $0xca] sm:$0xff]
      %v1050 = vld [vmem:[%s258 + $0xd2] sm:$0xff]
      %v1051 = vld [vmem:[%s258 + $0xda] sm:$0xff]
      %v1052 = vld [vmem:[%s258 + $0xe2] sm:$0xff]
      %v1053 = vld [vmem:[%s258 + $0xea] sm:$0xff]
      %v1054 = vld [vmem:[%s258 + $0xf2] sm:$0xff]
      %v1055 = vld [vmem:[%s258 + $0xfa] sm:$0xff]
      %v1056 = vld [vmem:[%s258 + $0x102] sm:$0xff]
      %v1057 = vld [vmem:[%s258 + $0x10a] sm:$0xff]
      %v1058 = vld [vmem:[%s258 + $0x112] sm:$0xff]
      %v1059 = vld [vmem:[%s258 + $0x11a] sm:$0xff]
      %v1060 = vpack.c.bf16 %v1025, %v1024
      %v1061 = vpack.c.bf16 %v1027, %v1026
      %v1062 = vpack.c.bf16 %v1029, %v1028
      %v1063 = vpack.c.bf16 %v1031, %v1030
      %v1064 = vpack.c.bf16 %v1033, %v1032
      %v1065 = vpack.c.bf16 %v1035, %v1034
      %v1066 = vpack.c.bf16 %v1037, %v1036
      %v1067 = vpack.c.bf16 %v1039, %v1038
      %v1068 = vpack.c.bf16 %v1041, %v1040
      %v1069 = vpack.c.bf16 %v1043, %v1042
      %v1070 = vpack.c.bf16 %v1045, %v1044
      %v1071 = vpack.c.bf16 %v1047, %v1046
      %v1072 = vpack.c.bf16 %v1049, %v1048
      %v1073 = vpack.c.bf16 %v1051, %v1050
      %v1074 = vpack.c.bf16 %v1053, %v1052
      %v1075 = vpack.c.bf16 %v1055, %v1054
      %v1076 = vpack.c.bf16 %v1057, %v1056
      %v1077 = vpack.c.bf16 %v1059, %v1058
      %s1078 = scalar_lea.vmem %s263, 32
      %v1079 = vld [vmem:[%s1078] sm:$0xf]
      %v1080 = vld [vmem:[%s1078 + $0x4] sm:$0xf]
      %v1081 = vld [vmem:[%s1078 + $0x8] sm:$0xf]
      %v1082 = vld [vmem:[%s1078 + $0xc] sm:$0xf]
      %v1087 = vunpack.c.l.b16 %v1079
      %v1088 = vunpack.c.l.b16 %v1080
      %v1089 = vunpack.c.l.b16 %v1081
      %v1090 = vunpack.c.l.b16 %v1082
      %v1091 = vpack.c.b16 %v1088, %v1087
      %v1092 = vpack.c.b16 %v1090, %v1089
      %v1096 = vsel %vm418, %v1060, 0
      %v1099 = vsel %vm418, %v1061, 0
      %v1102 = vsel %vm418, %v1062, 0
      %v1105 = vsel %vm418, %v1063, 0
      %v1108 = vsel %vm418, %v1064, 0
      %v1111 = vsel %vm418, %v1065, 0
      %v1114 = vsel %vm418, %v1066, 0
      %v1117 = vsel %vm418, %v1067, 0
      %v1120 = vsel %vm418, %v1068, 0
      %v1123 = vsel %vm418, %v1069, 0
      %v1126 = vsel %vm418, %v1070, 0
      %v1129 = vsel %vm418, %v1071, 0
      %v1132 = vsel %vm418, %v1072, 0
      %v1135 = vsel %vm418, %v1073, 0
      %v1138 = vsel %vm418, %v1074, 0
      %v1141 = vsel %vm418, %v1075, 0
      %v1144 = vsel %vm418, %v1076, 0
      %v1147 = vsel %vm418, %v1077, 0
      %1149 = vmatprep.subr.bf16.mxu0 0
      %1150 = vmatpush1.bf16.msra.mxu0 0
      %1151 = vmatprep.subr.bf16.mxu0 0
      %1152 = vmatpush1.bf16.msra.mxu0 0
      %1153 = vmatprep.subr.bf16.mxu0 0
      %1154 = vmatpush1.bf16.msra.mxu0 0
      %1155 = vmatprep.subr.bf16.mxu0 0
      %1156 = vmatpush1.bf16.msra.mxu0 0
      %1157 = vmatprep.subr.bf16.mxu0 0
      %1158 = vmatpush1.bf16.msra.mxu0 0
      %1159 = vmatprep.subr.bf16.mxu0 0
      %1160 = vmatpush1.bf16.msra.mxu0 0
      %1161 = vmatprep.subr.bf16.mxu0 0
      %1162 = vmatpush1.bf16.msra.mxu0 %v1092
      %1163 = vmatprep.subr.bf16.mxu0 0
      %1164 = vmatpush1.bf16.msra.mxu0 %v1091
      %1165 = vmatprep.subr.bf16.mxu0 0
      %1166 = vmatpush2.bf16.msra.mxu0 0
      %1167 = vmatprep.subr.bf16.mxu0 0
      %1168 = vmatpush2.bf16.msra.mxu0 0
      %1169 = vmatprep.subr.bf16.mxu0 0
      %1170 = vmatpush2.bf16.msra.mxu0 0
      %1171 = vmatprep.subr.bf16.mxu0 0
      %1172 = vmatpush2.bf16.msra.mxu0 0
      %1173 = vmatprep.subr.bf16.mxu0 0
      %1174 = vmatpush2.bf16.msra.mxu0 0
      %1175 = vmatprep.subr.bf16.mxu0 0
      %1176 = vmatpush2.bf16.msra.mxu0 0
      %1177 = vmatprep.subr.bf16.mxu0 0
      %1178 = vmatpush2.bf16.msra.mxu0 0
      %1179 = vmatprep.subr.bf16.mxu0 0
      %1180 = vmatpush2.bf16.msra.mxu0 0
      %1181 = vmatprep.mubr.bf16.mxu0 0
      %1182 = vmatmul.mubr.bf16.gmra.mxu0 %v1096
      %v1183 = vpop.f32.mrf.mxu0
      %v1184 = vadd.f32 0.0, %v1183
      %v1185 = vpop.f32.mrf.mxu0
      %v1186 = vpop.f32.mrf.mxu0
      %v1187 = vadd.f32 0.0, %v1186
      %v1188 = vpop.f32.mrf.mxu0
      %1189 = vmatprep.mubr.bf16.mxu0 0
      %1190 = vmatmul.mubr.bf16.gmra.mxu0 %v1099
      %v1191 = vpop.f32.mrf.mxu0
      %v1192 = vadd.f32 0.0, %v1191
      %v1193 = vpop.f32.mrf.mxu0
      %v1194 = vpop.f32.mrf.mxu0
      %v1195 = vadd.f32 0.0, %v1194
      %v1196 = vpop.f32.mrf.mxu0
      %1197 = vmatprep.mubr.bf16.mxu0 0
      %1198 = vmatmul.mubr.bf16.gmra.mxu0 %v1102
      %v1199 = vpop.f32.mrf.mxu0
      %v1200 = vadd.f32 0.0, %v1199
      %v1201 = vpop.f32.mrf.mxu0
      %v1202 = vpop.f32.mrf.mxu0
      %v1203 = vadd.f32 0.0, %v1202
      %v1204 = vpop.f32.mrf.mxu0
      %1205 = vmatprep.mubr.bf16.mxu0 0
      %1206 = vmatmul.mubr.bf16.gmra.mxu0 %v1105
      %v1207 = vpop.f32.mrf.mxu0
      %v1208 = vadd.f32 0.0, %v1207
      %v1209 = vpop.f32.mrf.mxu0
      %v1210 = vpop.f32.mrf.mxu0
      %v1211 = vadd.f32 0.0, %v1210
      %v1212 = vpop.f32.mrf.mxu0
      %1213 = vmatprep.mubr.bf16.mxu0 0
      %1214 = vmatmul.mubr.bf16.gmra.mxu0 %v1108
      %v1215 = vpop.f32.mrf.mxu0
      %v1216 = vadd.f32 0.0, %v1215
      %v1217 = vpop.f32.mrf.mxu0
      %v1218 = vpop.f32.mrf.mxu0
      %v1219 = vadd.f32 0.0, %v1218
      %v1220 = vpop.f32.mrf.mxu0
      %1221 = vmatprep.mubr.bf16.mxu0 0
      %1222 = vmatmul.mubr.bf16.gmra.mxu0 %v1111
      %v1223 = vpop.f32.mrf.mxu0
      %v1224 = vadd.f32 0.0, %v1223
      %v1225 = vpop.f32.mrf.mxu0
      %v1226 = vpop.f32.mrf.mxu0
      %v1227 = vadd.f32 0.0, %v1226
      %v1228 = vpop.f32.mrf.mxu0
      %1229 = vmatprep.mubr.bf16.mxu0 0
      %1230 = vmatmul.mubr.bf16.gmra.mxu0 %v1114
      %v1231 = vpop.f32.mrf.mxu0
      %v1232 = vadd.f32 0.0, %v1231
      %v1233 = vpop.f32.mrf.mxu0
      %v1234 = vpop.f32.mrf.mxu0
      %v1235 = vadd.f32 0.0, %v1234
      %v1236 = vpop.f32.mrf.mxu0
      %1237 = vmatprep.mubr.bf16.mxu0 0
      %1238 = vmatmul.mubr.bf16.gmra.mxu0 %v1117
      %v1239 = vpop.f32.mrf.mxu0
      %v1240 = vadd.f32 0.0, %v1239
      %v1241 = vpop.f32.mrf.mxu0
      %v1242 = vpop.f32.mrf.mxu0
      %v1243 = vadd.f32 0.0, %v1242
      %v1244 = vpop.f32.mrf.mxu0
      %1245 = vmatprep.mubr.bf16.mxu0 0
      %1246 = vmatmul.mubr.bf16.gmra.mxu0 %v1120
      %v1247 = vpop.f32.mrf.mxu0
      %v1248 = vadd.f32 0.0, %v1247
      %v1249 = vpop.f32.mrf.mxu0
      %v1250 = vpop.f32.mrf.mxu0
      %v1251 = vadd.f32 0.0, %v1250
      %v1252 = vpop.f32.mrf.mxu0
      %1253 = vmatprep.mubr.bf16.mxu0 0
      %1254 = vmatmul.mubr.bf16.gmra.mxu0 %v1123
      %v1255 = vpop.f32.mrf.mxu0
      %v1256 = vadd.f32 0.0, %v1255
      %v1257 = vpop.f32.mrf.mxu0
      %v1258 = vpop.f32.mrf.mxu0
      %v1259 = vadd.f32 0.0, %v1258
      %v1260 = vpop.f32.mrf.mxu0
      %1261 = vmatprep.mubr.bf16.mxu0 0
      %1262 = vmatmul.mubr.bf16.gmra.mxu0 %v1126
      %v1263 = vpop.f32.mrf.mxu0
      %v1264 = vadd.f32 0.0, %v1263
      %v1265 = vpop.f32.mrf.mxu0
      %v1266 = vpop.f32.mrf.mxu0
      %v1267 = vadd.f32 0.0, %v1266
      %v1268 = vpop.f32.mrf.mxu0
      %1269 = vmatprep.mubr.bf16.mxu0 0
      %1270 = vmatmul.mubr.bf16.gmra.mxu0 %v1129
      %v1271 = vpop.f32.mrf.mxu0
      %v1272 = vadd.f32 0.0, %v1271
      %v1273 = vpop.f32.mrf.mxu0
      %v1274 = vpop.f32.mrf.mxu0
      %v1275 = vadd.f32 0.0, %v1274
      %v1276 = vpop.f32.mrf.mxu0
      %1277 = vmatprep.mubr.bf16.mxu0 0
      %1278 = vmatmul.mubr.bf16.gmra.mxu0 %v1132
      %v1279 = vpop.f32.mrf.mxu0
      %v1280 = vadd.f32 0.0, %v1279
      %v1281 = vpop.f32.mrf.mxu0
      %v1282 = vpop.f32.mrf.mxu0
      %v1283 = vadd.f32 0.0, %v1282
      %v1284 = vpop.f32.mrf.mxu0
      %1285 = vmatprep.mubr.bf16.mxu0 0
      %1286 = vmatmul.mubr.bf16.gmra.mxu0 %v1135
      %v1287 = vpop.f32.mrf.mxu0
      %v1288 = vadd.f32 0.0, %v1287
      %v1289 = vpop.f32.mrf.mxu0
      %v1290 = vpop.f32.mrf.mxu0
      %v1291 = vadd.f32 0.0, %v1290
      %v1292 = vpop.f32.mrf.mxu0
      %1293 = vmatprep.mubr.bf16.mxu0 0
      %1294 = vmatmul.mubr.bf16.gmra.mxu0 %v1138
      %v1295 = vpop.f32.mrf.mxu0
      %v1296 = vadd.f32 0.0, %v1295
      %v1297 = vpop.f32.mrf.mxu0
      %v1298 = vpop.f32.mrf.mxu0
      %v1299 = vadd.f32 0.0, %v1298
      %v1300 = vpop.f32.mrf.mxu0
      %1301 = vmatprep.mubr.bf16.mxu0 0
      %1302 = vmatmul.mubr.bf16.gmra.mxu0 %v1141
      %v1303 = vpop.f32.mrf.mxu0
      %v1304 = vadd.f32 0.0, %v1303
      %v1305 = vpop.f32.mrf.mxu0
      %v1306 = vpop.f32.mrf.mxu0
      %v1307 = vadd.f32 0.0, %v1306
      %v1308 = vpop.f32.mrf.mxu0
      %1309 = vmatprep.mubr.bf16.mxu0 0
      %1310 = vmatmul.mubr.bf16.gmra.mxu0 %v1144
      %v1311 = vpop.f32.mrf.mxu0
      %v1312 = vadd.f32 0.0, %v1311
      %v1313 = vpop.f32.mrf.mxu0
      %v1314 = vpop.f32.mrf.mxu0
      %v1315 = vadd.f32 0.0, %v1314
      %v1316 = vpop.f32.mrf.mxu0
      %1317 = vmatprep.mubr.bf16.mxu0 0
      %1318 = vmatmul.mubr.bf16.gmra.mxu0 %v1147
      %v1319 = vpop.f32.mrf.mxu0
      %v1320 = vadd.f32 0.0, %v1319
      %v1321 = vpop.f32.mrf.mxu0
      %v1322 = vpop.f32.mrf.mxu0
      %v1323 = vadd.f32 0.0, %v1322
      %v1324 = vpop.f32.mrf.mxu0
      %1325 = vdwg.mxu0
      %v1326 = vadd.f32 %v988, %v1184
      %v1327 = vadd.f32 %v989, %v1187
      %v1328 = vadd.f32 %v990, %v1192
      %v1329 = vadd.f32 %v991, %v1195
      %v1330 = vadd.f32 %v992, %v1200
      %v1331 = vadd.f32 %v993, %v1203
      %v1332 = vadd.f32 %v994, %v1208
      %v1333 = vadd.f32 %v995, %v1211
      %v1334 = vadd.f32 %v996, %v1216
      %v1335 = vadd.f32 %v997, %v1219
      %v1336 = vadd.f32 %v998, %v1224
      %v1337 = vadd.f32 %v999, %v1227
      %v1338 = vadd.f32 %v1000, %v1232
      %v1339 = vadd.f32 %v1001, %v1235
      %v1340 = vadd.f32 %v1002, %v1240
      %v1341 = vadd.f32 %v1003, %v1243
      %v1342 = vadd.f32 %v1004, %v1248
      %v1343 = vadd.f32 %v1005, %v1251
      %v1344 = vadd.f32 %v1006, %v1256
      %v1345 = vadd.f32 %v1007, %v1259
      %v1346 = vadd.f32 %v1008, %v1264
      %v1347 = vadd.f32 %v1009, %v1267
      %v1348 = vadd.f32 %v1010, %v1272
      %v1349 = vadd.f32 %v1011, %v1275
      %v1350 = vadd.f32 %v1012, %v1280
      %v1351 = vadd.f32 %v1013, %v1283
      %v1352 = vadd.f32 %v1014, %v1288
      %v1353 = vadd.f32 %v1015, %v1291
      %v1354 = vadd.f32 %v1016, %v1296
      %v1355 = vadd.f32 %v1017, %v1299
      %v1356 = vadd.f32 %v1018, %v1304
      %v1357 = vadd.f32 %v1019, %v1307
      %v1358 = vadd.f32 %v1020, %v1312
      %v1359 = vadd.f32 %v1021, %v1315
      %v1360 = vadd.f32 %v1022, %v1320
      %v1361 = vadd.f32 %v1023, %v1323
      %v1362 = vld [vmem:[%s258 + $0x12] sm:$0xff]
      %v1363 = vld [vmem:[%s258 + $0x1a] sm:$0xff]
      %v1364 = vld [vmem:[%s258 + $0x22] sm:$0xff]
      %v1365 = vld [vmem:[%s258 + $0x2a] sm:$0xff]
      %v1366 = vld [vmem:[%s258 + $0x32] sm:$0xff]
      %v1367 = vld [vmem:[%s258 + $0x3a] sm:$0xff]
      %v1368 = vld [vmem:[%s258 + $0x42] sm:$0xff]
      %v1369 = vld [vmem:[%s258 + $0x4a] sm:$0xff]
      %v1370 = vld [vmem:[%s258 + $0x52] sm:$0xff]
      %v1371 = vld [vmem:[%s258 + $0x5a] sm:$0xff]
      %v1372 = vld [vmem:[%s258 + $0x62] sm:$0xff]
      %v1373 = vld [vmem:[%s258 + $0x6a] sm:$0xff]
      %v1374 = vld [vmem:[%s258 + $0x72] sm:$0xff]
      %v1375 = vld [vmem:[%s258 + $0x7a] sm:$0xff]
      %v1376 = vld [vmem:[%s258 + $0x82] sm:$0xff]
      %v1377 = vld [vmem:[%s258 + $0x8a] sm:$0xff]
      %v1378 = vld [vmem:[%s258 + $0x92] sm:$0xff]
      %v1379 = vld [vmem:[%s258 + $0x9a] sm:$0xff]
      %v1380 = vld [vmem:[%s258 + $0xa2] sm:$0xff]
      %v1381 = vld [vmem:[%s258 + $0xaa] sm:$0xff]
      %v1382 = vld [vmem:[%s258 + $0xb2] sm:$0xff]
      %v1383 = vld [vmem:[%s258 + $0xba] sm:$0xff]
      %v1384 = vld [vmem:[%s258 + $0xc2] sm:$0xff]
      %v1385 = vld [vmem:[%s258 + $0xca] sm:$0xff]
      %v1386 = vld [vmem:[%s258 + $0xd2] sm:$0xff]
      %v1387 = vld [vmem:[%s258 + $0xda] sm:$0xff]
      %v1388 = vld [vmem:[%s258 + $0xe2] sm:$0xff]
      %v1389 = vld [vmem:[%s258 + $0xea] sm:$0xff]
      %v1390 = vld [vmem:[%s258 + $0xf2] sm:$0xff]
      %v1391 = vld [vmem:[%s258 + $0xfa] sm:$0xff]
      %v1392 = vld [vmem:[%s258 + $0x102] sm:$0xff]
      %v1393 = vld [vmem:[%s258 + $0x10a] sm:$0xff]
      %v1394 = vld [vmem:[%s258 + $0x112] sm:$0xff]
      %v1395 = vld [vmem:[%s258 + $0x11a] sm:$0xff]
      %v1396 = vld [vmem:[%s258 + $0x122] sm:$0xff]
      %v1397 = vld [vmem:[%s258 + $0x12a] sm:$0xff]
      %v1398 = vpack.c.bf16 %v1363, %v1362
      %v1399 = vpack.c.bf16 %v1365, %v1364
      %v1400 = vpack.c.bf16 %v1367, %v1366
      %v1401 = vpack.c.bf16 %v1369, %v1368
      %v1402 = vpack.c.bf16 %v1371, %v1370
      %v1403 = vpack.c.bf16 %v1373, %v1372
      %v1404 = vpack.c.bf16 %v1375, %v1374
      %v1405 = vpack.c.bf16 %v1377, %v1376
      %v1406 = vpack.c.bf16 %v1379, %v1378
      %v1407 = vpack.c.bf16 %v1381, %v1380
      %v1408 = vpack.c.bf16 %v1383, %v1382
      %v1409 = vpack.c.bf16 %v1385, %v1384
      %v1410 = vpack.c.bf16 %v1387, %v1386
      %v1411 = vpack.c.bf16 %v1389, %v1388
      %v1412 = vpack.c.bf16 %v1391, %v1390
      %v1413 = vpack.c.bf16 %v1393, %v1392
      %v1414 = vpack.c.bf16 %v1395, %v1394
      %v1415 = vpack.c.bf16 %v1397, %v1396
      %s1416 = scalar_lea.vmem %s263, 48
      %v1417 = vld [vmem:[%s1416] sm:$0xf]
      %v1418 = vld [vmem:[%s1416 + $0x4] sm:$0xf]
      %v1419 = vld [vmem:[%s1416 + $0x8] sm:$0xf]
      %v1420 = vld [vmem:[%s1416 + $0xc] sm:$0xf]
      %v1425 = vunpack.c.l.b16 %v1417
      %v1426 = vunpack.c.l.b16 %v1418
      %v1427 = vunpack.c.l.b16 %v1419
      %v1428 = vunpack.c.l.b16 %v1420
      %v1429 = vpack.c.b16 %v1426, %v1425
      %v1430 = vpack.c.b16 %v1428, %v1427
      %v1434 = vsel %vm418, %v1398, 0
      %v1437 = vsel %vm418, %v1399, 0
      %v1440 = vsel %vm418, %v1400, 0
      %v1443 = vsel %vm418, %v1401, 0
      %v1446 = vsel %vm418, %v1402, 0
      %v1449 = vsel %vm418, %v1403, 0
      %v1452 = vsel %vm418, %v1404, 0
      %v1455 = vsel %vm418, %v1405, 0
      %v1458 = vsel %vm418, %v1406, 0
      %v1461 = vsel %vm418, %v1407, 0
      %v1464 = vsel %vm418, %v1408, 0
      %v1467 = vsel %vm418, %v1409, 0
      %v1470 = vsel %vm418, %v1410, 0
      %v1473 = vsel %vm418, %v1411, 0
      %v1476 = vsel %vm418, %v1412, 0
      %v1479 = vsel %vm418, %v1413, 0
      %v1482 = vsel %vm418, %v1414, 0
      %v1485 = vsel %vm418, %v1415, 0
      %1487 = vmatprep.subr.bf16.mxu0 0
      %1488 = vmatpush1.bf16.msra.mxu0 0
      %1489 = vmatprep.subr.bf16.mxu0 0
      %1490 = vmatpush1.bf16.msra.mxu0 0
      %1491 = vmatprep.subr.bf16.mxu0 0
      %1492 = vmatpush1.bf16.msra.mxu0 0
      %1493 = vmatprep.subr.bf16.mxu0 0
      %1494 = vmatpush1.bf16.msra.mxu0 0
      %1495 = vmatprep.subr.bf16.mxu0 0
      %1496 = vmatpush1.bf16.msra.mxu0 0
      %1497 = vmatprep.subr.bf16.mxu0 0
      %1498 = vmatpush1.bf16.msra.mxu0 0
      %1499 = vmatprep.subr.bf16.mxu0 0
      %1500 = vmatpush1.bf16.msra.mxu0 %v1430
      %1501 = vmatprep.subr.bf16.mxu0 0
      %1502 = vmatpush1.bf16.msra.mxu0 %v1429
      %1503 = vmatprep.subr.bf16.mxu0 0
      %1504 = vmatpush2.bf16.msra.mxu0 0
      %1505 = vmatprep.subr.bf16.mxu0 0
      %1506 = vmatpush2.bf16.msra.mxu0 0
      %1507 = vmatprep.subr.bf16.mxu0 0
      %1508 = vmatpush2.bf16.msra.mxu0 0
      %1509 = vmatprep.subr.bf16.mxu0 0
      %1510 = vmatpush2.bf16.msra.mxu0 0
      %1511 = vmatprep.subr.bf16.mxu0 0
      %1512 = vmatpush2.bf16.msra.mxu0 0
      %1513 = vmatprep.subr.bf16.mxu0 0
      %1514 = vmatpush2.bf16.msra.mxu0 0
      %1515 = vmatprep.subr.bf16.mxu0 0
      %1516 = vmatpush2.bf16.msra.mxu0 0
      %1517 = vmatprep.subr.bf16.mxu0 0
      %1518 = vmatpush2.bf16.msra.mxu0 0
      %1519 = vmatprep.mubr.bf16.mxu0 0
      %1520 = vmatmul.mubr.bf16.gmra.mxu0 %v1434
      %v1521 = vpop.f32.mrf.mxu0
      %v1522 = vadd.f32 0.0, %v1521
      %v1523 = vpop.f32.mrf.mxu0
      %v1524 = vpop.f32.mrf.mxu0
      %v1525 = vadd.f32 0.0, %v1524
      %v1526 = vpop.f32.mrf.mxu0
      %1527 = vmatprep.mubr.bf16.mxu0 0
      %1528 = vmatmul.mubr.bf16.gmra.mxu0 %v1437
      %v1529 = vpop.f32.mrf.mxu0
      %v1530 = vadd.f32 0.0, %v1529
      %v1531 = vpop.f32.mrf.mxu0
      %v1532 = vpop.f32.mrf.mxu0
      %v1533 = vadd.f32 0.0, %v1532
      %v1534 = vpop.f32.mrf.mxu0
      %1535 = vmatprep.mubr.bf16.mxu0 0
      %1536 = vmatmul.mubr.bf16.gmra.mxu0 %v1440
      %v1537 = vpop.f32.mrf.mxu0
      %v1538 = vadd.f32 0.0, %v1537
      %v1539 = vpop.f32.mrf.mxu0
      %v1540 = vpop.f32.mrf.mxu0
      %v1541 = vadd.f32 0.0, %v1540
      %v1542 = vpop.f32.mrf.mxu0
      %1543 = vmatprep.mubr.bf16.mxu0 0
      %1544 = vmatmul.mubr.bf16.gmra.mxu0 %v1443
      %v1545 = vpop.f32.mrf.mxu0
      %v1546 = vadd.f32 0.0, %v1545
      %v1547 = vpop.f32.mrf.mxu0
      %v1548 = vpop.f32.mrf.mxu0
      %v1549 = vadd.f32 0.0, %v1548
      %v1550 = vpop.f32.mrf.mxu0
      %1551 = vmatprep.mubr.bf16.mxu0 0
      %1552 = vmatmul.mubr.bf16.gmra.mxu0 %v1446
      %v1553 = vpop.f32.mrf.mxu0
      %v1554 = vadd.f32 0.0, %v1553
      %v1555 = vpop.f32.mrf.mxu0
      %v1556 = vpop.f32.mrf.mxu0
      %v1557 = vadd.f32 0.0, %v1556
      %v1558 = vpop.f32.mrf.mxu0
      %1559 = vmatprep.mubr.bf16.mxu0 0
      %1560 = vmatmul.mubr.bf16.gmra.mxu0 %v1449
      %v1561 = vpop.f32.mrf.mxu0
      %v1562 = vadd.f32 0.0, %v1561
      %v1563 = vpop.f32.mrf.mxu0
      %v1564 = vpop.f32.mrf.mxu0
      %v1565 = vadd.f32 0.0, %v1564
      %v1566 = vpop.f32.mrf.mxu0
      %1567 = vmatprep.mubr.bf16.mxu0 0
      %1568 = vmatmul.mubr.bf16.gmra.mxu0 %v1452
      %v1569 = vpop.f32.mrf.mxu0
      %v1570 = vadd.f32 0.0, %v1569
      %v1571 = vpop.f32.mrf.mxu0
      %v1572 = vpop.f32.mrf.mxu0
      %v1573 = vadd.f32 0.0, %v1572
      %v1574 = vpop.f32.mrf.mxu0
      %1575 = vmatprep.mubr.bf16.mxu0 0
      %1576 = vmatmul.mubr.bf16.gmra.mxu0 %v1455
      %v1577 = vpop.f32.mrf.mxu0
      %v1578 = vadd.f32 0.0, %v1577
      %v1579 = vpop.f32.mrf.mxu0
      %v1580 = vpop.f32.mrf.mxu0
      %v1581 = vadd.f32 0.0, %v1580
      %v1582 = vpop.f32.mrf.mxu0
      %1583 = vmatprep.mubr.bf16.mxu0 0
      %1584 = vmatmul.mubr.bf16.gmra.mxu0 %v1458
      %v1585 = vpop.f32.mrf.mxu0
      %v1586 = vadd.f32 0.0, %v1585
      %v1587 = vpop.f32.mrf.mxu0
      %v1588 = vpop.f32.mrf.mxu0
      %v1589 = vadd.f32 0.0, %v1588
      %v1590 = vpop.f32.mrf.mxu0
      %1591 = vmatprep.mubr.bf16.mxu0 0
      %1592 = vmatmul.mubr.bf16.gmra.mxu0 %v1461
      %v1593 = vpop.f32.mrf.mxu0
      %v1594 = vadd.f32 0.0, %v1593
      %v1595 = vpop.f32.mrf.mxu0
      %v1596 = vpop.f32.mrf.mxu0
      %v1597 = vadd.f32 0.0, %v1596
      %v1598 = vpop.f32.mrf.mxu0
      %1599 = vmatprep.mubr.bf16.mxu0 0
      %1600 = vmatmul.mubr.bf16.gmra.mxu0 %v1464
      %v1601 = vpop.f32.mrf.mxu0
      %v1602 = vadd.f32 0.0, %v1601
      %v1603 = vpop.f32.mrf.mxu0
      %v1604 = vpop.f32.mrf.mxu0
      %v1605 = vadd.f32 0.0, %v1604
      %v1606 = vpop.f32.mrf.mxu0
      %1607 = vmatprep.mubr.bf16.mxu0 0
      %1608 = vmatmul.mubr.bf16.gmra.mxu0 %v1467
      %v1609 = vpop.f32.mrf.mxu0
      %v1610 = vadd.f32 0.0, %v1609
      %v1611 = vpop.f32.mrf.mxu0
      %v1612 = vpop.f32.mrf.mxu0
      %v1613 = vadd.f32 0.0, %v1612
      %v1614 = vpop.f32.mrf.mxu0
      %1615 = vmatprep.mubr.bf16.mxu0 0
      %1616 = vmatmul.mubr.bf16.gmra.mxu0 %v1470
      %v1617 = vpop.f32.mrf.mxu0
      %v1618 = vadd.f32 0.0, %v1617
      %v1619 = vpop.f32.mrf.mxu0
      %v1620 = vpop.f32.mrf.mxu0
      %v1621 = vadd.f32 0.0, %v1620
      %v1622 = vpop.f32.mrf.mxu0
      %1623 = vmatprep.mubr.bf16.mxu0 0
      %1624 = vmatmul.mubr.bf16.gmra.mxu0 %v1473
      %v1625 = vpop.f32.mrf.mxu0
      %v1626 = vadd.f32 0.0, %v1625
      %v1627 = vpop.f32.mrf.mxu0
      %v1628 = vpop.f32.mrf.mxu0
      %v1629 = vadd.f32 0.0, %v1628
      %v1630 = vpop.f32.mrf.mxu0
      %1631 = vmatprep.mubr.bf16.mxu0 0
      %1632 = vmatmul.mubr.bf16.gmra.mxu0 %v1476
      %v1633 = vpop.f32.mrf.mxu0
      %v1634 = vadd.f32 0.0, %v1633
      %v1635 = vpop.f32.mrf.mxu0
      %v1636 = vpop.f32.mrf.mxu0
      %v1637 = vadd.f32 0.0, %v1636
      %v1638 = vpop.f32.mrf.mxu0
      %1639 = vmatprep.mubr.bf16.mxu0 0
      %1640 = vmatmul.mubr.bf16.gmra.mxu0 %v1479
      %v1641 = vpop.f32.mrf.mxu0
      %v1642 = vadd.f32 0.0, %v1641
      %v1643 = vpop.f32.mrf.mxu0
      %v1644 = vpop.f32.mrf.mxu0
      %v1645 = vadd.f32 0.0, %v1644
      %v1646 = vpop.f32.mrf.mxu0
      %1647 = vmatprep.mubr.bf16.mxu0 0
      %1648 = vmatmul.mubr.bf16.gmra.mxu0 %v1482
      %v1649 = vpop.f32.mrf.mxu0
      %v1650 = vadd.f32 0.0, %v1649
      %v1651 = vpop.f32.mrf.mxu0
      %v1652 = vpop.f32.mrf.mxu0
      %v1653 = vadd.f32 0.0, %v1652
      %v1654 = vpop.f32.mrf.mxu0
      %1655 = vmatprep.mubr.bf16.mxu0 0
      %1656 = vmatmul.mubr.bf16.gmra.mxu0 %v1485
      %v1657 = vpop.f32.mrf.mxu0
      %v1658 = vadd.f32 0.0, %v1657
      %v1659 = vpop.f32.mrf.mxu0
      %v1660 = vpop.f32.mrf.mxu0
      %v1661 = vadd.f32 0.0, %v1660
      %v1662 = vpop.f32.mrf.mxu0
      %1663 = vdwg.mxu0
      %v1664 = vadd.f32 %v1326, %v1522
      %v1665 = vadd.f32 %v1327, %v1525
      %v1666 = vadd.f32 %v1328, %v1530
      %v1667 = vadd.f32 %v1329, %v1533
      %v1668 = vadd.f32 %v1330, %v1538
      %v1669 = vadd.f32 %v1331, %v1541
      %v1670 = vadd.f32 %v1332, %v1546
      %v1671 = vadd.f32 %v1333, %v1549
      %v1672 = vadd.f32 %v1334, %v1554
      %v1673 = vadd.f32 %v1335, %v1557
      %v1674 = vadd.f32 %v1336, %v1562
      %v1675 = vadd.f32 %v1337, %v1565
      %v1676 = vadd.f32 %v1338, %v1570
      %v1677 = vadd.f32 %v1339, %v1573
      %v1678 = vadd.f32 %v1340, %v1578
      %v1679 = vadd.f32 %v1341, %v1581
      %v1680 = vadd.f32 %v1342, %v1586
      %v1681 = vadd.f32 %v1343, %v1589
      %v1682 = vadd.f32 %v1344, %v1594
      %v1683 = vadd.f32 %v1345, %v1597
      %v1684 = vadd.f32 %v1346, %v1602
      %v1685 = vadd.f32 %v1347, %v1605
      %v1686 = vadd.f32 %v1348, %v1610
      %v1687 = vadd.f32 %v1349, %v1613
      %v1688 = vadd.f32 %v1350, %v1618
      %v1689 = vadd.f32 %v1351, %v1621
      %v1690 = vadd.f32 %v1352, %v1626
      %v1691 = vadd.f32 %v1353, %v1629
      %v1692 = vadd.f32 %v1354, %v1634
      %v1693 = vadd.f32 %v1355, %v1637
      %v1694 = vadd.f32 %v1356, %v1642
      %v1695 = vadd.f32 %v1357, %v1645
      %v1696 = vadd.f32 %v1358, %v1650
      %v1697 = vadd.f32 %v1359, %v1653
      %v1698 = vadd.f32 %v1360, %v1658
      %v1699 = vadd.f32 %v1361, %v1661
      %v1700 = vld [vmem:[%s258 + $0x13] sm:$0xff]
      %v1701 = vld [vmem:[%s258 + $0x1b] sm:$0xff]
      %v1702 = vld [vmem:[%s258 + $0x23] sm:$0xff]
      %v1703 = vld [vmem:[%s258 + $0x2b] sm:$0xff]
      %v1704 = vld [vmem:[%s258 + $0x33] sm:$0xff]
      %v1705 = vld [vmem:[%s258 + $0x3b] sm:$0xff]
      %v1706 = vld [vmem:[%s258 + $0x43] sm:$0xff]
      %v1707 = vld [vmem:[%s258 + $0x4b] sm:$0xff]
      %v1708 = vld [vmem:[%s258 + $0x53] sm:$0xff]
      %v1709 = vld [vmem:[%s258 + $0x5b] sm:$0xff]
      %v1710 = vld [vmem:[%s258 + $0x63] sm:$0xff]
      %v1711 = vld [vmem:[%s258 + $0x6b] sm:$0xff]
      %v1712 = vld [vmem:[%s258 + $0x73] sm:$0xff]
      %v1713 = vld [vmem:[%s258 + $0x7b] sm:$0xff]
      %v1714 = vld [vmem:[%s258 + $0x83] sm:$0xff]
      %v1715 = vld [vmem:[%s258 + $0x8b] sm:$0xff]
      %v1716 = vld [vmem:[%s258 + $0x93] sm:$0xff]
      %v1717 = vld [vmem:[%s258 + $0x9b] sm:$0xff]
      %v1718 = vld [vmem:[%s258 + $0xa3] sm:$0xff]
      %v1719 = vld [vmem:[%s258 + $0xab] sm:$0xff]
      %v1720 = vld [vmem:[%s258 + $0xb3] sm:$0xff]
      %v1721 = vld [vmem:[%s258 + $0xbb] sm:$0xff]
      %v1722 = vld [vmem:[%s258 + $0xc3] sm:$0xff]
      %v1723 = vld [vmem:[%s258 + $0xcb] sm:$0xff]
      %v1724 = vld [vmem:[%s258 + $0xd3] sm:$0xff]
      %v1725 = vld [vmem:[%s258 + $0xdb] sm:$0xff]
      %v1726 = vld [vmem:[%s258 + $0xe3] sm:$0xff]
      %v1727 = vld [vmem:[%s258 + $0xeb] sm:$0xff]
      %v1728 = vld [vmem:[%s258 + $0xf3] sm:$0xff]
      %v1729 = vld [vmem:[%s258 + $0xfb] sm:$0xff]
      %v1730 = vld [vmem:[%s258 + $0x103] sm:$0xff]
      %v1731 = vld [vmem:[%s258 + $0x10b] sm:$0xff]
      %v1732 = vld [vmem:[%s258 + $0x113] sm:$0xff]
      %v1733 = vld [vmem:[%s258 + $0x11b] sm:$0xff]
      %v1734 = vld [vmem:[%s258 + $0x123] sm:$0xff]
      %v1735 = vld [vmem:[%s258 + $0x12b] sm:$0xff]
      %v1736 = vpack.c.bf16 %v1701, %v1700
      %v1737 = vpack.c.bf16 %v1703, %v1702
      %v1738 = vpack.c.bf16 %v1705, %v1704
      %v1739 = vpack.c.bf16 %v1707, %v1706
      %v1740 = vpack.c.bf16 %v1709, %v1708
      %v1741 = vpack.c.bf16 %v1711, %v1710
      %v1742 = vpack.c.bf16 %v1713, %v1712
      %v1743 = vpack.c.bf16 %v1715, %v1714
      %v1744 = vpack.c.bf16 %v1717, %v1716
      %v1745 = vpack.c.bf16 %v1719, %v1718
      %v1746 = vpack.c.bf16 %v1721, %v1720
      %v1747 = vpack.c.bf16 %v1723, %v1722
      %v1748 = vpack.c.bf16 %v1725, %v1724
      %v1749 = vpack.c.bf16 %v1727, %v1726
      %v1750 = vpack.c.bf16 %v1729, %v1728
      %v1751 = vpack.c.bf16 %v1731, %v1730
      %v1752 = vpack.c.bf16 %v1733, %v1732
      %v1753 = vpack.c.bf16 %v1735, %v1734
      %s1754 = scalar_lea.vmem %s263, 64
      %v1755 = vld [vmem:[%s1754] sm:$0xf]
      %v1756 = vld [vmem:[%s1754 + $0x4] sm:$0xf]
      %v1757 = vld [vmem:[%s1754 + $0x8] sm:$0xf]
      %v1758 = vld [vmem:[%s1754 + $0xc] sm:$0xf]
      %v1763 = vunpack.c.l.b16 %v1755
      %v1764 = vunpack.c.l.b16 %v1756
      %v1765 = vunpack.c.l.b16 %v1757
      %v1766 = vunpack.c.l.b16 %v1758
      %v1767 = vpack.c.b16 %v1764, %v1763
      %v1768 = vpack.c.b16 %v1766, %v1765
      %v1772 = vsel %vm418, %v1736, 0
      %v1775 = vsel %vm418, %v1737, 0
      %v1778 = vsel %vm418, %v1738, 0
      %v1781 = vsel %vm418, %v1739, 0
      %v1784 = vsel %vm418, %v1740, 0
      %v1787 = vsel %vm418, %v1741, 0
      %v1790 = vsel %vm418, %v1742, 0
      %v1793 = vsel %vm418, %v1743, 0
      %v1796 = vsel %vm418, %v1744, 0
      %v1799 = vsel %vm418, %v1745, 0
      %v1802 = vsel %vm418, %v1746, 0
      %v1805 = vsel %vm418, %v1747, 0
      %v1808 = vsel %vm418, %v1748, 0
      %v1811 = vsel %vm418, %v1749, 0
      %v1814 = vsel %vm418, %v1750, 0
      %v1817 = vsel %vm418, %v1751, 0
      %v1820 = vsel %vm418, %v1752, 0
      %v1823 = vsel %vm418, %v1753, 0
      %1825 = vmatprep.subr.bf16.mxu0 0
      %1826 = vmatpush1.bf16.msra.mxu0 0
      %1827 = vmatprep.subr.bf16.mxu0 0
      %1828 = vmatpush1.bf16.msra.mxu0 0
      %1829 = vmatprep.subr.bf16.mxu0 0
      %1830 = vmatpush1.bf16.msra.mxu0 0
      %1831 = vmatprep.subr.bf16.mxu0 0
      %1832 = vmatpush1.bf16.msra.mxu0 0
      %1833 = vmatprep.subr.bf16.mxu0 0
      %1834 = vmatpush1.bf16.msra.mxu0 0
      %1835 = vmatprep.subr.bf16.mxu0 0
      %1836 = vmatpush1.bf16.msra.mxu0 0
      %1837 = vmatprep.subr.bf16.mxu0 0
      %1838 = vmatpush1.bf16.msra.mxu0 %v1768
      %1839 = vmatprep.subr.bf16.mxu0 0
      %1840 = vmatpush1.bf16.msra.mxu0 %v1767
      %1841 = vmatprep.subr.bf16.mxu0 0
      %1842 = vmatpush2.bf16.msra.mxu0 0
      %1843 = vmatprep.subr.bf16.mxu0 0
      %1844 = vmatpush2.bf16.msra.mxu0 0
      %1845 = vmatprep.subr.bf16.mxu0 0
      %1846 = vmatpush2.bf16.msra.mxu0 0
      %1847 = vmatprep.subr.bf16.mxu0 0
      %1848 = vmatpush2.bf16.msra.mxu0 0
      %1849 = vmatprep.subr.bf16.mxu0 0
      %1850 = vmatpush2.bf16.msra.mxu0 0
      %1851 = vmatprep.subr.bf16.mxu0 0
      %1852 = vmatpush2.bf16.msra.mxu0 0
      %1853 = vmatprep.subr.bf16.mxu0 0
      %1854 = vmatpush2.bf16.msra.mxu0 0
      %1855 = vmatprep.subr.bf16.mxu0 0
      %1856 = vmatpush2.bf16.msra.mxu0 0
      %1857 = vmatprep.mubr.bf16.mxu0 0
      %1858 = vmatmul.mubr.bf16.gmra.mxu0 %v1772
      %v1859 = vpop.f32.mrf.mxu0
      %v1860 = vadd.f32 0.0, %v1859
      %v1861 = vpop.f32.mrf.mxu0
      %v1862 = vpop.f32.mrf.mxu0
      %v1863 = vadd.f32 0.0, %v1862
      %v1864 = vpop.f32.mrf.mxu0
      %1865 = vmatprep.mubr.bf16.mxu0 0
      %1866 = vmatmul.mubr.bf16.gmra.mxu0 %v1775
      %v1867 = vpop.f32.mrf.mxu0
      %v1868 = vadd.f32 0.0, %v1867
      %v1869 = vpop.f32.mrf.mxu0
      %v1870 = vpop.f32.mrf.mxu0
      %v1871 = vadd.f32 0.0, %v1870
      %v1872 = vpop.f32.mrf.mxu0
      %1873 = vmatprep.mubr.bf16.mxu0 0
      %1874 = vmatmul.mubr.bf16.gmra.mxu0 %v1778
      %v1875 = vpop.f32.mrf.mxu0
      %v1876 = vadd.f32 0.0, %v1875
      %v1877 = vpop.f32.mrf.mxu0
      %v1878 = vpop.f32.mrf.mxu0
      %v1879 = vadd.f32 0.0, %v1878
      %v1880 = vpop.f32.mrf.mxu0
      %1881 = vmatprep.mubr.bf16.mxu0 0
      %1882 = vmatmul.mubr.bf16.gmra.mxu0 %v1781
      %v1883 = vpop.f32.mrf.mxu0
      %v1884 = vadd.f32 0.0, %v1883
      %v1885 = vpop.f32.mrf.mxu0
      %v1886 = vpop.f32.mrf.mxu0
      %v1887 = vadd.f32 0.0, %v1886
      %v1888 = vpop.f32.mrf.mxu0
      %1889 = vmatprep.mubr.bf16.mxu0 0
      %1890 = vmatmul.mubr.bf16.gmra.mxu0 %v1784
      %v1891 = vpop.f32.mrf.mxu0
      %v1892 = vadd.f32 0.0, %v1891
      %v1893 = vpop.f32.mrf.mxu0
      %v1894 = vpop.f32.mrf.mxu0
      %v1895 = vadd.f32 0.0, %v1894
      %v1896 = vpop.f32.mrf.mxu0
      %1897 = vmatprep.mubr.bf16.mxu0 0
      %1898 = vmatmul.mubr.bf16.gmra.mxu0 %v1787
      %v1899 = vpop.f32.mrf.mxu0
      %v1900 = vadd.f32 0.0, %v1899
      %v1901 = vpop.f32.mrf.mxu0
      %v1902 = vpop.f32.mrf.mxu0
      %v1903 = vadd.f32 0.0, %v1902
      %v1904 = vpop.f32.mrf.mxu0
      %1905 = vmatprep.mubr.bf16.mxu0 0
      %1906 = vmatmul.mubr.bf16.gmra.mxu0 %v1790
      %v1907 = vpop.f32.mrf.mxu0
      %v1908 = vadd.f32 0.0, %v1907
      %v1909 = vpop.f32.mrf.mxu0
      %v1910 = vpop.f32.mrf.mxu0
      %v1911 = vadd.f32 0.0, %v1910
      %v1912 = vpop.f32.mrf.mxu0
      %1913 = vmatprep.mubr.bf16.mxu0 0
      %1914 = vmatmul.mubr.bf16.gmra.mxu0 %v1793
      %v1915 = vpop.f32.mrf.mxu0
      %v1916 = vadd.f32 0.0, %v1915
      %v1917 = vpop.f32.mrf.mxu0
      %v1918 = vpop.f32.mrf.mxu0
      %v1919 = vadd.f32 0.0, %v1918
      %v1920 = vpop.f32.mrf.mxu0
      %1921 = vmatprep.mubr.bf16.mxu0 0
      %1922 = vmatmul.mubr.bf16.gmra.mxu0 %v1796
      %v1923 = vpop.f32.mrf.mxu0
      %v1924 = vadd.f32 0.0, %v1923
      %v1925 = vpop.f32.mrf.mxu0
      %v1926 = vpop.f32.mrf.mxu0
      %v1927 = vadd.f32 0.0, %v1926
      %v1928 = vpop.f32.mrf.mxu0
      %1929 = vmatprep.mubr.bf16.mxu0 0
      %1930 = vmatmul.mubr.bf16.gmra.mxu0 %v1799
      %v1931 = vpop.f32.mrf.mxu0
      %v1932 = vadd.f32 0.0, %v1931
      %v1933 = vpop.f32.mrf.mxu0
      %v1934 = vpop.f32.mrf.mxu0
      %v1935 = vadd.f32 0.0, %v1934
      %v1936 = vpop.f32.mrf.mxu0
      %1937 = vmatprep.mubr.bf16.mxu0 0
      %1938 = vmatmul.mubr.bf16.gmra.mxu0 %v1802
      %v1939 = vpop.f32.mrf.mxu0
      %v1940 = vadd.f32 0.0, %v1939
      %v1941 = vpop.f32.mrf.mxu0
      %v1942 = vpop.f32.mrf.mxu0
      %v1943 = vadd.f32 0.0, %v1942
      %v1944 = vpop.f32.mrf.mxu0
      %1945 = vmatprep.mubr.bf16.mxu0 0
      %1946 = vmatmul.mubr.bf16.gmra.mxu0 %v1805
      %v1947 = vpop.f32.mrf.mxu0
      %v1948 = vadd.f32 0.0, %v1947
      %v1949 = vpop.f32.mrf.mxu0
      %v1950 = vpop.f32.mrf.mxu0
      %v1951 = vadd.f32 0.0, %v1950
      %v1952 = vpop.f32.mrf.mxu0
      %1953 = vmatprep.mubr.bf16.mxu0 0
      %1954 = vmatmul.mubr.bf16.gmra.mxu0 %v1808
      %v1955 = vpop.f32.mrf.mxu0
      %v1956 = vadd.f32 0.0, %v1955
      %v1957 = vpop.f32.mrf.mxu0
      %v1958 = vpop.f32.mrf.mxu0
      %v1959 = vadd.f32 0.0, %v1958
      %v1960 = vpop.f32.mrf.mxu0
      %1961 = vmatprep.mubr.bf16.mxu0 0
      %1962 = vmatmul.mubr.bf16.gmra.mxu0 %v1811
      %v1963 = vpop.f32.mrf.mxu0
      %v1964 = vadd.f32 0.0, %v1963
      %v1965 = vpop.f32.mrf.mxu0
      %v1966 = vpop.f32.mrf.mxu0
      %v1967 = vadd.f32 0.0, %v1966
      %v1968 = vpop.f32.mrf.mxu0
      %1969 = vmatprep.mubr.bf16.mxu0 0
      %1970 = vmatmul.mubr.bf16.gmra.mxu0 %v1814
      %v1971 = vpop.f32.mrf.mxu0
      %v1972 = vadd.f32 0.0, %v1971
      %v1973 = vpop.f32.mrf.mxu0
      %v1974 = vpop.f32.mrf.mxu0
      %v1975 = vadd.f32 0.0, %v1974
      %v1976 = vpop.f32.mrf.mxu0
      %1977 = vmatprep.mubr.bf16.mxu0 0
      %1978 = vmatmul.mubr.bf16.gmra.mxu0 %v1817
      %v1979 = vpop.f32.mrf.mxu0
      %v1980 = vadd.f32 0.0, %v1979
      %v1981 = vpop.f32.mrf.mxu0
      %v1982 = vpop.f32.mrf.mxu0
      %v1983 = vadd.f32 0.0, %v1982
      %v1984 = vpop.f32.mrf.mxu0
      %1985 = vmatprep.mubr.bf16.mxu0 0
      %1986 = vmatmul.mubr.bf16.gmra.mxu0 %v1820
      %v1987 = vpop.f32.mrf.mxu0
      %v1988 = vadd.f32 0.0, %v1987
      %v1989 = vpop.f32.mrf.mxu0
      %v1990 = vpop.f32.mrf.mxu0
      %v1991 = vadd.f32 0.0, %v1990
      %v1992 = vpop.f32.mrf.mxu0
      %1993 = vmatprep.mubr.bf16.mxu0 0
      %1994 = vmatmul.mubr.bf16.gmra.mxu0 %v1823
      %v1995 = vpop.f32.mrf.mxu0
      %v1996 = vadd.f32 0.0, %v1995
      %v1997 = vpop.f32.mrf.mxu0
      %v1998 = vpop.f32.mrf.mxu0
      %v1999 = vadd.f32 0.0, %v1998
      %v2000 = vpop.f32.mrf.mxu0
      %2001 = vdwg.mxu0
      %v2002 = vadd.f32 %v1664, %v1860
      %v2003 = vadd.f32 %v1665, %v1863
      %v2004 = vadd.f32 %v1666, %v1868
      %v2005 = vadd.f32 %v1667, %v1871
      %v2006 = vadd.f32 %v1668, %v1876
      %v2007 = vadd.f32 %v1669, %v1879
      %v2008 = vadd.f32 %v1670, %v1884
      %v2009 = vadd.f32 %v1671, %v1887
      %v2010 = vadd.f32 %v1672, %v1892
      %v2011 = vadd.f32 %v1673, %v1895
      %v2012 = vadd.f32 %v1674, %v1900
      %v2013 = vadd.f32 %v1675, %v1903
      %v2014 = vadd.f32 %v1676, %v1908
      %v2015 = vadd.f32 %v1677, %v1911
      %v2016 = vadd.f32 %v1678, %v1916
      %v2017 = vadd.f32 %v1679, %v1919
      %v2018 = vadd.f32 %v1680, %v1924
      %v2019 = vadd.f32 %v1681, %v1927
      %v2020 = vadd.f32 %v1682, %v1932
      %v2021 = vadd.f32 %v1683, %v1935
      %v2022 = vadd.f32 %v1684, %v1940
      %v2023 = vadd.f32 %v1685, %v1943
      %v2024 = vadd.f32 %v1686, %v1948
      %v2025 = vadd.f32 %v1687, %v1951
      %v2026 = vadd.f32 %v1688, %v1956
      %v2027 = vadd.f32 %v1689, %v1959
      %v2028 = vadd.f32 %v1690, %v1964
      %v2029 = vadd.f32 %v1691, %v1967
      %v2030 = vadd.f32 %v1692, %v1972
      %v2031 = vadd.f32 %v1693, %v1975
      %v2032 = vadd.f32 %v1694, %v1980
      %v2033 = vadd.f32 %v1695, %v1983
      %v2034 = vadd.f32 %v1696, %v1988
      %v2035 = vadd.f32 %v1697, %v1991
      %v2036 = vadd.f32 %v1698, %v1996
      %v2037 = vadd.f32 %v1699, %v1999
      %v2038 = vld [vmem:[%s258 + $0x14] sm:$0xff]
      %v2039 = vld [vmem:[%s258 + $0x1c] sm:$0xff]
      %v2040 = vld [vmem:[%s258 + $0x24] sm:$0xff]
      %v2041 = vld [vmem:[%s258 + $0x2c] sm:$0xff]
      %v2042 = vld [vmem:[%s258 + $0x34] sm:$0xff]
      %v2043 = vld [vmem:[%s258 + $0x3c] sm:$0xff]
      %v2044 = vld [vmem:[%s258 + $0x44] sm:$0xff]
      %v2045 = vld [vmem:[%s258 + $0x4c] sm:$0xff]
      %v2046 = vld [vmem:[%s258 + $0x54] sm:$0xff]
      %v2047 = vld [vmem:[%s258 + $0x5c] sm:$0xff]
      %v2048 = vld [vmem:[%s258 + $0x64] sm:$0xff]
      %v2049 = vld [vmem:[%s258 + $0x6c] sm:$0xff]
      %v2050 = vld [vmem:[%s258 + $0x74] sm:$0xff]
      %v2051 = vld [vmem:[%s258 + $0x7c] sm:$0xff]
      %v2052 = vld [vmem:[%s258 + $0x84] sm:$0xff]
      %v2053 = vld [vmem:[%s258 + $0x8c] sm:$0xff]
      %v2054 = vld [vmem:[%s258 + $0x94] sm:$0xff]
      %v2055 = vld [vmem:[%s258 + $0x9c] sm:$0xff]
      %v2056 = vld [vmem:[%s258 + $0xa4] sm:$0xff]
      %v2057 = vld [vmem:[%s258 + $0xac] sm:$0xff]
      %v2058 = vld [vmem:[%s258 + $0xb4] sm:$0xff]
      %v2059 = vld [vmem:[%s258 + $0xbc] sm:$0xff]
      %v2060 = vld [vmem:[%s258 + $0xc4] sm:$0xff]
      %v2061 = vld [vmem:[%s258 + $0xcc] sm:$0xff]
      %v2062 = vld [vmem:[%s258 + $0xd4] sm:$0xff]
      %v2063 = vld [vmem:[%s258 + $0xdc] sm:$0xff]
      %v2064 = vld [vmem:[%s258 + $0xe4] sm:$0xff]
      %v2065 = vld [vmem:[%s258 + $0xec] sm:$0xff]
      %v2066 = vld [vmem:[%s258 + $0xf4] sm:$0xff]
      %v2067 = vld [vmem:[%s258 + $0xfc] sm:$0xff]
      %v2068 = vld [vmem:[%s258 + $0x104] sm:$0xff]
      %v2069 = vld [vmem:[%s258 + $0x10c] sm:$0xff]
      %v2070 = vld [vmem:[%s258 + $0x114] sm:$0xff]
      %v2071 = vld [vmem:[%s258 + $0x11c] sm:$0xff]
      %v2072 = vld [vmem:[%s258 + $0x124] sm:$0xff]
      %v2073 = vld [vmem:[%s258 + $0x12c] sm:$0xff]
      %v2074 = vpack.c.bf16 %v2039, %v2038
      %v2075 = vpack.c.bf16 %v2041, %v2040
      %v2076 = vpack.c.bf16 %v2043, %v2042
      %v2077 = vpack.c.bf16 %v2045, %v2044
      %v2078 = vpack.c.bf16 %v2047, %v2046
      %v2079 = vpack.c.bf16 %v2049, %v2048
      %v2080 = vpack.c.bf16 %v2051, %v2050
      %v2081 = vpack.c.bf16 %v2053, %v2052
      %v2082 = vpack.c.bf16 %v2055, %v2054
      %v2083 = vpack.c.bf16 %v2057, %v2056
      %v2084 = vpack.c.bf16 %v2059, %v2058
      %v2085 = vpack.c.bf16 %v2061, %v2060
      %v2086 = vpack.c.bf16 %v2063, %v2062
      %v2087 = vpack.c.bf16 %v2065, %v2064
      %v2088 = vpack.c.bf16 %v2067, %v2066
      %v2089 = vpack.c.bf16 %v2069, %v2068
      %v2090 = vpack.c.bf16 %v2071, %v2070
      %v2091 = vpack.c.bf16 %v2073, %v2072
      %s2092 = scalar_lea.vmem %s263, 80
      %v2093 = vld [vmem:[%s2092] sm:$0xf]
      %v2094 = vld [vmem:[%s2092 + $0x4] sm:$0xf]
      %v2095 = vld [vmem:[%s2092 + $0x8] sm:$0xf]
      %v2096 = vld [vmem:[%s2092 + $0xc] sm:$0xf]
      %v2101 = vunpack.c.l.b16 %v2093
      %v2102 = vunpack.c.l.b16 %v2094
      %v2103 = vunpack.c.l.b16 %v2095
      %v2104 = vunpack.c.l.b16 %v2096
      %v2105 = vpack.c.b16 %v2102, %v2101
      %v2106 = vpack.c.b16 %v2104, %v2103
      %v2110 = vsel %vm418, %v2074, 0
      %v2113 = vsel %vm418, %v2075, 0
      %v2116 = vsel %vm418, %v2076, 0
      %v2119 = vsel %vm418, %v2077, 0
      %v2122 = vsel %vm418, %v2078, 0
      %v2125 = vsel %vm418, %v2079, 0
      %v2128 = vsel %vm418, %v2080, 0
      %v2131 = vsel %vm418, %v2081, 0
      %v2134 = vsel %vm418, %v2082, 0
      %v2137 = vsel %vm418, %v2083, 0
      %v2140 = vsel %vm418, %v2084, 0
      %v2143 = vsel %vm418, %v2085, 0
      %v2146 = vsel %vm418, %v2086, 0
      %v2149 = vsel %vm418, %v2087, 0
      %v2152 = vsel %vm418, %v2088, 0
      %v2155 = vsel %vm418, %v2089, 0
      %v2158 = vsel %vm418, %v2090, 0
      %v2161 = vsel %vm418, %v2091, 0
      %2163 = vmatprep.subr.bf16.mxu0 0
      %2164 = vmatpush1.bf16.msra.mxu0 0
      %2165 = vmatprep.subr.bf16.mxu0 0
      %2166 = vmatpush1.bf16.msra.mxu0 0
      %2167 = vmatprep.subr.bf16.mxu0 0
      %2168 = vmatpush1.bf16.msra.mxu0 0
      %2169 = vmatprep.subr.bf16.mxu0 0
      %2170 = vmatpush1.bf16.msra.mxu0 0
      %2171 = vmatprep.subr.bf16.mxu0 0
      %2172 = vmatpush1.bf16.msra.mxu0 0
      %2173 = vmatprep.subr.bf16.mxu0 0
      %2174 = vmatpush1.bf16.msra.mxu0 0
      %2175 = vmatprep.subr.bf16.mxu0 0
      %2176 = vmatpush1.bf16.msra.mxu0 %v2106
      %2177 = vmatprep.subr.bf16.mxu0 0
      %2178 = vmatpush1.bf16.msra.mxu0 %v2105
      %2179 = vmatprep.subr.bf16.mxu0 0
      %2180 = vmatpush2.bf16.msra.mxu0 0
      %2181 = vmatprep.subr.bf16.mxu0 0
      %2182 = vmatpush2.bf16.msra.mxu0 0
      %2183 = vmatprep.subr.bf16.mxu0 0
      %2184 = vmatpush2.bf16.msra.mxu0 0
      %2185 = vmatprep.subr.bf16.mxu0 0
      %2186 = vmatpush2.bf16.msra.mxu0 0
      %2187 = vmatprep.subr.bf16.mxu0 0
      %2188 = vmatpush2.bf16.msra.mxu0 0
      %2189 = vmatprep.subr.bf16.mxu0 0
      %2190 = vmatpush2.bf16.msra.mxu0 0
      %2191 = vmatprep.subr.bf16.mxu0 0
      %2192 = vmatpush2.bf16.msra.mxu0 0
      %2193 = vmatprep.subr.bf16.mxu0 0
      %2194 = vmatpush2.bf16.msra.mxu0 0
      %2195 = vmatprep.mubr.bf16.mxu0 0
      %2196 = vmatmul.mubr.bf16.gmra.mxu0 %v2110
      %v2197 = vpop.f32.mrf.mxu0
      %v2198 = vadd.f32 0.0, %v2197
      %v2199 = vpop.f32.mrf.mxu0
      %v2200 = vpop.f32.mrf.mxu0
      %v2201 = vadd.f32 0.0, %v2200
      %v2202 = vpop.f32.mrf.mxu0
      %2203 = vmatprep.mubr.bf16.mxu0 0
      %2204 = vmatmul.mubr.bf16.gmra.mxu0 %v2113
      %v2205 = vpop.f32.mrf.mxu0
      %v2206 = vadd.f32 0.0, %v2205
      %v2207 = vpop.f32.mrf.mxu0
      %v2208 = vpop.f32.mrf.mxu0
      %v2209 = vadd.f32 0.0, %v2208
      %v2210 = vpop.f32.mrf.mxu0
      %2211 = vmatprep.mubr.bf16.mxu0 0
      %2212 = vmatmul.mubr.bf16.gmra.mxu0 %v2116
      %v2213 = vpop.f32.mrf.mxu0
      %v2214 = vadd.f32 0.0, %v2213
      %v2215 = vpop.f32.mrf.mxu0
      %v2216 = vpop.f32.mrf.mxu0
      %v2217 = vadd.f32 0.0, %v2216
      %v2218 = vpop.f32.mrf.mxu0
      %2219 = vmatprep.mubr.bf16.mxu0 0
      %2220 = vmatmul.mubr.bf16.gmra.mxu0 %v2119
      %v2221 = vpop.f32.mrf.mxu0
      %v2222 = vadd.f32 0.0, %v2221
      %v2223 = vpop.f32.mrf.mxu0
      %v2224 = vpop.f32.mrf.mxu0
      %v2225 = vadd.f32 0.0, %v2224
      %v2226 = vpop.f32.mrf.mxu0
      %2227 = vmatprep.mubr.bf16.mxu0 0
      %2228 = vmatmul.mubr.bf16.gmra.mxu0 %v2122
      %v2229 = vpop.f32.mrf.mxu0
      %v2230 = vadd.f32 0.0, %v2229
      %v2231 = vpop.f32.mrf.mxu0
      %v2232 = vpop.f32.mrf.mxu0
      %v2233 = vadd.f32 0.0, %v2232
      %v2234 = vpop.f32.mrf.mxu0
      %2235 = vmatprep.mubr.bf16.mxu0 0
      %2236 = vmatmul.mubr.bf16.gmra.mxu0 %v2125
      %v2237 = vpop.f32.mrf.mxu0
      %v2238 = vadd.f32 0.0, %v2237
      %v2239 = vpop.f32.mrf.mxu0
      %v2240 = vpop.f32.mrf.mxu0
      %v2241 = vadd.f32 0.0, %v2240
      %v2242 = vpop.f32.mrf.mxu0
      %2243 = vmatprep.mubr.bf16.mxu0 0
      %2244 = vmatmul.mubr.bf16.gmra.mxu0 %v2128
      %v2245 = vpop.f32.mrf.mxu0
      %v2246 = vadd.f32 0.0, %v2245
      %v2247 = vpop.f32.mrf.mxu0
      %v2248 = vpop.f32.mrf.mxu0
      %v2249 = vadd.f32 0.0, %v2248
      %v2250 = vpop.f32.mrf.mxu0
      %2251 = vmatprep.mubr.bf16.mxu0 0
      %2252 = vmatmul.mubr.bf16.gmra.mxu0 %v2131
      %v2253 = vpop.f32.mrf.mxu0
      %v2254 = vadd.f32 0.0, %v2253
      %v2255 = vpop.f32.mrf.mxu0
      %v2256 = vpop.f32.mrf.mxu0
      %v2257 = vadd.f32 0.0, %v2256
      %v2258 = vpop.f32.mrf.mxu0
      %2259 = vmatprep.mubr.bf16.mxu0 0
      %2260 = vmatmul.mubr.bf16.gmra.mxu0 %v2134
      %v2261 = vpop.f32.mrf.mxu0
      %v2262 = vadd.f32 0.0, %v2261
      %v2263 = vpop.f32.mrf.mxu0
      %v2264 = vpop.f32.mrf.mxu0
      %v2265 = vadd.f32 0.0, %v2264
      %v2266 = vpop.f32.mrf.mxu0
      %2267 = vmatprep.mubr.bf16.mxu0 0
      %2268 = vmatmul.mubr.bf16.gmra.mxu0 %v2137
      %v2269 = vpop.f32.mrf.mxu0
      %v2270 = vadd.f32 0.0, %v2269
      %v2271 = vpop.f32.mrf.mxu0
      %v2272 = vpop.f32.mrf.mxu0
      %v2273 = vadd.f32 0.0, %v2272
      %v2274 = vpop.f32.mrf.mxu0
      %2275 = vmatprep.mubr.bf16.mxu0 0
      %2276 = vmatmul.mubr.bf16.gmra.mxu0 %v2140
      %v2277 = vpop.f32.mrf.mxu0
      %v2278 = vadd.f32 0.0, %v2277
      %v2279 = vpop.f32.mrf.mxu0
      %v2280 = vpop.f32.mrf.mxu0
      %v2281 = vadd.f32 0.0, %v2280
      %v2282 = vpop.f32.mrf.mxu0
      %2283 = vmatprep.mubr.bf16.mxu0 0
      %2284 = vmatmul.mubr.bf16.gmra.mxu0 %v2143
      %v2285 = vpop.f32.mrf.mxu0
      %v2286 = vadd.f32 0.0, %v2285
      %v2287 = vpop.f32.mrf.mxu0
      %v2288 = vpop.f32.mrf.mxu0
      %v2289 = vadd.f32 0.0, %v2288
      %v2290 = vpop.f32.mrf.mxu0
      %2291 = vmatprep.mubr.bf16.mxu0 0
      %2292 = vmatmul.mubr.bf16.gmra.mxu0 %v2146
      %v2293 = vpop.f32.mrf.mxu0
      %v2294 = vadd.f32 0.0, %v2293
      %v2295 = vpop.f32.mrf.mxu0
      %v2296 = vpop.f32.mrf.mxu0
      %v2297 = vadd.f32 0.0, %v2296
      %v2298 = vpop.f32.mrf.mxu0
      %2299 = vmatprep.mubr.bf16.mxu0 0
      %2300 = vmatmul.mubr.bf16.gmra.mxu0 %v2149
      %v2301 = vpop.f32.mrf.mxu0
      %v2302 = vadd.f32 0.0, %v2301
      %v2303 = vpop.f32.mrf.mxu0
      %v2304 = vpop.f32.mrf.mxu0
      %v2305 = vadd.f32 0.0, %v2304
      %v2306 = vpop.f32.mrf.mxu0
      %2307 = vmatprep.mubr.bf16.mxu0 0
      %2308 = vmatmul.mubr.bf16.gmra.mxu0 %v2152
      %v2309 = vpop.f32.mrf.mxu0
      %v2310 = vadd.f32 0.0, %v2309
      %v2311 = vpop.f32.mrf.mxu0
      %v2312 = vpop.f32.mrf.mxu0
      %v2313 = vadd.f32 0.0, %v2312
      %v2314 = vpop.f32.mrf.mxu0
      %2315 = vmatprep.mubr.bf16.mxu0 0
      %2316 = vmatmul.mubr.bf16.gmra.mxu0 %v2155
      %v2317 = vpop.f32.mrf.mxu0
      %v2318 = vadd.f32 0.0, %v2317
      %v2319 = vpop.f32.mrf.mxu0
      %v2320 = vpop.f32.mrf.mxu0
      %v2321 = vadd.f32 0.0, %v2320
      %v2322 = vpop.f32.mrf.mxu0
      %2323 = vmatprep.mubr.bf16.mxu0 0
      %2324 = vmatmul.mubr.bf16.gmra.mxu0 %v2158
      %v2325 = vpop.f32.mrf.mxu0
      %v2326 = vadd.f32 0.0, %v2325
      %v2327 = vpop.f32.mrf.mxu0
      %v2328 = vpop.f32.mrf.mxu0
      %v2329 = vadd.f32 0.0, %v2328
      %v2330 = vpop.f32.mrf.mxu0
      %2331 = vmatprep.mubr.bf16.mxu0 0
      %2332 = vmatmul.mubr.bf16.gmra.mxu0 %v2161
      %v2333 = vpop.f32.mrf.mxu0
      %v2334 = vadd.f32 0.0, %v2333
      %v2335 = vpop.f32.mrf.mxu0
      %v2336 = vpop.f32.mrf.mxu0
      %v2337 = vadd.f32 0.0, %v2336
      %v2338 = vpop.f32.mrf.mxu0
      %2339 = vdwg.mxu0
      %v2340 = vadd.f32 %v2002, %v2198
      %v2341 = vadd.f32 %v2003, %v2201
      %v2342 = vadd.f32 %v2004, %v2206
      %v2343 = vadd.f32 %v2005, %v2209
      %v2344 = vadd.f32 %v2006, %v2214
      %v2345 = vadd.f32 %v2007, %v2217
      %v2346 = vadd.f32 %v2008, %v2222
      %v2347 = vadd.f32 %v2009, %v2225
      %v2348 = vadd.f32 %v2010, %v2230
      %v2349 = vadd.f32 %v2011, %v2233
      %v2350 = vadd.f32 %v2012, %v2238
      %v2351 = vadd.f32 %v2013, %v2241
      %v2352 = vadd.f32 %v2014, %v2246
      %v2353 = vadd.f32 %v2015, %v2249
      %v2354 = vadd.f32 %v2016, %v2254
      %v2355 = vadd.f32 %v2017, %v2257
      %v2356 = vadd.f32 %v2018, %v2262
      %v2357 = vadd.f32 %v2019, %v2265
      %v2358 = vadd.f32 %v2020, %v2270
      %v2359 = vadd.f32 %v2021, %v2273
      %v2360 = vadd.f32 %v2022, %v2278
      %v2361 = vadd.f32 %v2023, %v2281
      %v2362 = vadd.f32 %v2024, %v2286
      %v2363 = vadd.f32 %v2025, %v2289
      %v2364 = vadd.f32 %v2026, %v2294
      %v2365 = vadd.f32 %v2027, %v2297
      %v2366 = vadd.f32 %v2028, %v2302
      %v2367 = vadd.f32 %v2029, %v2305
      %v2368 = vadd.f32 %v2030, %v2310
      %v2369 = vadd.f32 %v2031, %v2313
      %v2370 = vadd.f32 %v2032, %v2318
      %v2371 = vadd.f32 %v2033, %v2321
      %v2372 = vadd.f32 %v2034, %v2326
      %v2373 = vadd.f32 %v2035, %v2329
      %v2374 = vadd.f32 %v2036, %v2334
      %v2375 = vadd.f32 %v2037, %v2337
      %v2376 = vld [vmem:[%s258 + $0x24] sm:$0xff]
      %v2377 = vld [vmem:[%s258 + $0x2c] sm:$0xff]
      %v2378 = vld [vmem:[%s258 + $0x34] sm:$0xff]
      %v2379 = vld [vmem:[%s258 + $0x3c] sm:$0xff]
      %v2380 = vld [vmem:[%s258 + $0x44] sm:$0xff]
      %v2381 = vld [vmem:[%s258 + $0x4c] sm:$0xff]
      %v2382 = vld [vmem:[%s258 + $0x54] sm:$0xff]
      %v2383 = vld [vmem:[%s258 + $0x5c] sm:$0xff]
      %v2384 = vld [vmem:[%s258 + $0x64] sm:$0xff]
      %v2385 = vld [vmem:[%s258 + $0x6c] sm:$0xff]
      %v2386 = vld [vmem:[%s258 + $0x74] sm:$0xff]
      %v2387 = vld [vmem:[%s258 + $0x7c] sm:$0xff]
      %v2388 = vld [vmem:[%s258 + $0x84] sm:$0xff]
      %v2389 = vld [vmem:[%s258 + $0x8c] sm:$0xff]
      %v2390 = vld [vmem:[%s258 + $0x94] sm:$0xff]
      %v2391 = vld [vmem:[%s258 + $0x9c] sm:$0xff]
      %v2392 = vld [vmem:[%s258 + $0xa4] sm:$0xff]
      %v2393 = vld [vmem:[%s258 + $0xac] sm:$0xff]
      %v2394 = vld [vmem:[%s258 + $0xb4] sm:$0xff]
      %v2395 = vld [vmem:[%s258 + $0xbc] sm:$0xff]
      %v2396 = vld [vmem:[%s258 + $0xc4] sm:$0xff]
      %v2397 = vld [vmem:[%s258 + $0xcc] sm:$0xff]
      %v2398 = vld [vmem:[%s258 + $0xd4] sm:$0xff]
      %v2399 = vld [vmem:[%s258 + $0xdc] sm:$0xff]
      %v2400 = vld [vmem:[%s258 + $0xe4] sm:$0xff]
      %v2401 = vld [vmem:[%s258 + $0xec] sm:$0xff]
      %v2402 = vld [vmem:[%s258 + $0xf4] sm:$0xff]
      %v2403 = vld [vmem:[%s258 + $0xfc] sm:$0xff]
      %v2404 = vld [vmem:[%s258 + $0x104] sm:$0xff]
      %v2405 = vld [vmem:[%s258 + $0x10c] sm:$0xff]
      %v2406 = vld [vmem:[%s258 + $0x114] sm:$0xff]
      %v2407 = vld [vmem:[%s258 + $0x11c] sm:$0xff]
      %v2408 = vld [vmem:[%s258 + $0x124] sm:$0xff]
      %v2409 = vld [vmem:[%s258 + $0x12c] sm:$0xff]
      %v2410 = vld [vmem:[%s258 + $0x134] sm:$0xff]
      %v2411 = vld [vmem:[%s258 + $0x13c] sm:$0xff]
      %v2412 = vpack.c.bf16 %v2377, %v2376
      %v2413 = vpack.c.bf16 %v2379, %v2378
      %v2414 = vpack.c.bf16 %v2381, %v2380
      %v2415 = vpack.c.bf16 %v2383, %v2382
      %v2416 = vpack.c.bf16 %v2385, %v2384
      %v2417 = vpack.c.bf16 %v2387, %v2386
      %v2418 = vpack.c.bf16 %v2389, %v2388
      %v2419 = vpack.c.bf16 %v2391, %v2390
      %v2420 = vpack.c.bf16 %v2393, %v2392
      %v2421 = vpack.c.bf16 %v2395, %v2394
      %v2422 = vpack.c.bf16 %v2397, %v2396
      %v2423 = vpack.c.bf16 %v2399, %v2398
      %v2424 = vpack.c.bf16 %v2401, %v2400
      %v2425 = vpack.c.bf16 %v2403, %v2402
      %v2426 = vpack.c.bf16 %v2405, %v2404
      %v2427 = vpack.c.bf16 %v2407, %v2406
      %v2428 = vpack.c.bf16 %v2409, %v2408
      %v2429 = vpack.c.bf16 %v2411, %v2410
      %s2430 = scalar_lea.vmem %s263, 96
      %v2431 = vld [vmem:[%s2430] sm:$0xf]
      %v2432 = vld [vmem:[%s2430 + $0x4] sm:$0xf]
      %v2433 = vld [vmem:[%s2430 + $0x8] sm:$0xf]
      %v2434 = vld [vmem:[%s2430 + $0xc] sm:$0xf]
      %v2439 = vunpack.c.l.b16 %v2431
      %v2440 = vunpack.c.l.b16 %v2432
      %v2441 = vunpack.c.l.b16 %v2433
      %v2442 = vunpack.c.l.b16 %v2434
      %v2443 = vpack.c.b16 %v2440, %v2439
      %v2444 = vpack.c.b16 %v2442, %v2441
      %v2448 = vsel %vm418, %v2412, 0
      %v2451 = vsel %vm418, %v2413, 0
      %v2454 = vsel %vm418, %v2414, 0
      %v2457 = vsel %vm418, %v2415, 0
      %v2460 = vsel %vm418, %v2416, 0
      %v2463 = vsel %vm418, %v2417, 0
      %v2466 = vsel %vm418, %v2418, 0
      %v2469 = vsel %vm418, %v2419, 0
      %v2472 = vsel %vm418, %v2420, 0
      %v2475 = vsel %vm418, %v2421, 0
      %v2478 = vsel %vm418, %v2422, 0
      %v2481 = vsel %vm418, %v2423, 0
      %v2484 = vsel %vm418, %v2424, 0
      %v2487 = vsel %vm418, %v2425, 0
      %v2490 = vsel %vm418, %v2426, 0
      %v2493 = vsel %vm418, %v2427, 0
      %v2496 = vsel %vm418, %v2428, 0
      %v2499 = vsel %vm418, %v2429, 0
      %2501 = vmatprep.subr.bf16.mxu0 0
      %2502 = vmatpush1.bf16.msra.mxu0 0
      %2503 = vmatprep.subr.bf16.mxu0 0
      %2504 = vmatpush1.bf16.msra.mxu0 0
      %2505 = vmatprep.subr.bf16.mxu0 0
      %2506 = vmatpush1.bf16.msra.mxu0 0
      %2507 = vmatprep.subr.bf16.mxu0 0
      %2508 = vmatpush1.bf16.msra.mxu0 0
      %2509 = vmatprep.subr.bf16.mxu0 0
      %2510 = vmatpush1.bf16.msra.mxu0 0
      %2511 = vmatprep.subr.bf16.mxu0 0
      %2512 = vmatpush1.bf16.msra.mxu0 0
      %2513 = vmatprep.subr.bf16.mxu0 0
      %2514 = vmatpush1.bf16.msra.mxu0 %v2444
      %2515 = vmatprep.subr.bf16.mxu0 0
      %2516 = vmatpush1.bf16.msra.mxu0 %v2443
      %2517 = vmatprep.subr.bf16.mxu0 0
      %2518 = vmatpush2.bf16.msra.mxu0 0
      %2519 = vmatprep.subr.bf16.mxu0 0
      %2520 = vmatpush2.bf16.msra.mxu0 0
      %2521 = vmatprep.subr.bf16.mxu0 0
      %2522 = vmatpush2.bf16.msra.mxu0 0
      %2523 = vmatprep.subr.bf16.mxu0 0
      %2524 = vmatpush2.bf16.msra.mxu0 0
      %2525 = vmatprep.subr.bf16.mxu0 0
      %2526 = vmatpush2.bf16.msra.mxu0 0
      %2527 = vmatprep.subr.bf16.mxu0 0
      %2528 = vmatpush2.bf16.msra.mxu0 0
      %2529 = vmatprep.subr.bf16.mxu0 0
      %2530 = vmatpush2.bf16.msra.mxu0 0
      %2531 = vmatprep.subr.bf16.mxu0 0
      %2532 = vmatpush2.bf16.msra.mxu0 0
      %2533 = vmatprep.mubr.bf16.mxu0 0
      %2534 = vmatmul.mubr.bf16.gmra.mxu0 %v2448
      %v2535 = vpop.f32.mrf.mxu0
      %v2536 = vadd.f32 0.0, %v2535
      %v2537 = vpop.f32.mrf.mxu0
      %v2538 = vpop.f32.mrf.mxu0
      %v2539 = vadd.f32 0.0, %v2538
      %v2540 = vpop.f32.mrf.mxu0
      %2541 = vmatprep.mubr.bf16.mxu0 0
      %2542 = vmatmul.mubr.bf16.gmra.mxu0 %v2451
      %v2543 = vpop.f32.mrf.mxu0
      %v2544 = vadd.f32 0.0, %v2543
      %v2545 = vpop.f32.mrf.mxu0
      %v2546 = vpop.f32.mrf.mxu0
      %v2547 = vadd.f32 0.0, %v2546
      %v2548 = vpop.f32.mrf.mxu0
      %2549 = vmatprep.mubr.bf16.mxu0 0
      %2550 = vmatmul.mubr.bf16.gmra.mxu0 %v2454
      %v2551 = vpop.f32.mrf.mxu0
      %v2552 = vadd.f32 0.0, %v2551
      %v2553 = vpop.f32.mrf.mxu0
      %v2554 = vpop.f32.mrf.mxu0
      %v2555 = vadd.f32 0.0, %v2554
      %v2556 = vpop.f32.mrf.mxu0
      %2557 = vmatprep.mubr.bf16.mxu0 0
      %2558 = vmatmul.mubr.bf16.gmra.mxu0 %v2457
      %v2559 = vpop.f32.mrf.mxu0
      %v2560 = vadd.f32 0.0, %v2559
      %v2561 = vpop.f32.mrf.mxu0
      %v2562 = vpop.f32.mrf.mxu0
      %v2563 = vadd.f32 0.0, %v2562
      %v2564 = vpop.f32.mrf.mxu0
      %2565 = vmatprep.mubr.bf16.mxu0 0
      %2566 = vmatmul.mubr.bf16.gmra.mxu0 %v2460
      %v2567 = vpop.f32.mrf.mxu0
      %v2568 = vadd.f32 0.0, %v2567
      %v2569 = vpop.f32.mrf.mxu0
      %v2570 = vpop.f32.mrf.mxu0
      %v2571 = vadd.f32 0.0, %v2570
      %v2572 = vpop.f32.mrf.mxu0
      %2573 = vmatprep.mubr.bf16.mxu0 0
      %2574 = vmatmul.mubr.bf16.gmra.mxu0 %v2463
      %v2575 = vpop.f32.mrf.mxu0
      %v2576 = vadd.f32 0.0, %v2575
      %v2577 = vpop.f32.mrf.mxu0
      %v2578 = vpop.f32.mrf.mxu0
      %v2579 = vadd.f32 0.0, %v2578
      %v2580 = vpop.f32.mrf.mxu0
      %2581 = vmatprep.mubr.bf16.mxu0 0
      %2582 = vmatmul.mubr.bf16.gmra.mxu0 %v2466
      %v2583 = vpop.f32.mrf.mxu0
      %v2584 = vadd.f32 0.0, %v2583
      %v2585 = vpop.f32.mrf.mxu0
      %v2586 = vpop.f32.mrf.mxu0
      %v2587 = vadd.f32 0.0, %v2586
      %v2588 = vpop.f32.mrf.mxu0
      %2589 = vmatprep.mubr.bf16.mxu0 0
      %2590 = vmatmul.mubr.bf16.gmra.mxu0 %v2469
      %v2591 = vpop.f32.mrf.mxu0
      %v2592 = vadd.f32 0.0, %v2591
      %v2593 = vpop.f32.mrf.mxu0
      %v2594 = vpop.f32.mrf.mxu0
      %v2595 = vadd.f32 0.0, %v2594
      %v2596 = vpop.f32.mrf.mxu0
      %2597 = vmatprep.mubr.bf16.mxu0 0
      %2598 = vmatmul.mubr.bf16.gmra.mxu0 %v2472
      %v2599 = vpop.f32.mrf.mxu0
      %v2600 = vadd.f32 0.0, %v2599
      %v2601 = vpop.f32.mrf.mxu0
      %v2602 = vpop.f32.mrf.mxu0
      %v2603 = vadd.f32 0.0, %v2602
      %v2604 = vpop.f32.mrf.mxu0
      %2605 = vmatprep.mubr.bf16.mxu0 0
      %2606 = vmatmul.mubr.bf16.gmra.mxu0 %v2475
      %v2607 = vpop.f32.mrf.mxu0
      %v2608 = vadd.f32 0.0, %v2607
      %v2609 = vpop.f32.mrf.mxu0
      %v2610 = vpop.f32.mrf.mxu0
      %v2611 = vadd.f32 0.0, %v2610
      %v2612 = vpop.f32.mrf.mxu0
      %2613 = vmatprep.mubr.bf16.mxu0 0
      %2614 = vmatmul.mubr.bf16.gmra.mxu0 %v2478
      %v2615 = vpop.f32.mrf.mxu0
      %v2616 = vadd.f32 0.0, %v2615
      %v2617 = vpop.f32.mrf.mxu0
      %v2618 = vpop.f32.mrf.mxu0
      %v2619 = vadd.f32 0.0, %v2618
      %v2620 = vpop.f32.mrf.mxu0
      %2621 = vmatprep.mubr.bf16.mxu0 0
      %2622 = vmatmul.mubr.bf16.gmra.mxu0 %v2481
      %v2623 = vpop.f32.mrf.mxu0
      %v2624 = vadd.f32 0.0, %v2623
      %v2625 = vpop.f32.mrf.mxu0
      %v2626 = vpop.f32.mrf.mxu0
      %v2627 = vadd.f32 0.0, %v2626
      %v2628 = vpop.f32.mrf.mxu0
      %2629 = vmatprep.mubr.bf16.mxu0 0
      %2630 = vmatmul.mubr.bf16.gmra.mxu0 %v2484
      %v2631 = vpop.f32.mrf.mxu0
      %v2632 = vadd.f32 0.0, %v2631
      %v2633 = vpop.f32.mrf.mxu0
      %v2634 = vpop.f32.mrf.mxu0
      %v2635 = vadd.f32 0.0, %v2634
      %v2636 = vpop.f32.mrf.mxu0
      %2637 = vmatprep.mubr.bf16.mxu0 0
      %2638 = vmatmul.mubr.bf16.gmra.mxu0 %v2487
      %v2639 = vpop.f32.mrf.mxu0
      %v2640 = vadd.f32 0.0, %v2639
      %v2641 = vpop.f32.mrf.mxu0
      %v2642 = vpop.f32.mrf.mxu0
      %v2643 = vadd.f32 0.0, %v2642
      %v2644 = vpop.f32.mrf.mxu0
      %2645 = vmatprep.mubr.bf16.mxu0 0
      %2646 = vmatmul.mubr.bf16.gmra.mxu0 %v2490
      %v2647 = vpop.f32.mrf.mxu0
      %v2648 = vadd.f32 0.0, %v2647
      %v2649 = vpop.f32.mrf.mxu0
      %v2650 = vpop.f32.mrf.mxu0
      %v2651 = vadd.f32 0.0, %v2650
      %v2652 = vpop.f32.mrf.mxu0
      %2653 = vmatprep.mubr.bf16.mxu0 0
      %2654 = vmatmul.mubr.bf16.gmra.mxu0 %v2493
      %v2655 = vpop.f32.mrf.mxu0
      %v2656 = vadd.f32 0.0, %v2655
      %v2657 = vpop.f32.mrf.mxu0
      %v2658 = vpop.f32.mrf.mxu0
      %v2659 = vadd.f32 0.0, %v2658
      %v2660 = vpop.f32.mrf.mxu0
      %2661 = vmatprep.mubr.bf16.mxu0 0
      %2662 = vmatmul.mubr.bf16.gmra.mxu0 %v2496
      %v2663 = vpop.f32.mrf.mxu0
      %v2664 = vadd.f32 0.0, %v2663
      %v2665 = vpop.f32.mrf.mxu0
      %v2666 = vpop.f32.mrf.mxu0
      %v2667 = vadd.f32 0.0, %v2666
      %v2668 = vpop.f32.mrf.mxu0
      %2669 = vmatprep.mubr.bf16.mxu0 0
      %2670 = vmatmul.mubr.bf16.gmra.mxu0 %v2499
      %v2671 = vpop.f32.mrf.mxu0
      %v2672 = vadd.f32 0.0, %v2671
      %v2673 = vpop.f32.mrf.mxu0
      %v2674 = vpop.f32.mrf.mxu0
      %v2675 = vadd.f32 0.0, %v2674
      %v2676 = vpop.f32.mrf.mxu0
      %2677 = vdwg.mxu0
      %v2678 = vadd.f32 %v2340, %v2536
      %v2679 = vadd.f32 %v2341, %v2539
      %v2680 = vadd.f32 %v2342, %v2544
      %v2681 = vadd.f32 %v2343, %v2547
      %v2682 = vadd.f32 %v2344, %v2552
      %v2683 = vadd.f32 %v2345, %v2555
      %v2684 = vadd.f32 %v2346, %v2560
      %v2685 = vadd.f32 %v2347, %v2563
      %v2686 = vadd.f32 %v2348, %v2568
      %v2687 = vadd.f32 %v2349, %v2571
      %v2688 = vadd.f32 %v2350, %v2576
      %v2689 = vadd.f32 %v2351, %v2579
      %v2690 = vadd.f32 %v2352, %v2584
      %v2691 = vadd.f32 %v2353, %v2587
      %v2692 = vadd.f32 %v2354, %v2592
      %v2693 = vadd.f32 %v2355, %v2595
      %v2694 = vadd.f32 %v2356, %v2600
      %v2695 = vadd.f32 %v2357, %v2603
      %v2696 = vadd.f32 %v2358, %v2608
      %v2697 = vadd.f32 %v2359, %v2611
      %v2698 = vadd.f32 %v2360, %v2616
      %v2699 = vadd.f32 %v2361, %v2619
      %v2700 = vadd.f32 %v2362, %v2624
      %v2701 = vadd.f32 %v2363, %v2627
      %v2702 = vadd.f32 %v2364, %v2632
      %v2703 = vadd.f32 %v2365, %v2635
      %v2704 = vadd.f32 %v2366, %v2640
      %v2705 = vadd.f32 %v2367, %v2643
      %v2706 = vadd.f32 %v2368, %v2648
      %v2707 = vadd.f32 %v2369, %v2651
      %v2708 = vadd.f32 %v2370, %v2656
      %v2709 = vadd.f32 %v2371, %v2659
      %v2710 = vadd.f32 %v2372, %v2664
      %v2711 = vadd.f32 %v2373, %v2667
      %v2712 = vadd.f32 %v2374, %v2672
      %v2713 = vadd.f32 %v2375, %v2675
      %v2714 = vld [vmem:[%s258 + $0x25] sm:$0xff]
      %v2715 = vld [vmem:[%s258 + $0x2d] sm:$0xff]
      %v2716 = vld [vmem:[%s258 + $0x35] sm:$0xff]
      %v2717 = vld [vmem:[%s258 + $0x3d] sm:$0xff]
      %v2718 = vld [vmem:[%s258 + $0x45] sm:$0xff]
      %v2719 = vld [vmem:[%s258 + $0x4d] sm:$0xff]
      %v2720 = vld [vmem:[%s258 + $0x55] sm:$0xff]
      %v2721 = vld [vmem:[%s258 + $0x5d] sm:$0xff]
      %v2722 = vld [vmem:[%s258 + $0x65] sm:$0xff]
      %v2723 = vld [vmem:[%s258 + $0x6d] sm:$0xff]
      %v2724 = vld [vmem:[%s258 + $0x75] sm:$0xff]
      %v2725 = vld [vmem:[%s258 + $0x7d] sm:$0xff]
      %v2726 = vld [vmem:[%s258 + $0x85] sm:$0xff]
      %v2727 = vld [vmem:[%s258 + $0x8d] sm:$0xff]
      %v2728 = vld [vmem:[%s258 + $0x95] sm:$0xff]
      %v2729 = vld [vmem:[%s258 + $0x9d] sm:$0xff]
      %v2730 = vld [vmem:[%s258 + $0xa5] sm:$0xff]
      %v2731 = vld [vmem:[%s258 + $0xad] sm:$0xff]
      %v2732 = vld [vmem:[%s258 + $0xb5] sm:$0xff]
      %v2733 = vld [vmem:[%s258 + $0xbd] sm:$0xff]
      %v2734 = vld [vmem:[%s258 + $0xc5] sm:$0xff]
      %v2735 = vld [vmem:[%s258 + $0xcd] sm:$0xff]
      %v2736 = vld [vmem:[%s258 + $0xd5] sm:$0xff]
      %v2737 = vld [vmem:[%s258 + $0xdd] sm:$0xff]
      %v2738 = vld [vmem:[%s258 + $0xe5] sm:$0xff]
      %v2739 = vld [vmem:[%s258 + $0xed] sm:$0xff]
      %v2740 = vld [vmem:[%s258 + $0xf5] sm:$0xff]
      %v2741 = vld [vmem:[%s258 + $0xfd] sm:$0xff]
      %v2742 = vld [vmem:[%s258 + $0x105] sm:$0xff]
      %v2743 = vld [vmem:[%s258 + $0x10d] sm:$0xff]
      %v2744 = vld [vmem:[%s258 + $0x115] sm:$0xff]
      %v2745 = vld [vmem:[%s258 + $0x11d] sm:$0xff]
      %v2746 = vld [vmem:[%s258 + $0x125] sm:$0xff]
      %v2747 = vld [vmem:[%s258 + $0x12d] sm:$0xff]
      %v2748 = vld [vmem:[%s258 + $0x135] sm:$0xff]
      %v2749 = vld [vmem:[%s258 + $0x13d] sm:$0xff]
      %v2750 = vpack.c.bf16 %v2715, %v2714
      %v2751 = vpack.c.bf16 %v2717, %v2716
      %v2752 = vpack.c.bf16 %v2719, %v2718
      %v2753 = vpack.c.bf16 %v2721, %v2720
      %v2754 = vpack.c.bf16 %v2723, %v2722
      %v2755 = vpack.c.bf16 %v2725, %v2724
      %v2756 = vpack.c.bf16 %v2727, %v2726
      %v2757 = vpack.c.bf16 %v2729, %v2728
      %v2758 = vpack.c.bf16 %v2731, %v2730
      %v2759 = vpack.c.bf16 %v2733, %v2732
      %v2760 = vpack.c.bf16 %v2735, %v2734
      %v2761 = vpack.c.bf16 %v2737, %v2736
      %v2762 = vpack.c.bf16 %v2739, %v2738
      %v2763 = vpack.c.bf16 %v2741, %v2740
      %v2764 = vpack.c.bf16 %v2743, %v2742
      %v2765 = vpack.c.bf16 %v2745, %v2744
      %v2766 = vpack.c.bf16 %v2747, %v2746
      %v2767 = vpack.c.bf16 %v2749, %v2748
      %s2768 = scalar_lea.vmem %s263, 112
      %v2769 = vld [vmem:[%s2768] sm:$0xf]
      %v2770 = vld [vmem:[%s2768 + $0x4] sm:$0xf]
      %v2771 = vld [vmem:[%s2768 + $0x8] sm:$0xf]
      %v2772 = vld [vmem:[%s2768 + $0xc] sm:$0xf]
      %v2777 = vunpack.c.l.b16 %v2769
      %v2778 = vunpack.c.l.b16 %v2770
      %v2779 = vunpack.c.l.b16 %v2771
      %v2780 = vunpack.c.l.b16 %v2772
      %v2781 = vpack.c.b16 %v2778, %v2777
      %v2782 = vpack.c.b16 %v2780, %v2779
      %v2786 = vsel %vm418, %v2750, 0
      %v2789 = vsel %vm418, %v2751, 0
      %v2792 = vsel %vm418, %v2752, 0
      %v2795 = vsel %vm418, %v2753, 0
      %v2798 = vsel %vm418, %v2754, 0
      %v2801 = vsel %vm418, %v2755, 0
      %v2804 = vsel %vm418, %v2756, 0
      %v2807 = vsel %vm418, %v2757, 0
      %v2810 = vsel %vm418, %v2758, 0
      %v2813 = vsel %vm418, %v2759, 0
      %v2816 = vsel %vm418, %v2760, 0
      %v2819 = vsel %vm418, %v2761, 0
      %v2822 = vsel %vm418, %v2762, 0
      %v2825 = vsel %vm418, %v2763, 0
      %v2828 = vsel %vm418, %v2764, 0
      %v2831 = vsel %vm418, %v2765, 0
      %v2834 = vsel %vm418, %v2766, 0
      %v2837 = vsel %vm418, %v2767, 0
      %2839 = vmatprep.subr.bf16.mxu0 0
      %2840 = vmatpush1.bf16.msra.mxu0 0
      %2841 = vmatprep.subr.bf16.mxu0 0
      %2842 = vmatpush1.bf16.msra.mxu0 0
      %2843 = vmatprep.subr.bf16.mxu0 0
      %2844 = vmatpush1.bf16.msra.mxu0 0
      %2845 = vmatprep.subr.bf16.mxu0 0
      %2846 = vmatpush1.bf16.msra.mxu0 0
      %2847 = vmatprep.subr.bf16.mxu0 0
      %2848 = vmatpush1.bf16.msra.mxu0 0
      %2849 = vmatprep.subr.bf16.mxu0 0
      %2850 = vmatpush1.bf16.msra.mxu0 0
      %2851 = vmatprep.subr.bf16.mxu0 0
      %2852 = vmatpush1.bf16.msra.mxu0 %v2782
      %2853 = vmatprep.subr.bf16.mxu0 0
      %2854 = vmatpush1.bf16.msra.mxu0 %v2781
      %2855 = vmatprep.subr.bf16.mxu0 0
      %2856 = vmatpush2.bf16.msra.mxu0 0
      %2857 = vmatprep.subr.bf16.mxu0 0
      %2858 = vmatpush2.bf16.msra.mxu0 0
      %2859 = vmatprep.subr.bf16.mxu0 0
      %2860 = vmatpush2.bf16.msra.mxu0 0
      %2861 = vmatprep.subr.bf16.mxu0 0
      %2862 = vmatpush2.bf16.msra.mxu0 0
      %2863 = vmatprep.subr.bf16.mxu0 0
      %2864 = vmatpush2.bf16.msra.mxu0 0
      %2865 = vmatprep.subr.bf16.mxu0 0
      %2866 = vmatpush2.bf16.msra.mxu0 0
      %2867 = vmatprep.subr.bf16.mxu0 0
      %2868 = vmatpush2.bf16.msra.mxu0 0
      %2869 = vmatprep.subr.bf16.mxu0 0
      %2870 = vmatpush2.bf16.msra.mxu0 0
      %2871 = vmatprep.mubr.bf16.mxu0 0
      %2872 = vmatmul.mubr.bf16.gmra.mxu0 %v2786
      %v2873 = vpop.f32.mrf.mxu0
      %v2874 = vadd.f32 0.0, %v2873
      %v2875 = vpop.f32.mrf.mxu0
      %v2876 = vpop.f32.mrf.mxu0
      %v2877 = vadd.f32 0.0, %v2876
      %v2878 = vpop.f32.mrf.mxu0
      %2879 = vmatprep.mubr.bf16.mxu0 0
      %2880 = vmatmul.mubr.bf16.gmra.mxu0 %v2789
      %v2881 = vpop.f32.mrf.mxu0
      %v2882 = vadd.f32 0.0, %v2881
      %v2883 = vpop.f32.mrf.mxu0
      %v2884 = vpop.f32.mrf.mxu0
      %v2885 = vadd.f32 0.0, %v2884
      %v2886 = vpop.f32.mrf.mxu0
      %2887 = vmatprep.mubr.bf16.mxu0 0
      %2888 = vmatmul.mubr.bf16.gmra.mxu0 %v2792
      %v2889 = vpop.f32.mrf.mxu0
      %v2890 = vadd.f32 0.0, %v2889
      %v2891 = vpop.f32.mrf.mxu0
      %v2892 = vpop.f32.mrf.mxu0
      %v2893 = vadd.f32 0.0, %v2892
      %v2894 = vpop.f32.mrf.mxu0
      %2895 = vmatprep.mubr.bf16.mxu0 0
      %2896 = vmatmul.mubr.bf16.gmra.mxu0 %v2795
      %v2897 = vpop.f32.mrf.mxu0
      %v2898 = vadd.f32 0.0, %v2897
      %v2899 = vpop.f32.mrf.mxu0
      %v2900 = vpop.f32.mrf.mxu0
      %v2901 = vadd.f32 0.0, %v2900
      %v2902 = vpop.f32.mrf.mxu0
      %2903 = vmatprep.mubr.bf16.mxu0 0
      %2904 = vmatmul.mubr.bf16.gmra.mxu0 %v2798
      %v2905 = vpop.f32.mrf.mxu0
      %v2906 = vadd.f32 0.0, %v2905
      %v2907 = vpop.f32.mrf.mxu0
      %v2908 = vpop.f32.mrf.mxu0
      %v2909 = vadd.f32 0.0, %v2908
      %v2910 = vpop.f32.mrf.mxu0
      %2911 = vmatprep.mubr.bf16.mxu0 0
      %2912 = vmatmul.mubr.bf16.gmra.mxu0 %v2801
      %v2913 = vpop.f32.mrf.mxu0
      %v2914 = vadd.f32 0.0, %v2913
      %v2915 = vpop.f32.mrf.mxu0
      %v2916 = vpop.f32.mrf.mxu0
      %v2917 = vadd.f32 0.0, %v2916
      %v2918 = vpop.f32.mrf.mxu0
      %2919 = vmatprep.mubr.bf16.mxu0 0
      %2920 = vmatmul.mubr.bf16.gmra.mxu0 %v2804
      %v2921 = vpop.f32.mrf.mxu0
      %v2922 = vadd.f32 0.0, %v2921
      %v2923 = vpop.f32.mrf.mxu0
      %v2924 = vpop.f32.mrf.mxu0
      %v2925 = vadd.f32 0.0, %v2924
      %v2926 = vpop.f32.mrf.mxu0
      %2927 = vmatprep.mubr.bf16.mxu0 0
      %2928 = vmatmul.mubr.bf16.gmra.mxu0 %v2807
      %v2929 = vpop.f32.mrf.mxu0
      %v2930 = vadd.f32 0.0, %v2929
      %v2931 = vpop.f32.mrf.mxu0
      %v2932 = vpop.f32.mrf.mxu0
      %v2933 = vadd.f32 0.0, %v2932
      %v2934 = vpop.f32.mrf.mxu0
      %2935 = vmatprep.mubr.bf16.mxu0 0
      %2936 = vmatmul.mubr.bf16.gmra.mxu0 %v2810
      %v2937 = vpop.f32.mrf.mxu0
      %v2938 = vadd.f32 0.0, %v2937
      %v2939 = vpop.f32.mrf.mxu0
      %v2940 = vpop.f32.mrf.mxu0
      %v2941 = vadd.f32 0.0, %v2940
      %v2942 = vpop.f32.mrf.mxu0
      %2943 = vmatprep.mubr.bf16.mxu0 0
      %2944 = vmatmul.mubr.bf16.gmra.mxu0 %v2813
      %v2945 = vpop.f32.mrf.mxu0
      %v2946 = vadd.f32 0.0, %v2945
      %v2947 = vpop.f32.mrf.mxu0
      %v2948 = vpop.f32.mrf.mxu0
      %v2949 = vadd.f32 0.0, %v2948
      %v2950 = vpop.f32.mrf.mxu0
      %2951 = vmatprep.mubr.bf16.mxu0 0
      %2952 = vmatmul.mubr.bf16.gmra.mxu0 %v2816
      %v2953 = vpop.f32.mrf.mxu0
      %v2954 = vadd.f32 0.0, %v2953
      %v2955 = vpop.f32.mrf.mxu0
      %v2956 = vpop.f32.mrf.mxu0
      %v2957 = vadd.f32 0.0, %v2956
      %v2958 = vpop.f32.mrf.mxu0
      %2959 = vmatprep.mubr.bf16.mxu0 0
      %2960 = vmatmul.mubr.bf16.gmra.mxu0 %v2819
      %v2961 = vpop.f32.mrf.mxu0
      %v2962 = vadd.f32 0.0, %v2961
      %v2963 = vpop.f32.mrf.mxu0
      %v2964 = vpop.f32.mrf.mxu0
      %v2965 = vadd.f32 0.0, %v2964
      %v2966 = vpop.f32.mrf.mxu0
      %2967 = vmatprep.mubr.bf16.mxu0 0
      %2968 = vmatmul.mubr.bf16.gmra.mxu0 %v2822
      %v2969 = vpop.f32.mrf.mxu0
      %v2970 = vadd.f32 0.0, %v2969
      %v2971 = vpop.f32.mrf.mxu0
      %v2972 = vpop.f32.mrf.mxu0
      %v2973 = vadd.f32 0.0, %v2972
      %v2974 = vpop.f32.mrf.mxu0
      %2975 = vmatprep.mubr.bf16.mxu0 0
      %2976 = vmatmul.mubr.bf16.gmra.mxu0 %v2825
      %v2977 = vpop.f32.mrf.mxu0
      %v2978 = vadd.f32 0.0, %v2977
      %v2979 = vpop.f32.mrf.mxu0
      %v2980 = vpop.f32.mrf.mxu0
      %v2981 = vadd.f32 0.0, %v2980
      %v2982 = vpop.f32.mrf.mxu0
      %2983 = vmatprep.mubr.bf16.mxu0 0
      %2984 = vmatmul.mubr.bf16.gmra.mxu0 %v2828
      %v2985 = vpop.f32.mrf.mxu0
      %v2986 = vadd.f32 0.0, %v2985
      %v2987 = vpop.f32.mrf.mxu0
      %v2988 = vpop.f32.mrf.mxu0
      %v2989 = vadd.f32 0.0, %v2988
      %v2990 = vpop.f32.mrf.mxu0
      %2991 = vmatprep.mubr.bf16.mxu0 0
      %2992 = vmatmul.mubr.bf16.gmra.mxu0 %v2831
      %v2993 = vpop.f32.mrf.mxu0
      %v2994 = vadd.f32 0.0, %v2993
      %v2995 = vpop.f32.mrf.mxu0
      %v2996 = vpop.f32.mrf.mxu0
      %v2997 = vadd.f32 0.0, %v2996
      %v2998 = vpop.f32.mrf.mxu0
      %2999 = vmatprep.mubr.bf16.mxu0 0
      %3000 = vmatmul.mubr.bf16.gmra.mxu0 %v2834
      %v3001 = vpop.f32.mrf.mxu0
      %v3002 = vadd.f32 0.0, %v3001
      %v3003 = vpop.f32.mrf.mxu0
      %v3004 = vpop.f32.mrf.mxu0
      %v3005 = vadd.f32 0.0, %v3004
      %v3006 = vpop.f32.mrf.mxu0
      %3007 = vmatprep.mubr.bf16.mxu0 0
      %3008 = vmatmul.mubr.bf16.gmra.mxu0 %v2837
      %v3009 = vpop.f32.mrf.mxu0
      %v3010 = vadd.f32 0.0, %v3009
      %v3011 = vpop.f32.mrf.mxu0
      %v3012 = vpop.f32.mrf.mxu0
      %v3013 = vadd.f32 0.0, %v3012
      %v3014 = vpop.f32.mrf.mxu0
      %3015 = vdwg.mxu0
      %v3016 = vadd.f32 %v2678, %v2874
      %v3017 = vadd.f32 %v2679, %v2877
      %v3018 = vadd.f32 %v2680, %v2882
      %v3019 = vadd.f32 %v2681, %v2885
      %v3020 = vadd.f32 %v2682, %v2890
      %v3021 = vadd.f32 %v2683, %v2893
      %v3022 = vadd.f32 %v2684, %v2898
      %v3023 = vadd.f32 %v2685, %v2901
      %v3024 = vadd.f32 %v2686, %v2906
      %v3025 = vadd.f32 %v2687, %v2909
      %v3026 = vadd.f32 %v2688, %v2914
      %v3027 = vadd.f32 %v2689, %v2917
      %v3028 = vadd.f32 %v2690, %v2922
      %v3029 = vadd.f32 %v2691, %v2925
      %v3030 = vadd.f32 %v2692, %v2930
      %v3031 = vadd.f32 %v2693, %v2933
      %v3032 = vadd.f32 %v2694, %v2938
      %v3033 = vadd.f32 %v2695, %v2941
      %v3034 = vadd.f32 %v2696, %v2946
      %v3035 = vadd.f32 %v2697, %v2949
      %v3036 = vadd.f32 %v2698, %v2954
      %v3037 = vadd.f32 %v2699, %v2957
      %v3038 = vadd.f32 %v2700, %v2962
      %v3039 = vadd.f32 %v2701, %v2965
      %v3040 = vadd.f32 %v2702, %v2970
      %v3041 = vadd.f32 %v2703, %v2973
      %v3042 = vadd.f32 %v2704, %v2978
      %v3043 = vadd.f32 %v2705, %v2981
      %v3044 = vadd.f32 %v2706, %v2986
      %v3045 = vadd.f32 %v2707, %v2989
      %v3046 = vadd.f32 %v2708, %v2994
      %v3047 = vadd.f32 %v2709, %v2997
      %v3048 = vadd.f32 %v2710, %v3002
      %v3049 = vadd.f32 %v2711, %v3005
      %v3050 = vadd.f32 %v2712, %v3010
      %v3051 = vadd.f32 %v2713, %v3013
      %v3052 = vld [vmem:[%s258 + $0x26] sm:$0xff]
      %v3053 = vld [vmem:[%s258 + $0x2e] sm:$0xff]
      %v3054 = vld [vmem:[%s258 + $0x36] sm:$0xff]
      %v3055 = vld [vmem:[%s258 + $0x3e] sm:$0xff]
      %v3056 = vld [vmem:[%s258 + $0x46] sm:$0xff]
      %v3057 = vld [vmem:[%s258 + $0x4e] sm:$0xff]
      %v3058 = vld [vmem:[%s258 + $0x56] sm:$0xff]
      %v3059 = vld [vmem:[%s258 + $0x5e] sm:$0xff]
      %v3060 = vld [vmem:[%s258 + $0x66] sm:$0xff]
      %v3061 = vld [vmem:[%s258 + $0x6e] sm:$0xff]
      %v3062 = vld [vmem:[%s258 + $0x76] sm:$0xff]
      %v3063 = vld [vmem:[%s258 + $0x7e] sm:$0xff]
      %v3064 = vld [vmem:[%s258 + $0x86] sm:$0xff]
      %v3065 = vld [vmem:[%s258 + $0x8e] sm:$0xff]
      %v3066 = vld [vmem:[%s258 + $0x96] sm:$0xff]
      %v3067 = vld [vmem:[%s258 + $0x9e] sm:$0xff]
      %v3068 = vld [vmem:[%s258 + $0xa6] sm:$0xff]
      %v3069 = vld [vmem:[%s258 + $0xae] sm:$0xff]
      %v3070 = vld [vmem:[%s258 + $0xb6] sm:$0xff]
      %v3071 = vld [vmem:[%s258 + $0xbe] sm:$0xff]
      %v3072 = vld [vmem:[%s258 + $0xc6] sm:$0xff]
      %v3073 = vld [vmem:[%s258 + $0xce] sm:$0xff]
      %v3074 = vld [vmem:[%s258 + $0xd6] sm:$0xff]
      %v3075 = vld [vmem:[%s258 + $0xde] sm:$0xff]
      %v3076 = vld [vmem:[%s258 + $0xe6] sm:$0xff]
      %v3077 = vld [vmem:[%s258 + $0xee] sm:$0xff]
      %v3078 = vld [vmem:[%s258 + $0xf6] sm:$0xff]
      %v3079 = vld [vmem:[%s258 + $0xfe] sm:$0xff]
      %v3080 = vld [vmem:[%s258 + $0x106] sm:$0xff]
      %v3081 = vld [vmem:[%s258 + $0x10e] sm:$0xff]
      %v3082 = vld [vmem:[%s258 + $0x116] sm:$0xff]
      %v3083 = vld [vmem:[%s258 + $0x11e] sm:$0xff]
      %v3084 = vld [vmem:[%s258 + $0x126] sm:$0xff]
      %v3085 = vld [vmem:[%s258 + $0x12e] sm:$0xff]
      %v3086 = vld [vmem:[%s258 + $0x136] sm:$0xff]
      %v3087 = vld [vmem:[%s258 + $0x13e] sm:$0xff]
      %v3088 = vpack.c.bf16 %v3053, %v3052
      %v3089 = vpack.c.bf16 %v3055, %v3054
      %v3090 = vpack.c.bf16 %v3057, %v3056
      %v3091 = vpack.c.bf16 %v3059, %v3058
      %v3092 = vpack.c.bf16 %v3061, %v3060
      %v3093 = vpack.c.bf16 %v3063, %v3062
      %v3094 = vpack.c.bf16 %v3065, %v3064
      %v3095 = vpack.c.bf16 %v3067, %v3066
      %v3096 = vpack.c.bf16 %v3069, %v3068
      %v3097 = vpack.c.bf16 %v3071, %v3070
      %v3098 = vpack.c.bf16 %v3073, %v3072
      %v3099 = vpack.c.bf16 %v3075, %v3074
      %v3100 = vpack.c.bf16 %v3077, %v3076
      %v3101 = vpack.c.bf16 %v3079, %v3078
      %v3102 = vpack.c.bf16 %v3081, %v3080
      %v3103 = vpack.c.bf16 %v3083, %v3082
      %v3104 = vpack.c.bf16 %v3085, %v3084
      %v3105 = vpack.c.bf16 %v3087, %v3086
      %s3106 = scalar_lea.vmem %s263, 128
      %v3107 = vld [vmem:[%s3106] sm:$0xf]
      %v3108 = vld [vmem:[%s3106 + $0x4] sm:$0xf]
      %v3109 = vld [vmem:[%s3106 + $0x8] sm:$0xf]
      %v3110 = vld [vmem:[%s3106 + $0xc] sm:$0xf]
      %v3115 = vunpack.c.l.b16 %v3107
      %v3116 = vunpack.c.l.b16 %v3108
      %v3117 = vunpack.c.l.b16 %v3109
      %v3118 = vunpack.c.l.b16 %v3110
      %v3119 = vpack.c.b16 %v3116, %v3115
      %v3120 = vpack.c.b16 %v3118, %v3117
      %v3124 = vsel %vm418, %v3088, 0
      %v3127 = vsel %vm418, %v3089, 0
      %v3130 = vsel %vm418, %v3090, 0
      %v3133 = vsel %vm418, %v3091, 0
      %v3136 = vsel %vm418, %v3092, 0
      %v3139 = vsel %vm418, %v3093, 0
      %v3142 = vsel %vm418, %v3094, 0
      %v3145 = vsel %vm418, %v3095, 0
      %v3148 = vsel %vm418, %v3096, 0
      %v3151 = vsel %vm418, %v3097, 0
      %v3154 = vsel %vm418, %v3098, 0
      %v3157 = vsel %vm418, %v3099, 0
      %v3160 = vsel %vm418, %v3100, 0
      %v3163 = vsel %vm418, %v3101, 0
      %v3166 = vsel %vm418, %v3102, 0
      %v3169 = vsel %vm418, %v3103, 0
      %v3172 = vsel %vm418, %v3104, 0
      %v3175 = vsel %vm418, %v3105, 0
      %3177 = vmatprep.subr.bf16.mxu0 0
      %3178 = vmatpush1.bf16.msra.mxu0 0
      %3179 = vmatprep.subr.bf16.mxu0 0
      %3180 = vmatpush1.bf16.msra.mxu0 0
      %3181 = vmatprep.subr.bf16.mxu0 0
      %3182 = vmatpush1.bf16.msra.mxu0 0
      %3183 = vmatprep.subr.bf16.mxu0 0
      %3184 = vmatpush1.bf16.msra.mxu0 0
      %3185 = vmatprep.subr.bf16.mxu0 0
      %3186 = vmatpush1.bf16.msra.mxu0 0
      %3187 = vmatprep.subr.bf16.mxu0 0
      %3188 = vmatpush1.bf16.msra.mxu0 0
      %3189 = vmatprep.subr.bf16.mxu0 0
      %3190 = vmatpush1.bf16.msra.mxu0 %v3120
      %3191 = vmatprep.subr.bf16.mxu0 0
      %3192 = vmatpush1.bf16.msra.mxu0 %v3119
      %3193 = vmatprep.subr.bf16.mxu0 0
      %3194 = vmatpush2.bf16.msra.mxu0 0
      %3195 = vmatprep.subr.bf16.mxu0 0
      %3196 = vmatpush2.bf16.msra.mxu0 0
      %3197 = vmatprep.subr.bf16.mxu0 0
      %3198 = vmatpush2.bf16.msra.mxu0 0
      %3199 = vmatprep.subr.bf16.mxu0 0
      %3200 = vmatpush2.bf16.msra.mxu0 0
      %3201 = vmatprep.subr.bf16.mxu0 0
      %3202 = vmatpush2.bf16.msra.mxu0 0
      %3203 = vmatprep.subr.bf16.mxu0 0
      %3204 = vmatpush2.bf16.msra.mxu0 0
      %3205 = vmatprep.subr.bf16.mxu0 0
      %3206 = vmatpush2.bf16.msra.mxu0 0
      %3207 = vmatprep.subr.bf16.mxu0 0
      %3208 = vmatpush2.bf16.msra.mxu0 0
      %3209 = vmatprep.mubr.bf16.mxu0 0
      %3210 = vmatmul.mubr.bf16.gmra.mxu0 %v3124
      %v3211 = vpop.f32.mrf.mxu0
      %v3212 = vadd.f32 0.0, %v3211
      %v3213 = vpop.f32.mrf.mxu0
      %v3214 = vpop.f32.mrf.mxu0
      %v3215 = vadd.f32 0.0, %v3214
      %v3216 = vpop.f32.mrf.mxu0
      %3217 = vmatprep.mubr.bf16.mxu0 0
      %3218 = vmatmul.mubr.bf16.gmra.mxu0 %v3127
      %v3219 = vpop.f32.mrf.mxu0
      %v3220 = vadd.f32 0.0, %v3219
      %v3221 = vpop.f32.mrf.mxu0
      %v3222 = vpop.f32.mrf.mxu0
      %v3223 = vadd.f32 0.0, %v3222
      %v3224 = vpop.f32.mrf.mxu0
      %3225 = vmatprep.mubr.bf16.mxu0 0
      %3226 = vmatmul.mubr.bf16.gmra.mxu0 %v3130
      %v3227 = vpop.f32.mrf.mxu0
      %v3228 = vadd.f32 0.0, %v3227
      %v3229 = vpop.f32.mrf.mxu0
      %v3230 = vpop.f32.mrf.mxu0
      %v3231 = vadd.f32 0.0, %v3230
      %v3232 = vpop.f32.mrf.mxu0
      %3233 = vmatprep.mubr.bf16.mxu0 0
      %3234 = vmatmul.mubr.bf16.gmra.mxu0 %v3133
      %v3235 = vpop.f32.mrf.mxu0
      %v3236 = vadd.f32 0.0, %v3235
      %v3237 = vpop.f32.mrf.mxu0
      %v3238 = vpop.f32.mrf.mxu0
      %v3239 = vadd.f32 0.0, %v3238
      %v3240 = vpop.f32.mrf.mxu0
      %3241 = vmatprep.mubr.bf16.mxu0 0
      %3242 = vmatmul.mubr.bf16.gmra.mxu0 %v3136
      %v3243 = vpop.f32.mrf.mxu0
      %v3244 = vadd.f32 0.0, %v3243
      %v3245 = vpop.f32.mrf.mxu0
      %v3246 = vpop.f32.mrf.mxu0
      %v3247 = vadd.f32 0.0, %v3246
      %v3248 = vpop.f32.mrf.mxu0
      %3249 = vmatprep.mubr.bf16.mxu0 0
      %3250 = vmatmul.mubr.bf16.gmra.mxu0 %v3139
      %v3251 = vpop.f32.mrf.mxu0
      %v3252 = vadd.f32 0.0, %v3251
      %v3253 = vpop.f32.mrf.mxu0
      %v3254 = vpop.f32.mrf.mxu0
      %v3255 = vadd.f32 0.0, %v3254
      %v3256 = vpop.f32.mrf.mxu0
      %3257 = vmatprep.mubr.bf16.mxu0 0
      %3258 = vmatmul.mubr.bf16.gmra.mxu0 %v3142
      %v3259 = vpop.f32.mrf.mxu0
      %v3260 = vadd.f32 0.0, %v3259
      %v3261 = vpop.f32.mrf.mxu0
      %v3262 = vpop.f32.mrf.mxu0
      %v3263 = vadd.f32 0.0, %v3262
      %v3264 = vpop.f32.mrf.mxu0
      %3265 = vmatprep.mubr.bf16.mxu0 0
      %3266 = vmatmul.mubr.bf16.gmra.mxu0 %v3145
      %v3267 = vpop.f32.mrf.mxu0
      %v3268 = vadd.f32 0.0, %v3267
      %v3269 = vpop.f32.mrf.mxu0
      %v3270 = vpop.f32.mrf.mxu0
      %v3271 = vadd.f32 0.0, %v3270
      %v3272 = vpop.f32.mrf.mxu0
      %3273 = vmatprep.mubr.bf16.mxu0 0
      %3274 = vmatmul.mubr.bf16.gmra.mxu0 %v3148
      %v3275 = vpop.f32.mrf.mxu0
      %v3276 = vadd.f32 0.0, %v3275
      %v3277 = vpop.f32.mrf.mxu0
      %v3278 = vpop.f32.mrf.mxu0
      %v3279 = vadd.f32 0.0, %v3278
      %v3280 = vpop.f32.mrf.mxu0
      %3281 = vmatprep.mubr.bf16.mxu0 0
      %3282 = vmatmul.mubr.bf16.gmra.mxu0 %v3151
      %v3283 = vpop.f32.mrf.mxu0
      %v3284 = vadd.f32 0.0, %v3283
      %v3285 = vpop.f32.mrf.mxu0
      %v3286 = vpop.f32.mrf.mxu0
      %v3287 = vadd.f32 0.0, %v3286
      %v3288 = vpop.f32.mrf.mxu0
      %3289 = vmatprep.mubr.bf16.mxu0 0
      %3290 = vmatmul.mubr.bf16.gmra.mxu0 %v3154
      %v3291 = vpop.f32.mrf.mxu0
      %v3292 = vadd.f32 0.0, %v3291
      %v3293 = vpop.f32.mrf.mxu0
      %v3294 = vpop.f32.mrf.mxu0
      %v3295 = vadd.f32 0.0, %v3294
      %v3296 = vpop.f32.mrf.mxu0
      %3297 = vmatprep.mubr.bf16.mxu0 0
      %3298 = vmatmul.mubr.bf16.gmra.mxu0 %v3157
      %v3299 = vpop.f32.mrf.mxu0
      %v3300 = vadd.f32 0.0, %v3299
      %v3301 = vpop.f32.mrf.mxu0
      %v3302 = vpop.f32.mrf.mxu0
      %v3303 = vadd.f32 0.0, %v3302
      %v3304 = vpop.f32.mrf.mxu0
      %3305 = vmatprep.mubr.bf16.mxu0 0
      %3306 = vmatmul.mubr.bf16.gmra.mxu0 %v3160
      %v3307 = vpop.f32.mrf.mxu0
      %v3308 = vadd.f32 0.0, %v3307
      %v3309 = vpop.f32.mrf.mxu0
      %v3310 = vpop.f32.mrf.mxu0
      %v3311 = vadd.f32 0.0, %v3310
      %v3312 = vpop.f32.mrf.mxu0
      %3313 = vmatprep.mubr.bf16.mxu0 0
      %3314 = vmatmul.mubr.bf16.gmra.mxu0 %v3163
      %v3315 = vpop.f32.mrf.mxu0
      %v3316 = vadd.f32 0.0, %v3315
      %v3317 = vpop.f32.mrf.mxu0
      %v3318 = vpop.f32.mrf.mxu0
      %v3319 = vadd.f32 0.0, %v3318
      %v3320 = vpop.f32.mrf.mxu0
      %3321 = vmatprep.mubr.bf16.mxu0 0
      %3322 = vmatmul.mubr.bf16.gmra.mxu0 %v3166
      %v3323 = vpop.f32.mrf.mxu0
      %v3324 = vadd.f32 0.0, %v3323
      %v3325 = vpop.f32.mrf.mxu0
      %v3326 = vpop.f32.mrf.mxu0
      %v3327 = vadd.f32 0.0, %v3326
      %v3328 = vpop.f32.mrf.mxu0
      %3329 = vmatprep.mubr.bf16.mxu0 0
      %3330 = vmatmul.mubr.bf16.gmra.mxu0 %v3169
      %v3331 = vpop.f32.mrf.mxu0
      %v3332 = vadd.f32 0.0, %v3331
      %v3333 = vpop.f32.mrf.mxu0
      %v3334 = vpop.f32.mrf.mxu0
      %v3335 = vadd.f32 0.0, %v3334
      %v3336 = vpop.f32.mrf.mxu0
      %3337 = vmatprep.mubr.bf16.mxu0 0
      %3338 = vmatmul.mubr.bf16.gmra.mxu0 %v3172
      %v3339 = vpop.f32.mrf.mxu0
      %v3340 = vadd.f32 0.0, %v3339
      %v3341 = vpop.f32.mrf.mxu0
      %v3342 = vpop.f32.mrf.mxu0
      %v3343 = vadd.f32 0.0, %v3342
      %v3344 = vpop.f32.mrf.mxu0
      %3345 = vmatprep.mubr.bf16.mxu0 0
      %3346 = vmatmul.mubr.bf16.gmra.mxu0 %v3175
      %v3347 = vpop.f32.mrf.mxu0
      %v3348 = vadd.f32 0.0, %v3347
      %v3349 = vpop.f32.mrf.mxu0
      %v3350 = vpop.f32.mrf.mxu0
      %v3351 = vadd.f32 0.0, %v3350
      %v3352 = vpop.f32.mrf.mxu0
      %3353 = vdwg.mxu0
      %v3354 = vadd.f32 %v3016, %v3212
      %v3355 = vadd.f32 %v3017, %v3215
      %v3356 = vadd.f32 %v3018, %v3220
      %v3357 = vadd.f32 %v3019, %v3223
      %v3358 = vadd.f32 %v3020, %v3228
      %v3359 = vadd.f32 %v3021, %v3231
      %v3360 = vadd.f32 %v3022, %v3236
      %v3361 = vadd.f32 %v3023, %v3239
      %v3362 = vadd.f32 %v3024, %v3244
      %v3363 = vadd.f32 %v3025, %v3247
      %v3364 = vadd.f32 %v3026, %v3252
      %v3365 = vadd.f32 %v3027, %v3255
      %v3366 = vadd.f32 %v3028, %v3260
      %v3367 = vadd.f32 %v3029, %v3263
      %v3368 = vadd.f32 %v3030, %v3268
      %v3369 = vadd.f32 %v3031, %v3271
      %v3370 = vadd.f32 %v3032, %v3276
      %v3371 = vadd.f32 %v3033, %v3279
      %v3372 = vadd.f32 %v3034, %v3284
      %v3373 = vadd.f32 %v3035, %v3287
      %v3374 = vadd.f32 %v3036, %v3292
      %v3375 = vadd.f32 %v3037, %v3295
      %v3376 = vadd.f32 %v3038, %v3300
      %v3377 = vadd.f32 %v3039, %v3303
      %v3378 = vadd.f32 %v3040, %v3308
      %v3379 = vadd.f32 %v3041, %v3311
      %v3380 = vadd.f32 %v3042, %v3316
      %v3381 = vadd.f32 %v3043, %v3319
      %v3382 = vadd.f32 %v3044, %v3324
      %v3383 = vadd.f32 %v3045, %v3327
      %v3384 = vadd.f32 %v3046, %v3332
      %v3385 = vadd.f32 %v3047, %v3335
      %v3386 = vadd.f32 %v3048, %v3340
      %v3387 = vadd.f32 %v3049, %v3343
      %v3388 = vadd.f32 %v3050, %v3348
      %v3389 = vadd.f32 %v3051, %v3351
      %vm3390 = vcmask 64512
      %3391 = vst.msk [vmem:[#allocation2] sm:$0xff] %vm3390, %v3354
      %3392 = vst.msk [vmem:[#allocation2 + $0x8] sm:$0xff] %vm3390, %v3355
      %3393 = vst.msk [vmem:[#allocation2 + $0x10] sm:$0xff] %vm3390, %v3356
      %3394 = vst.msk [vmem:[#allocation2 + $0x18] sm:$0xff] %vm3390, %v3357
      %3395 = vst.msk [vmem:[#allocation2 + $0x20] sm:$0xff] %vm3390, %v3358
      %3396 = vst.msk [vmem:[#allocation2 + $0x28] sm:$0xff] %vm3390, %v3359
      %3397 = vst.msk [vmem:[#allocation2 + $0x30] sm:$0xff] %vm3390, %v3360
      %3398 = vst.msk [vmem:[#allocation2 + $0x38] sm:$0xff] %vm3390, %v3361
      %3399 = vst.msk [vmem:[#allocation2 + $0x40] sm:$0xff] %vm3390, %v3362
      %3400 = vst.msk [vmem:[#allocation2 + $0x48] sm:$0xff] %vm3390, %v3363
      %3401 = vst.msk [vmem:[#allocation2 + $0x50] sm:$0xff] %vm3390, %v3364
      %3402 = vst.msk [vmem:[#allocation2 + $0x58] sm:$0xff] %vm3390, %v3365
      %3403 = vst.msk [vmem:[#allocation2 + $0x60] sm:$0xff] %vm3390, %v3366
      %3404 = vst.msk [vmem:[#allocation2 + $0x68] sm:$0xff] %vm3390, %v3367
      %3405 = vst.msk [vmem:[#allocation2 + $0x70] sm:$0xff] %vm3390, %v3368
      %3406 = vst.msk [vmem:[#allocation2 + $0x78] sm:$0xff] %vm3390, %v3369
      %3407 = vst.msk [vmem:[#allocation2 + $0x80] sm:$0xff] %vm3390, %v3370
      %3408 = vst.msk [vmem:[#allocation2 + $0x88] sm:$0xff] %vm3390, %v3371
      %3409 = vst.msk [vmem:[#allocation2 + $0x90] sm:$0xff] %vm3390, %v3372
      %3410 = vst.msk [vmem:[#allocation2 + $0x98] sm:$0xff] %vm3390, %v3373
      %3411 = vst.msk [vmem:[#allocation2 + $0xa0] sm:$0xff] %vm3390, %v3374
      %3412 = vst.msk [vmem:[#allocation2 + $0xa8] sm:$0xff] %vm3390, %v3375
      %3413 = vst.msk [vmem:[#allocation2 + $0xb0] sm:$0xff] %vm3390, %v3376
      %3414 = vst.msk [vmem:[#allocation2 + $0xb8] sm:$0xff] %vm3390, %v3377
      %3415 = vst.msk [vmem:[#allocation2 + $0xc0] sm:$0xff] %vm3390, %v3378
      %3416 = vst.msk [vmem:[#allocation2 + $0xc8] sm:$0xff] %vm3390, %v3379
      %3417 = vst.msk [vmem:[#allocation2 + $0xd0] sm:$0xff] %vm3390, %v3380
      %3418 = vst.msk [vmem:[#allocation2 + $0xd8] sm:$0xff] %vm3390, %v3381
      %3419 = vst.msk [vmem:[#allocation2 + $0xe0] sm:$0xff] %vm3390, %v3382
      %3420 = vst.msk [vmem:[#allocation2 + $0xe8] sm:$0xff] %vm3390, %v3383
      %3421 = vst.msk [vmem:[#allocation2 + $0xf0] sm:$0xff] %vm3390, %v3384
      %3422 = vst.msk [vmem:[#allocation2 + $0xf8] sm:$0xff] %vm3390, %v3385
      %3423 = vst.msk [vmem:[#allocation2 + $0x100] sm:$0xff] %vm3390, %v3386
      %3424 = vst.msk [vmem:[#allocation2 + $0x108] sm:$0xff] %vm3390, %v3387
      %3425 = vst.msk [vmem:[#allocation2 + $0x110] sm:$0xff] %vm3390, %v3388
      %3426 = vst.msk [vmem:[#allocation2 + $0x118] sm:$0xff] %vm3390, %v3389
      // Predicated region
      $region45: #{fcn_head_forward.1} parent=39 // pred_check
        %p3427 = pneg %p271
      $region46: #{fcn_head_forward.1} parent=39 // pred_check_branch
        %3429 = sbr.rel (%p3427) target = $region48
      $region47: #{fcn_head_forward.1} parent=39 // pred_region
        %v3430 = vld [vmem:[#allocation2] sm:$0xff]
        %v3431 = vld [vmem:[#allocation2 + $0x8] sm:$0xff]
        %v3432 = vld [vmem:[#allocation2 + $0x10] sm:$0xff]
        %v3433 = vld [vmem:[#allocation2 + $0x18] sm:$0xff]
        %v3434 = vld [vmem:[#allocation2 + $0x20] sm:$0xff]
        %v3435 = vld [vmem:[#allocation2 + $0x28] sm:$0xff]
        %v3436 = vld [vmem:[#allocation2 + $0x30] sm:$0xff]
        %v3437 = vld [vmem:[#allocation2 + $0x38] sm:$0xff]
        %v3438 = vld [vmem:[#allocation2 + $0x40] sm:$0xff]
        %v3439 = vld [vmem:[#allocation2 + $0x48] sm:$0xff]
        %v3440 = vld [vmem:[#allocation2 + $0x50] sm:$0xff]
        %v3441 = vld [vmem:[#allocation2 + $0x58] sm:$0xff]
        %v3442 = vld [vmem:[#allocation2 + $0x60] sm:$0xff]
        %v3443 = vld [vmem:[#allocation2 + $0x68] sm:$0xff]
        %v3444 = vld [vmem:[#allocation2 + $0x70] sm:$0xff]
        %v3445 = vld [vmem:[#allocation2 + $0x78] sm:$0xff]
        %v3446 = vld [vmem:[#allocation2 + $0x80] sm:$0xff]
        %v3447 = vld [vmem:[#allocation2 + $0x88] sm:$0xff]
        %v3448 = vld [vmem:[#allocation2 + $0x90] sm:$0xff]
        %v3449 = vld [vmem:[#allocation2 + $0x98] sm:$0xff]
        %v3450 = vld [vmem:[#allocation2 + $0xa0] sm:$0xff]
        %v3451 = vld [vmem:[#allocation2 + $0xa8] sm:$0xff]
        %v3452 = vld [vmem:[#allocation2 + $0xb0] sm:$0xff]
        %v3453 = vld [vmem:[#allocation2 + $0xb8] sm:$0xff]
        %v3454 = vld [vmem:[#allocation2 + $0xc0] sm:$0xff]
        %v3455 = vld [vmem:[#allocation2 + $0xc8] sm:$0xff]
        %v3456 = vld [vmem:[#allocation2 + $0xd0] sm:$0xff]
        %v3457 = vld [vmem:[#allocation2 + $0xd8] sm:$0xff]
        %v3458 = vld [vmem:[#allocation2 + $0xe0] sm:$0xff]
        %v3459 = vld [vmem:[#allocation2 + $0xe8] sm:$0xff]
        %v3460 = vld [vmem:[#allocation2 + $0xf0] sm:$0xff]
        %v3461 = vld [vmem:[#allocation2 + $0xf8] sm:$0xff]
        %v3462 = vld [vmem:[#allocation2 + $0x100] sm:$0xff]
        %v3463 = vld [vmem:[#allocation2 + $0x108] sm:$0xff]
        %v3464 = vld [vmem:[#allocation2 + $0x110] sm:$0xff]
        %v3465 = vld [vmem:[#allocation2 + $0x118] sm:$0xff]
        %v3466 = vld [vmem:[%s2] sm:$0x1]
        %v3468 = vlaneseq
        %v3469 = vshrl.u32 %v3468, 7
        %v3470 = vsub.s32 0, %v3469
        %v3471 = vrot.slane %v3466, %v3470
        %v3473 = vadd.f32 %v3430, %v3471
        %v3474 = vadd.f32 %v3431, %v3471
        %v3475 = vadd.f32 %v3432, %v3471
        %v3476 = vadd.f32 %v3433, %v3471
        %v3477 = vadd.f32 %v3434, %v3471
        %v3478 = vadd.f32 %v3435, %v3471
        %v3479 = vadd.f32 %v3436, %v3471
        %v3480 = vadd.f32 %v3437, %v3471
        %v3481 = vadd.f32 %v3438, %v3471
        %v3482 = vadd.f32 %v3439, %v3471
        %v3483 = vadd.f32 %v3440, %v3471
        %v3484 = vadd.f32 %v3441, %v3471
        %v3485 = vadd.f32 %v3442, %v3471
        %v3486 = vadd.f32 %v3443, %v3471
        %v3487 = vadd.f32 %v3444, %v3471
        %v3488 = vadd.f32 %v3445, %v3471
        %v3489 = vadd.f32 %v3446, %v3471
        %v3490 = vadd.f32 %v3447, %v3471
        %v3491 = vadd.f32 %v3448, %v3471
        %v3492 = vadd.f32 %v3449, %v3471
        %v3493 = vadd.f32 %v3450, %v3471
        %v3494 = vadd.f32 %v3451, %v3471
        %v3495 = vadd.f32 %v3452, %v3471
        %v3496 = vadd.f32 %v3453, %v3471
        %v3497 = vadd.f32 %v3454, %v3471
        %v3498 = vadd.f32 %v3455, %v3471
        %v3499 = vadd.f32 %v3456, %v3471
        %v3500 = vadd.f32 %v3457, %v3471
        %v3501 = vadd.f32 %v3458, %v3471
        %v3502 = vadd.f32 %v3459, %v3471
        %v3503 = vadd.f32 %v3460, %v3471
        %v3504 = vadd.f32 %v3461, %v3471
        %v3505 = vadd.f32 %v3462, %v3471
        %v3506 = vadd.f32 %v3463, %v3471
        %v3507 = vadd.f32 %v3464, %v3471
        %v3508 = vadd.f32 %v3465, %v3471
        %v3509 = vmax.f32 %v3473, 0.0
        %v3510 = vmax.f32 %v3474, 0.0
        %v3511 = vmax.f32 %v3475, 0.0
        %v3512 = vmax.f32 %v3476, 0.0
        %v3513 = vmax.f32 %v3477, 0.0
        %v3514 = vmax.f32 %v3478, 0.0
        %v3515 = vmax.f32 %v3479, 0.0
        %v3516 = vmax.f32 %v3480, 0.0
        %v3517 = vmax.f32 %v3481, 0.0
        %v3518 = vmax.f32 %v3482, 0.0
        %v3519 = vmax.f32 %v3483, 0.0
        %v3520 = vmax.f32 %v3484, 0.0
        %v3521 = vmax.f32 %v3485, 0.0
        %v3522 = vmax.f32 %v3486, 0.0
        %v3523 = vmax.f32 %v3487, 0.0
        %v3524 = vmax.f32 %v3488, 0.0
        %v3525 = vmax.f32 %v3489, 0.0
        %v3526 = vmax.f32 %v3490, 0.0
        %v3527 = vmax.f32 %v3491, 0.0
        %v3528 = vmax.f32 %v3492, 0.0
        %v3529 = vmax.f32 %v3493, 0.0
        %v3530 = vmax.f32 %v3494, 0.0
        %v3531 = vmax.f32 %v3495, 0.0
        %v3532 = vmax.f32 %v3496, 0.0
        %v3533 = vmax.f32 %v3497, 0.0
        %v3534 = vmax.f32 %v3498, 0.0
        %v3535 = vmax.f32 %v3499, 0.0
        %v3536 = vmax.f32 %v3500, 0.0
        %v3537 = vmax.f32 %v3501, 0.0
        %v3538 = vmax.f32 %v3502, 0.0
        %v3539 = vmax.f32 %v3503, 0.0
        %v3540 = vmax.f32 %v3504, 0.0
        %v3541 = vmax.f32 %v3505, 0.0
        %v3542 = vmax.f32 %v3506, 0.0
        %v3543 = vmax.f32 %v3507, 0.0
        %v3544 = vmax.f32 %v3508, 0.0
        %v3545 = vpack.c.bf16 %v3510, %v3509
        %v3546 = vpack.c.bf16 %v3512, %v3511
        %v3547 = vpack.c.bf16 %v3514, %v3513
        %v3548 = vpack.c.bf16 %v3516, %v3515
        %v3549 = vpack.c.bf16 %v3518, %v3517
        %v3550 = vpack.c.bf16 %v3520, %v3519
        %v3551 = vpack.c.bf16 %v3522, %v3521
        %v3552 = vpack.c.bf16 %v3524, %v3523
        %v3553 = vpack.c.bf16 %v3526, %v3525
        %v3554 = vpack.c.bf16 %v3528, %v3527
        %v3555 = vpack.c.bf16 %v3530, %v3529
        %v3556 = vpack.c.bf16 %v3532, %v3531
        %v3557 = vpack.c.bf16 %v3534, %v3533
        %v3558 = vpack.c.bf16 %v3536, %v3535
        %v3559 = vpack.c.bf16 %v3538, %v3537
        %v3560 = vpack.c.bf16 %v3540, %v3539
        %v3561 = vpack.c.bf16 %v3542, %v3541
        %v3562 = vpack.c.bf16 %v3544, %v3543
        %v3563 = vld [vmem:[%s3] sm:$0xf]
        %v3564 = vld [vmem:[%s4] sm:$0x1]
        %v3566 = vlaneseq
        %v3567 = vshrl.u32 %v3566, 7
        %v3568 = vsub.s32 0, %v3567
        %v3569 = vrot.slane %v3564, %v3568
        %v3572 = vsel %vm3390, %v3545, 0
        %v3575 = vsel %vm3390, %v3546, 0
        %v3578 = vsel %vm3390, %v3547, 0
        %v3581 = vsel %vm3390, %v3548, 0
        %v3584 = vsel %vm3390, %v3549, 0
        %v3587 = vsel %vm3390, %v3550, 0
        %v3590 = vsel %vm3390, %v3551, 0
        %v3593 = vsel %vm3390, %v3552, 0
        %v3596 = vsel %vm3390, %v3553, 0
        %v3599 = vsel %vm3390, %v3554, 0
        %v3602 = vsel %vm3390, %v3555, 0
        %v3605 = vsel %vm3390, %v3556, 0
        %v3608 = vsel %vm3390, %v3557, 0
        %v3611 = vsel %vm3390, %v3558, 0
        %v3614 = vsel %vm3390, %v3559, 0
        %v3617 = vsel %vm3390, %v3560, 0
        %v3620 = vsel %vm3390, %v3561, 0
        %v3623 = vsel %vm3390, %v3562, 0
        %vm3625 = vcmask 1043456
        %v3627 = vsel %vm3625, %v3563, 0
        %3629 = vmatprep.subr.bf16.mxu0 0
        %3630 = vmatpush1.bf16.msra.mxu0 0
        %3631 = vmatprep.subr.bf16.mxu0 0
        %3632 = vmatpush1.bf16.msra.mxu0 0
        %3633 = vmatprep.subr.bf16.mxu0 0
        %3634 = vmatpush1.bf16.msra.mxu0 0
        %3635 = vmatprep.subr.bf16.mxu0 0
        %3636 = vmatpush1.bf16.msra.mxu0 0
        %3637 = vmatprep.subr.bf16.mxu0 0
        %3638 = vmatpush1.bf16.msra.mxu0 0
        %3639 = vmatprep.subr.bf16.mxu0 0
        %3640 = vmatpush1.bf16.msra.mxu0 0
        %3641 = vmatprep.subr.bf16.mxu0 0
        %3642 = vmatpush1.bf16.msra.mxu0 0
        %3643 = vmatprep.subr.bf16.mxu0 0
        %3644 = vmatpush1.bf16.msra.mxu0 %v3627
        %3645 = vmatprep.subr.bf16.mxu0 0
        %3646 = vmatpush2.bf16.msra.mxu0 0
        %3647 = vmatprep.subr.bf16.mxu0 0
        %3648 = vmatpush2.bf16.msra.mxu0 0
        %3649 = vmatprep.subr.bf16.mxu0 0
        %3650 = vmatpush2.bf16.msra.mxu0 0
        %3651 = vmatprep.subr.bf16.mxu0 0
        %3652 = vmatpush2.bf16.msra.mxu0 0
        %3653 = vmatprep.subr.bf16.mxu0 0
        %3654 = vmatpush2.bf16.msra.mxu0 0
        %3655 = vmatprep.subr.bf16.mxu0 0
        %3656 = vmatpush2.bf16.msra.mxu0 0
        %3657 = vmatprep.subr.bf16.mxu0 0
        %3658 = vmatpush2.bf16.msra.mxu0 0
        %3659 = vmatprep.subr.bf16.mxu0 0
        %3660 = vmatpush2.bf16.msra.mxu0 0
        %3661 = vmatprep.mubr.bf16.mxu0 0
        %3662 = vmatmul.mubr.bf16.gmra.mxu0 %v3572
        %v3663 = vpop.f32.mrf.mxu0
        %v3664 = vadd.f32 %v3569, %v3663
        %v3665 = vpop.f32.mrf.mxu0
        %v3666 = vpop.f32.mrf.mxu0
        %v3667 = vadd.f32 %v3569, %v3666
        %v3668 = vpop.f32.mrf.mxu0
        %3669 = vmatprep.mubr.bf16.mxu0 0
        %3670 = vmatmul.mubr.bf16.gmra.mxu0 %v3575
        %v3671 = vpop.f32.mrf.mxu0
        %v3672 = vadd.f32 %v3569, %v3671
        %v3673 = vpop.f32.mrf.mxu0
        %v3674 = vpop.f32.mrf.mxu0
        %v3675 = vadd.f32 %v3569, %v3674
        %v3676 = vpop.f32.mrf.mxu0
        %3677 = vmatprep.mubr.bf16.mxu0 0
        %3678 = vmatmul.mubr.bf16.gmra.mxu0 %v3578
        %v3679 = vpop.f32.mrf.mxu0
        %v3680 = vadd.f32 %v3569, %v3679
        %v3681 = vpop.f32.mrf.mxu0
        %v3682 = vpop.f32.mrf.mxu0
        %v3683 = vadd.f32 %v3569, %v3682
        %v3684 = vpop.f32.mrf.mxu0
        %3685 = vmatprep.mubr.bf16.mxu0 0
        %3686 = vmatmul.mubr.bf16.gmra.mxu0 %v3581
        %v3687 = vpop.f32.mrf.mxu0
        %v3688 = vadd.f32 %v3569, %v3687
        %v3689 = vpop.f32.mrf.mxu0
        %v3690 = vpop.f32.mrf.mxu0
        %v3691 = vadd.f32 %v3569, %v3690
        %v3692 = vpop.f32.mrf.mxu0
        %3693 = vmatprep.mubr.bf16.mxu0 0
        %3694 = vmatmul.mubr.bf16.gmra.mxu0 %v3584
        %v3695 = vpop.f32.mrf.mxu0
        %v3696 = vadd.f32 %v3569, %v3695
        %v3697 = vpop.f32.mrf.mxu0
        %v3698 = vpop.f32.mrf.mxu0
        %v3699 = vadd.f32 %v3569, %v3698
        %v3700 = vpop.f32.mrf.mxu0
        %3701 = vmatprep.mubr.bf16.mxu0 0
        %3702 = vmatmul.mubr.bf16.gmra.mxu0 %v3587
        %v3703 = vpop.f32.mrf.mxu0
        %v3704 = vadd.f32 %v3569, %v3703
        %v3705 = vpop.f32.mrf.mxu0
        %v3706 = vpop.f32.mrf.mxu0
        %v3707 = vadd.f32 %v3569, %v3706
        %v3708 = vpop.f32.mrf.mxu0
        %3709 = vmatprep.mubr.bf16.mxu0 0
        %3710 = vmatmul.mubr.bf16.gmra.mxu0 %v3590
        %v3711 = vpop.f32.mrf.mxu0
        %v3712 = vadd.f32 %v3569, %v3711
        %v3713 = vpop.f32.mrf.mxu0
        %v3714 = vpop.f32.mrf.mxu0
        %v3715 = vadd.f32 %v3569, %v3714
        %v3716 = vpop.f32.mrf.mxu0
        %3717 = vmatprep.mubr.bf16.mxu0 0
        %3718 = vmatmul.mubr.bf16.gmra.mxu0 %v3593
        %v3719 = vpop.f32.mrf.mxu0
        %v3720 = vadd.f32 %v3569, %v3719
        %v3721 = vpop.f32.mrf.mxu0
        %v3722 = vpop.f32.mrf.mxu0
        %v3723 = vadd.f32 %v3569, %v3722
        %v3724 = vpop.f32.mrf.mxu0
        %3725 = vmatprep.mubr.bf16.mxu0 0
        %3726 = vmatmul.mubr.bf16.gmra.mxu0 %v3596
        %v3727 = vpop.f32.mrf.mxu0
        %v3728 = vadd.f32 %v3569, %v3727
        %v3729 = vpop.f32.mrf.mxu0
        %v3730 = vpop.f32.mrf.mxu0
        %v3731 = vadd.f32 %v3569, %v3730
        %v3732 = vpop.f32.mrf.mxu0
        %3733 = vmatprep.mubr.bf16.mxu0 0
        %3734 = vmatmul.mubr.bf16.gmra.mxu0 %v3599
        %v3735 = vpop.f32.mrf.mxu0
        %v3736 = vadd.f32 %v3569, %v3735
        %v3737 = vpop.f32.mrf.mxu0
        %v3738 = vpop.f32.mrf.mxu0
        %v3739 = vadd.f32 %v3569, %v3738
        %v3740 = vpop.f32.mrf.mxu0
        %3741 = vmatprep.mubr.bf16.mxu0 0
        %3742 = vmatmul.mubr.bf16.gmra.mxu0 %v3602
        %v3743 = vpop.f32.mrf.mxu0
        %v3744 = vadd.f32 %v3569, %v3743
        %v3745 = vpop.f32.mrf.mxu0
        %v3746 = vpop.f32.mrf.mxu0
        %v3747 = vadd.f32 %v3569, %v3746
        %v3748 = vpop.f32.mrf.mxu0
        %3749 = vmatprep.mubr.bf16.mxu0 0
        %3750 = vmatmul.mubr.bf16.gmra.mxu0 %v3605
        %v3751 = vpop.f32.mrf.mxu0
        %v3752 = vadd.f32 %v3569, %v3751
        %v3753 = vpop.f32.mrf.mxu0
        %v3754 = vpop.f32.mrf.mxu0
        %v3755 = vadd.f32 %v3569, %v3754
        %v3756 = vpop.f32.mrf.mxu0
        %3757 = vmatprep.mubr.bf16.mxu0 0
        %3758 = vmatmul.mubr.bf16.gmra.mxu0 %v3608
        %v3759 = vpop.f32.mrf.mxu0
        %v3760 = vadd.f32 %v3569, %v3759
        %v3761 = vpop.f32.mrf.mxu0
        %v3762 = vpop.f32.mrf.mxu0
        %v3763 = vadd.f32 %v3569, %v3762
        %v3764 = vpop.f32.mrf.mxu0
        %3765 = vmatprep.mubr.bf16.mxu0 0
        %3766 = vmatmul.mubr.bf16.gmra.mxu0 %v3611
        %v3767 = vpop.f32.mrf.mxu0
        %v3768 = vadd.f32 %v3569, %v3767
        %v3769 = vpop.f32.mrf.mxu0
        %v3770 = vpop.f32.mrf.mxu0
        %v3771 = vadd.f32 %v3569, %v3770
        %v3772 = vpop.f32.mrf.mxu0
        %3773 = vmatprep.mubr.bf16.mxu0 0
        %3774 = vmatmul.mubr.bf16.gmra.mxu0 %v3614
        %v3775 = vpop.f32.mrf.mxu0
        %v3776 = vadd.f32 %v3569, %v3775
        %v3777 = vpop.f32.mrf.mxu0
        %v3778 = vpop.f32.mrf.mxu0
        %v3779 = vadd.f32 %v3569, %v3778
        %v3780 = vpop.f32.mrf.mxu0
        %3781 = vmatprep.mubr.bf16.mxu0 0
        %3782 = vmatmul.mubr.bf16.gmra.mxu0 %v3617
        %v3783 = vpop.f32.mrf.mxu0
        %v3784 = vadd.f32 %v3569, %v3783
        %v3785 = vpop.f32.mrf.mxu0
        %v3786 = vpop.f32.mrf.mxu0
        %v3787 = vadd.f32 %v3569, %v3786
        %v3788 = vpop.f32.mrf.mxu0
        %3789 = vmatprep.mubr.bf16.mxu0 0
        %3790 = vmatmul.mubr.bf16.gmra.mxu0 %v3620
        %v3791 = vpop.f32.mrf.mxu0
        %v3792 = vadd.f32 %v3569, %v3791
        %v3793 = vpop.f32.mrf.mxu0
        %v3794 = vpop.f32.mrf.mxu0
        %v3795 = vadd.f32 %v3569, %v3794
        %v3796 = vpop.f32.mrf.mxu0
        %3797 = vmatprep.mubr.bf16.mxu0 0
        %3798 = vmatmul.mubr.bf16.gmra.mxu0 %v3623
        %v3799 = vpop.f32.mrf.mxu0
        %v3800 = vadd.f32 %v3569, %v3799
        %v3801 = vpop.f32.mrf.mxu0
        %v3802 = vpop.f32.mrf.mxu0
        %v3803 = vadd.f32 %v3569, %v3802
        %v3804 = vpop.f32.mrf.mxu0
        %3805 = vdwg.mxu0
        %3806 = vst.msk [vmem:[%s269] sm:$0xff] %vm3390, %v3664
        %3807 = vst.msk [vmem:[%s269 + $0x8] sm:$0xff] %vm3390, %v3667
        %3808 = vst.msk [vmem:[%s269 + $0x10] sm:$0xff] %vm3390, %v3672
        %3809 = vst.msk [vmem:[%s269 + $0x18] sm:$0xff] %vm3390, %v3675
        %3810 = vst.msk [vmem:[%s269 + $0x20] sm:$0xff] %vm3390, %v3680
        %3811 = vst.msk [vmem:[%s269 + $0x28] sm:$0xff] %vm3390, %v3683
        %3812 = vst.msk [vmem:[%s269 + $0x30] sm:$0xff] %vm3390, %v3688
        %3813 = vst.msk [vmem:[%s269 + $0x38] sm:$0xff] %vm3390, %v3691
        %3814 = vst.msk [vmem:[%s269 + $0x40] sm:$0xff] %vm3390, %v3696
        %3815 = vst.msk [vmem:[%s269 + $0x48] sm:$0xff] %vm3390, %v3699
        %3816 = vst.msk [vmem:[%s269 + $0x50] sm:$0xff] %vm3390, %v3704
        %3817 = vst.msk [vmem:[%s269 + $0x58] sm:$0xff] %vm3390, %v3707
        %3818 = vst.msk [vmem:[%s269 + $0x60] sm:$0xff] %vm3390, %v3712
        %3819 = vst.msk [vmem:[%s269 + $0x68] sm:$0xff] %vm3390, %v3715
        %3820 = vst.msk [vmem:[%s269 + $0x70] sm:$0xff] %vm3390, %v3720
        %3821 = vst.msk [vmem:[%s269 + $0x78] sm:$0xff] %vm3390, %v3723
        %3822 = vst.msk [vmem:[%s269 + $0x80] sm:$0xff] %vm3390, %v3728
        %3823 = vst.msk [vmem:[%s269 + $0x88] sm:$0xff] %vm3390, %v3731
        %3824 = vst.msk [vmem:[%s269 + $0x90] sm:$0xff] %vm3390, %v3736
        %3825 = vst.msk [vmem:[%s269 + $0x98] sm:$0xff] %vm3390, %v3739
        %3826 = vst.msk [vmem:[%s269 + $0xa0] sm:$0xff] %vm3390, %v3744
        %3827 = vst.msk [vmem:[%s269 + $0xa8] sm:$0xff] %vm3390, %v3747
        %3828 = vst.msk [vmem:[%s269 + $0xb0] sm:$0xff] %vm3390, %v3752
        %3829 = vst.msk [vmem:[%s269 + $0xb8] sm:$0xff] %vm3390, %v3755
        %3830 = vst.msk [vmem:[%s269 + $0xc0] sm:$0xff] %vm3390, %v3760
        %3831 = vst.msk [vmem:[%s269 + $0xc8] sm:$0xff] %vm3390, %v3763
        %3832 = vst.msk [vmem:[%s269 + $0xd0] sm:$0xff] %vm3390, %v3768
        %3833 = vst.msk [vmem:[%s269 + $0xd8] sm:$0xff] %vm3390, %v3771
        %3834 = vst.msk [vmem:[%s269 + $0xe0] sm:$0xff] %vm3390, %v3776
        %3835 = vst.msk [vmem:[%s269 + $0xe8] sm:$0xff] %vm3390, %v3779
        %3836 = vst.msk [vmem:[%s269 + $0xf0] sm:$0xff] %vm3390, %v3784
        %3837 = vst.msk [vmem:[%s269 + $0xf8] sm:$0xff] %vm3390, %v3787
        %3838 = vst.msk [vmem:[%s269 + $0x100] sm:$0xff] %vm3390, %v3792
        %3839 = vst.msk [vmem:[%s269 + $0x108] sm:$0xff] %vm3390, %v3795
        %3840 = vst.msk [vmem:[%s269 + $0x110] sm:$0xff] %vm3390, %v3800
        %3841 = vst.msk [vmem:[%s269 + $0x118] sm:$0xff] %vm3390, %v3803
      $region48: #{fcn_head_forward.1} parent=39 // pred_fallthru
        _
      %p3842 = scmp.lt.s32.totalorder %s20, 1
      %s3843 = scalar_select %p3842, %s20, 1
      %s3844 = smul.addr %s3843, 36
      %s3845 = smul.addr %s3844, 8
      %s3846 = scalar_lea.vmem %s5, %s3845
      // Predicated region
      $region49: #{fcn_head_forward.1} parent=39 // pred_check
        %p3847 = pneg %p163
      $region50: #{fcn_head_forward.1} parent=39 // pred_check_branch
        %3849 = sbr.rel (%p3847) target = $region52
      $region51: #{fcn_head_forward.1} parent=39 // pred_region
        _
      $region52: #{fcn_head_forward.1} parent=39 // pred_fallthru
        _
    $region40: #{fcn_head_forward.1} parent=5 // pred_fallthru
      _
    %p3850 = scmp.le.s32.totalorder 2, %s11
    // Predicated region
    $region53: #{fcn_head_forward.1} parent=5 // pred_check
      %p3851 = pneg %p3850
    $region54: #{fcn_head_forward.1} parent=5 // pred_check_branch
      %3853 = sbr.rel (%p3851) target = $region56
    $region55: #{fcn_head_forward.1} parent=5 // pred_region
      %s3854 = ssub.s32 %s11, 2
      // Predicated region
      $region57: #{fcn_head_forward.1} parent=55 // pred_check
        %p3855 = pneg %p169
      $region58: #{fcn_head_forward.1} parent=55 // pred_check_branch
        %3857 = sbr.rel (%p3855) target = $region60
      $region59: #{fcn_head_forward.1} parent=55 // pred_region
        %p3858 = scmp.lt.s32.totalorder %s22, 1
        %s3859 = scalar_select %p3858, %s22, 1
        %s3860 = smul.addr %s3859, 36
        %s3861 = smul.addr %s3860, 8
        %s3862 = scalar_lea.vmem %s5, %s3861
      $region60: #{fcn_head_forward.1} parent=55 // pred_fallthru
        _
    $region56: #{fcn_head_forward.1} parent=5 // pred_fallthru
      _
  $region6: #{fcn_head_forward.1} parent=0 // loop_footer
    %s15 = sadd.s32 1, %s11
  $region7: #{fcn_head_forward.1} parent=0 // loop_footer_branch
    %10 = sbr.rel target = $region3
  $region8: #{fcn_head_forward.1} parent=0 // loop_exit
    _

</llo_original>
